<compile_context>
chip_gen: v5e
topology: v5e:2x2
jax: 0.10.0
libtpu: 0.0.40
codegen_flags: <defaults>
</compile_context>

<pallas_src>
import numpy as np
import jax
import jax.numpy as jnp
from jax.experimental import pallas as pl
from jax.experimental.pallas import tpu as pltpu


def _round_up(v, m):
    return -(-v // m) * m


# ----------------------------------------------------------------------------
# Kernel
# ----------------------------------------------------------------------------
def residual_se_kernel(x_ref, w1_ref, w2_ref, fc1_ref, fc2_ref, sh_ref, o_ref):
    Bb, T, Cinp = x_ref.shape
    Cp = o_ref.shape[2]            # padded out-channels (multiple of 128)
    Crp = fc1_ref.shape[1]         # padded reduced channels
    M = Bb * T
    cdt = w1_ref.dtype             # compute dtype (bf16)

    x = x_ref[...].reshape(M, Cinp)                                    # (M, Cinp)

    # Per-sample boundary masks for the k=3, pad=1 convolutions.
    t_idx = jax.lax.broadcasted_iota(jnp.int32, (Bb, T, 1), 1).reshape(M, 1)
    not_first = (t_idx != 0).astype(jnp.float32)       # kills the t==0 row
    not_last = (t_idx != T - 1).astype(jnp.float32)    # kills the t==T-1 row

    # conv1 (BN1 scale folded) + 1x1 shortcut (BNs scale folded): ONE matmul
    # over all taps; the tap partial results (not the inputs) are shifted
    # along T afterwards, so no im2col operand is ever materialized.
    #   cols [0,Cp)   center tap   [Cp,2Cp) shortcut
    #   cols [2Cp,3Cp) tap k=0 (-> shifted to t+1)   [3Cp,4Cp) tap k=2 (-> t-1)
    r1 = jnp.dot(x, w1_ref[...], preferred_element_type=jnp.float32)  # (M, 4*Cp)
    sc = r1[:, 1 * Cp:2 * Cp] + sh_ref[2:3, :]                        # shortcut + BNs shift
    h1 = r1[:, 0 * Cp:1 * Cp]
    h1 = h1 + pltpu.roll(r1[:, 2 * Cp:3 * Cp], 1, 0) * not_first      # x[t-1] tap
    h1 = h1 + pltpu.roll(r1[:, 3 * Cp:4 * Cp], M - 1, 0) * not_last   # x[t+1] tap
    h1 = jnp.maximum(h1 + sh_ref[0:1, :], 0.0)                        # BN1 shift + ReLU

    # conv2: same shift-the-outputs trick; h1 is cast to bf16 exactly once.
    h1b = h1.astype(cdt)
    r2 = jnp.dot(h1b, w2_ref[...], preferred_element_type=jnp.float32)  # (M, 3*Cp)
    h2 = r2[:, 0 * Cp:1 * Cp]
    h2 = h2 + pltpu.roll(r2[:, 1 * Cp:2 * Cp], 1, 0) * not_first
    h2 = h2 + pltpu.roll(r2[:, 2 * Cp:3 * Cp], M - 1, 0) * not_last
    h2 = h2 + sh_ref[1:2, :]                                          # BN2 shift

    # SE block: mean over T (sublane reduce), two tiny FCs, broadcast gate.
    h2_3d = h2.reshape(Bb, T, Cp)
    pooled = jnp.mean(h2_3d, axis=1)                                  # (Bb, Cp)
    z = jnp.maximum(
        jnp.dot(pooled.astype(cdt), fc1_ref[...],
                preferred_element_type=jnp.float32) + sh_ref[3:4, :Crp], 0.0)
    s = jax.nn.sigmoid(
        jnp.dot(z.astype(cdt), fc2_ref[...],
                preferred_element_type=jnp.float32) + sh_ref[4:5, :])  # (Bb, Cp)

    out = jnp.maximum(h2_3d * s[:, None, :] + sc.reshape(Bb, T, Cp), 0.0)
    o_ref[...] = out


# ----------------------------------------------------------------------------
# Parameter preparation (BN folding, tap-weight layout, padding, packing)
# ----------------------------------------------------------------------------
def _fold_bn(gamma, beta, mean, var, eps=1e-5):
    scale = gamma / jnp.sqrt(var + eps)
    return scale, beta - mean * scale


def prepare_params(raw, compute_dtype=jnp.bfloat16):
    """raw params are in PyTorch layouts; returns padded/packed kernel params."""
    w1_pt = raw["w1"]                        # (Cout, Cin, 3)
    w2_pt = raw["w2"]                        # (Cout, Cout, 3)
    Cout, Cin, _ = w1_pt.shape
    Cred = raw["fc1_w"].shape[0]

    Cinp = _round_up(Cin, 128)
    Cp = _round_up(Cout, 128)
    Crp = _round_up(Cred, 128)
    # fc1 bias is packed into lanes [0:Crp] of the (8, Cp) shift array.
    assert Crp <= Cp, "SE reduced channels must not exceed out_channels (packed biases)"

    s1, b1 = _fold_bn(*raw["bn1"])
    s2, b2 = _fold_bn(*raw["bn2"])
    # (Cout, Cin, k) -> per-tap (Cin, Cout), BN scale folded over Cout.
    w1 = jnp.transpose(w1_pt, (2, 1, 0)) * s1[None, None, :]          # (3, Cin, Cout)
    w2 = jnp.transpose(w2_pt, (2, 1, 0)) * s2[None, None, :]          # (3, Cout, Cout)

    if raw["w_sc"] is not None:
        ssc, bsc = _fold_bn(*raw["bns"])
        wsc = raw["w_sc"][:, :, 0].T * ssc[None, :]                   # (Cin, Cout)
    else:                                    # nn.Sequential() identity shortcut
        wsc = jnp.eye(Cout, dtype=jnp.float32)
        bsc = jnp.zeros((Cout,), jnp.float32)

    # Fused conv1 + shortcut weight: (Cinp, 4*Cp).
    w1f = jnp.zeros((Cinp, 4 * Cp), jnp.float32)
    w1f = w1f.at[:Cin, 0 * Cp:0 * Cp + Cout].set(w1[1])   # center tap
    w1f = w1f.at[:Cin, 1 * Cp:1 * Cp + Cout].set(wsc)     # 1x1 shortcut
    w1f = w1f.at[:Cin, 2 * Cp:2 * Cp + Cout].set(w1[0])   # tap k=0 (shift -> t+1)
    w1f = w1f.at[:Cin, 3 * Cp:3 * Cp + Cout].set(w1[2])   # tap k=2 (shift -> t-1)

    # conv2 weight: (Cp, 3*Cp) = [center | k=0 tap | k=2 tap].
    w2f = jnp.zeros((Cp, 3 * Cp), jnp.float32)
    w2f = w2f.at[:Cout, 0 * Cp:0 * Cp + Cout].set(w2[1])
    w2f = w2f.at[:Cout, 1 * Cp:1 * Cp + Cout].set(w2[0])
    w2f = w2f.at[:Cout, 2 * Cp:2 * Cp + Cout].set(w2[2])

    fc1 = jnp.zeros((Cp, Crp), jnp.float32).at[:Cout, :Cred].set(raw["fc1_w"].T)
    fc2 = jnp.zeros((Crp, Cp), jnp.float32).at[:Cred, :Cout].set(raw["fc2_w"].T)

    # One packed (8, Cp) array: BN1/BN2/BNs shifts, fc1 bias, fc2 bias.
    shifts = jnp.zeros((8, Cp), jnp.float32)
    shifts = shifts.at[0, :Cout].set(b1)
    shifts = shifts.at[1, :Cout].set(b2)
    shifts = shifts.at[2, :Cout].set(bsc)
    shifts = shifts.at[3, :Cred].set(raw["fc1_b"])
    shifts = shifts.at[4, :Cout].set(raw["fc2_b"])

    return {
        "w1": w1f.astype(compute_dtype),
        "w2": w2f.astype(compute_dtype),
        "fc1": fc1.astype(compute_dtype),
        "fc2": fc2.astype(compute_dtype),
        "shifts": shifts,
        "cin": int(Cin), "cout": int(Cout), "cinp": int(Cinp), "cp": int(Cp),
    }


# ----------------------------------------------------------------------------
# Wrapper
# ----------------------------------------------------------------------------
def residual_se_block(x_nct, prep, block_b=None,
                      vmem_budget_bytes=18 * 1024 * 1024):
    """x_nct: (B, Cin, T) float32 -> (B, Cout, T) float32."""
    B, Cin, T = x_nct.shape
    assert Cin == prep["cin"]
    Cout, Cinp, Cp = prep["cout"], prep["cinp"], prep["cp"]
    cdt = prep["w1"].dtype

    if block_b is None:
        # ~1024 matmul rows per grid step, but (a) keep >= 2 grid steps when
        # B > 1 so both v7x TensorCores get work, and (b) stay inside a
        # conservative VMEM budget (safe for v7x's 64 MiB part).
        block_b = max(1, 1024 // T)
        if B > 1:
            block_b = min(block_b, -(-B // 2))
        block_b = min(block_b, B)
        # crude per-row estimate: double-buffered in/out blocks + f32 intermediates.
        bytes_per_row = 4 * Cinp + 64 * Cp
        max_rows = max(T, vmem_budget_bytes // bytes_per_row)
        block_b = max(1, min(block_b, max_rows // T))
    Bp = -(-B // block_b) * block_b                            # pad batch to block_b

    # NCT -> NTC, cast to bf16 BEFORE padding (halves wrapper HBM traffic),
    # pad batch to a block multiple and channels to a lane multiple.
    # TODO(synk): the final NTC->NCT transpose could be skipped if the
    # consumer accepts NTC layout.
    x_ntc = jnp.transpose(x_nct, (0, 2, 1)).astype(cdt)               # (B, T, Cin)
    x_ntc = jnp.pad(x_ntc, ((0, Bp - B), (0, 0), (0, Cinp - Cin)))    # (Bp, T, Cinp)

    def launch(weight_pipeline_mode):
        def wspec(arr):
            nd = arr.ndim
            if weight_pipeline_mode is None:
                return pl.BlockSpec(arr.shape, lambda i, nd=nd: (0,) * nd)
            return pl.BlockSpec(arr.shape, lambda i, nd=nd: (0,) * nd,
                                pipeline_mode=weight_pipeline_mode)
        return pl.pallas_call(
            residual_se_kernel,
            out_shape=jax.ShapeDtypeStruct((Bp, T, Cp), jnp.float32),
            grid_spec=pltpu.PrefetchScalarGridSpec(
                num_scalar_prefetch=0,
                grid=(Bp // block_b,),
                in_specs=[
                    pl.BlockSpec((block_b, T, Cinp), lambda i: (i, 0, 0)),
                    wspec(prep["w1"]), wspec(prep["w2"]),
                    wspec(prep["fc1"]), wspec(prep["fc2"]), wspec(prep["shifts"]),
                ],
                out_specs=pl.BlockSpec((block_b, T, Cp), lambda i: (i, 0, 0)),
            ),
            compiler_params=pltpu.CompilerParams(
                dimension_semantics=("parallel",),
                vmem_limit_bytes=64 * 1024 * 1024),
        )(x_ntc, prep["w1"], prep["w2"], prep["fc1"], prep["fc2"], prep["shifts"])

    try:
        # Single-buffer the resident (constant block index) weights: frees
        # VMEM, most valuable inside v7x's 64 MiB.
        out = launch(pl.Buffered(1))
    except Exception:  # pragma: no cover - fall back if pipeline_mode unsupported
        out = launch(None)

    out = out[:B, :, :Cout]                                    # strip batch/lane padding
    return jnp.transpose(out, (0, 2, 1))                       # NTC -> NCT


# ----------------------------------------------------------------------------
# Raw (PyTorch-layout) parameters and a pure-JAX f32 reference
# ----------------------------------------------------------------------------
def make_params(key, in_channels, out_channels, reduction=8):
    c_red = out_channels // reduction
    ks = jax.random.split(key, 10)

    def bn_raw(k, c):
        k1, k2, k3, k4 = jax.random.split(k, 4)
        gamma = 1.0 + 0.1 * jax.random.normal(k1, (c,), jnp.float32)
        beta = 0.1 * jax.random.normal(k2, (c,), jnp.float32)
        mean = 0.1 * jax.random.normal(k3, (c,), jnp.float32)
        var = 1.0 + 0.1 * jnp.abs(jax.random.normal(k4, (c,), jnp.float32))
        return (gamma, beta, mean, var)

    raw = {
        "w1": 0.1 * jax.random.normal(ks[0], (out_channels, in_channels, 3), jnp.float32),
        "bn1": bn_raw(ks[1], out_channels),
        "w2": 0.1 * jax.random.normal(ks[2], (out_channels, out_channels, 3), jnp.float32),
        "bn2": bn_raw(ks[3], out_channels),
        "fc1_w": 0.1 * jax.random.normal(ks[4], (c_red, out_channels), jnp.float32),
        "fc1_b": 0.1 * jax.random.normal(ks[5], (c_red,), jnp.float32),
        "fc2_w": 0.1 * jax.random.normal(ks[6], (out_channels, c_red), jnp.float32),
        "fc2_b": 0.1 * jax.random.normal(ks[7], (out_channels,), jnp.float32),
    }
    if in_channels != out_channels:
        raw["w_sc"] = 0.1 * jax.random.normal(ks[8], (out_channels, in_channels, 1),
                                              jnp.float32)
        raw["bns"] = bn_raw(ks[9], out_channels)
    else:
        raw["w_sc"] = None
        raw["bns"] = None
    return raw


def ref_forward(x_nct, raw, eps=1e-5):
    """Pure-JAX f32 reference of the eval-mode PyTorch forward (NCT layout)."""
    x = x_nct.astype(jnp.float32)
    T = x.shape[2]

    def bn(h, p):
        g, b, m, v = p
        sc = g / jnp.sqrt(v + eps)
        return (h - m[None, :, None]) * sc[None, :, None] + b[None, :, None]

    def conv3(h, w):                                           # w: (Cout, Cin, 3), pad=1
        hp = jnp.pad(h, ((0, 0), (0, 0), (1, 1)))
        return sum(jnp.einsum("bct,oc->bot", hp[:, :, k:k + T], w[:, :, k])
                   for k in range(3))

    h = jnp.maximum(bn(conv3(x, raw["w1"]), raw["bn1"]), 0.0)
    h = bn(conv3(h, raw["w2"]), raw["bn2"])
    y = jnp.mean(h, axis=2)                                    # (B, Cout)
    z = jnp.maximum(y @ raw["fc1_w"].T + raw["fc1_b"], 0.0)
    s = jax.nn.sigmoid(z @ raw["fc2_w"].T + raw["fc2_b"])
    se = h * s[:, :, None]
    if raw["w_sc"] is not None:
        short = bn(jnp.einsum("bct,oc->bot", x, raw["w_sc"][:, :, 0]), raw["bns"])
    else:
        short = x
    return jnp.maximum(se + short, 0.0)


# ----------------------------------------------------------------------------
if __name__ == "__main__":
    key = jax.random.PRNGKey(0)
    kx, kp, kx2, kp2 = jax.random.split(key, 4)

    # Config 1: projection shortcut (Cin != Cout); default blocking -> grid of 2.
    B, C_IN, C_OUT, T = 16, 16, 32, 16
    x = jax.random.normal(kx, (B, C_IN, T), jnp.float32)       # NCT, like PyTorch
    raw = make_params(kp, C_IN, C_OUT, reduction=8)
    prep = prepare_params(raw, compute_dtype=jnp.bfloat16)
    ref = np.asarray(ref_forward(x, raw))

    out = jax.block_until_ready(residual_se_block(x, prep))
    assert out.shape == (B, C_OUT, T)
    np.testing.assert_allclose(np.asarray(out), ref, rtol=5e-2, atol=5e-2)

    # Smaller batch block: exercises grid=3 and batch padding (16 -> 18).
    out2 = jax.block_until_ready(residual_se_block(x, prep, block_b=6))
    np.testing.assert_allclose(np.asarray(out2), ref, rtol=5e-2, atol=5e-2)

    # Config 2: identity shortcut (Cin == Cout).
    x2 = jax.random.normal(kx2, (B, C_OUT, T), jnp.float32)
    raw2 = make_params(kp2, C_OUT, C_OUT, reduction=8)
    prep2 = prepare_params(raw2, compute_dtype=jnp.bfloat16)
    ref2 = np.asarray(ref_forward(x2, raw2))
    out3 = jax.block_until_ready(residual_se_block(x2, prep2))
    np.testing.assert_allclose(np.asarray(out3), ref2, rtol=5e-2, atol=5e-2)

    print("KERNEL_OK")
</pallas_src>

<mosaic_0001>
module attributes {stable_mosaic.version = 11 : i64} {
  func.func @residual_se_kernel(%arg0: i32, %arg1: memref<8x16x128xbf16, #tpu.memory_space<vmem>>, %arg2: memref<128x512xbf16, #tpu.memory_space<vmem>>, %arg3: memref<128x384xbf16, #tpu.memory_space<vmem>>, %arg4: memref<128x128xbf16, #tpu.memory_space<vmem>>, %arg5: memref<128x128xbf16, #tpu.memory_space<vmem>>, %arg6: memref<8x128xf32, #tpu.memory_space<vmem>>, %arg7: memref<8x16x128xf32, #tpu.memory_space<vmem>>) attributes {dimension_semantics = [#tpu.dimension_semantics<parallel>], iteration_bounds = array<i64: 2>, scalar_prefetch = 0 : i64, scratch_operands = 0 : i64, tpu.core_type = #tpu.core_type<tc>, window_params = [{transform_indices = @transform_0, window_bounds = array<i64: 8, 16, 128>}, {pipeline_mode = #tpu.pipeline_mode<synchronous>, transform_indices = @transform_1, window_bounds = array<i64: 128, 512>}, {pipeline_mode = #tpu.pipeline_mode<synchronous>, transform_indices = @transform_2, window_bounds = array<i64: 128, 384>}, {pipeline_mode = #tpu.pipeline_mode<synchronous>, transform_indices = @transform_3, window_bounds = array<i64: 128, 128>}, {pipeline_mode = #tpu.pipeline_mode<synchronous>, transform_indices = @transform_4, window_bounds = array<i64: 128, 128>}, {pipeline_mode = #tpu.pipeline_mode<synchronous>, transform_indices = @transform_5, window_bounds = array<i64: 8, 128>}, {transform_indices = @transform_6, window_bounds = array<i64: 8, 16, 128>}]} {
    %c0 = arith.constant 0 : index
    %c0_0 = arith.constant 0 : index
    %c0_1 = arith.constant 0 : index
    %0 = vector.load %arg1[%c0, %c0_0, %c0_1] : memref<8x16x128xbf16, #tpu.memory_space<vmem>>, vector<8x16x128xbf16>
    %1 = vector.shape_cast %0 : vector<8x16x128xbf16> to vector<128x128xbf16>
    %2 = tpu.iota {dimensions = array<i32: 1>} : vector<8x16x1xi32>
    %3 = vector.shape_cast %2 : vector<8x16x1xi32> to vector<128x1xi32>
    %c0_i32 = arith.constant 0 : i32
    %4 = vector.broadcast %c0_i32 : i32 to vector<128x1xi32>
    %5 = arith.cmpi ne, %3, %4 : vector<128x1xi32>
    %6 = arith.extui %5 : vector<128x1xi1> to vector<128x1xi32>
    %7 = arith.sitofp %6 : vector<128x1xi32> to vector<128x1xf32>
    %c15_i32 = arith.constant 15 : i32
    %8 = vector.broadcast %c15_i32 : i32 to vector<128x1xi32>
    %9 = arith.cmpi ne, %3, %8 : vector<128x1xi32>
    %10 = arith.extui %9 : vector<128x1xi1> to vector<128x1xi32>
    %11 = arith.sitofp %10 : vector<128x1xi32> to vector<128x1xf32>
    %c0_2 = arith.constant 0 : index
    %c0_3 = arith.constant 0 : index
    %12 = vector.load %arg2[%c0_2, %c0_3] : memref<128x512xbf16, #tpu.memory_space<vmem>>, vector<128x512xbf16>
    %cst = arith.constant dense<0.000000e+00> : vector<128x512xf32>
    %13 = tpu.matmul %1, %12, %cst {dimension_numbers = #tpu.dot_dimension_numbers<[1], [0], [0], [1], [0, 0, 1, 1], [], []>} : vector<128x128xbf16>, vector<128x512xbf16>, vector<128x512xf32> -> vector<128x512xf32>
    %14 = vector.extract_strided_slice %13 {offsets = [0, 128], sizes = [128, 128], strides = [1, 1]} : vector<128x512xf32> to vector<128x128xf32>
    %c2 = arith.constant 2 : index
    %c0_4 = arith.constant 0 : index
    %15 = vector.load %arg6[%c2, %c0_4] : memref<8x128xf32, #tpu.memory_space<vmem>>, vector<1x128xf32>
    %16 = vector.broadcast %15 : vector<1x128xf32> to vector<128x128xf32>
    %17 = arith.addf %14, %16 : vector<128x128xf32>
    %18 = vector.extract_strided_slice %13 {offsets = [0, 0], sizes = [128, 128], strides = [1, 1]} : vector<128x512xf32> to vector<128x128xf32>
    %19 = vector.extract_strided_slice %13 {offsets = [0, 256], sizes = [128, 128], strides = [1, 1]} : vector<128x512xf32> to vector<128x128xf32>
    %c1_i32 = arith.constant 1 : i32
    %20 = tpu.dynamic_rotate %19 by %c1_i32 dim 0 : vector<128x128xf32>, i32 -> vector<128x128xf32>
    %21 = vector.broadcast %7 : vector<128x1xf32> to vector<128x128xf32>
    %22 = arith.mulf %20, %21 : vector<128x128xf32>
    %23 = arith.addf %18, %22 : vector<128x128xf32>
    %24 = vector.extract_strided_slice %13 {offsets = [0, 384], sizes = [128, 128], strides = [1, 1]} : vector<128x512xf32> to vector<128x128xf32>
    %c127_i32 = arith.constant 127 : i32
    %25 = tpu.dynamic_rotate %24 by %c127_i32 dim 0 : vector<128x128xf32>, i32 -> vector<128x128xf32>
    %26 = vector.broadcast %11 : vector<128x1xf32> to vector<128x128xf32>
    %27 = arith.mulf %25, %26 : vector<128x128xf32>
    %28 = arith.addf %23, %27 : vector<128x128xf32>
    %c0_5 = arith.constant 0 : index
    %c0_6 = arith.constant 0 : index
    %29 = vector.load %arg6[%c0_5, %c0_6] : memref<8x128xf32, #tpu.memory_space<vmem>>, vector<1x128xf32>
    %30 = vector.broadcast %29 : vector<1x128xf32> to vector<128x128xf32>
    %31 = arith.addf %28, %30 : vector<128x128xf32>
    %cst_7 = arith.constant 0.000000e+00 : f32
    %32 = vector.broadcast %cst_7 : f32 to vector<128x128xf32>
    %33 = arith.maximumf %31, %32 : vector<128x128xf32>
    %34 = arith.truncf %33 : vector<128x128xf32> to vector<128x128xbf16>
    %c0_8 = arith.constant 0 : index
    %c0_9 = arith.constant 0 : index
    %35 = vector.load %arg3[%c0_8, %c0_9] : memref<128x384xbf16, #tpu.memory_space<vmem>>, vector<128x384xbf16>
    %cst_10 = arith.constant dense<0.000000e+00> : vector<128x384xf32>
    %36 = tpu.matmul %34, %35, %cst_10 {dimension_numbers = #tpu.dot_dimension_numbers<[1], [0], [0], [1], [0, 0, 1, 1], [], []>} : vector<128x128xbf16>, vector<128x384xbf16>, vector<128x384xf32> -> vector<128x384xf32>
    %37 = vector.extract_strided_slice %36 {offsets = [0, 0], sizes = [128, 128], strides = [1, 1]} : vector<128x384xf32> to vector<128x128xf32>
    %38 = vector.extract_strided_slice %36 {offsets = [0, 128], sizes = [128, 128], strides = [1, 1]} : vector<128x384xf32> to vector<128x128xf32>
    %c1_i32_11 = arith.constant 1 : i32
    %39 = tpu.dynamic_rotate %38 by %c1_i32_11 dim 0 : vector<128x128xf32>, i32 -> vector<128x128xf32>
    %40 = vector.broadcast %7 : vector<128x1xf32> to vector<128x128xf32>
    %41 = arith.mulf %39, %40 : vector<128x128xf32>
    %42 = arith.addf %37, %41 : vector<128x128xf32>
    %43 = vector.extract_strided_slice %36 {offsets = [0, 256], sizes = [128, 128], strides = [1, 1]} : vector<128x384xf32> to vector<128x128xf32>
    %c127_i32_12 = arith.constant 127 : i32
    %44 = tpu.dynamic_rotate %43 by %c127_i32_12 dim 0 : vector<128x128xf32>, i32 -> vector<128x128xf32>
    %45 = vector.broadcast %11 : vector<128x1xf32> to vector<128x128xf32>
    %46 = arith.mulf %44, %45 : vector<128x128xf32>
    %47 = arith.addf %42, %46 : vector<128x128xf32>
    %c1 = arith.constant 1 : index
    %c0_13 = arith.constant 0 : index
    %48 = vector.load %arg6[%c1, %c0_13] : memref<8x128xf32, #tpu.memory_space<vmem>>, vector<1x128xf32>
    %49 = vector.broadcast %48 : vector<1x128xf32> to vector<128x128xf32>
    %50 = arith.addf %47, %49 : vector<128x128xf32>
    %51 = vector.shape_cast %50 : vector<128x128xf32> to vector<8x16x128xf32>
    %cst_14 = arith.constant dense<0.000000e+00> : vector<8x128xf32>
    %52 = vector.multi_reduction <add>, %51, %cst_14 [1] : vector<8x16x128xf32> to vector<8x128xf32>
    %cst_15 = arith.constant 1.600000e+01 : f32
    %53 = vector.broadcast %cst_15 : f32 to vector<8x128xf32>
    %54 = arith.divf %52, %53 : vector<8x128xf32>
    %55 = arith.truncf %54 : vector<8x128xf32> to vector<8x128xbf16>
    %c0_16 = arith.constant 0 : index
    %c0_17 = arith.constant 0 : index
    %56 = vector.load %arg4[%c0_16, %c0_17] : memref<128x128xbf16, #tpu.memory_space<vmem>>, vector<128x128xbf16>
    %cst_18 = arith.constant dense<0.000000e+00> : vector<8x128xf32>
    %57 = tpu.matmul %55, %56, %cst_18 {dimension_numbers = #tpu.dot_dimension_numbers<[1], [0], [0], [1], [0, 0, 1, 1], [], []>} : vector<8x128xbf16>, vector<128x128xbf16>, vector<8x128xf32> -> vector<8x128xf32>
    %c3 = arith.constant 3 : index
    %c0_19 = arith.constant 0 : index
    %58 = vector.load %arg6[%c3, %c0_19] : memref<8x128xf32, #tpu.memory_space<vmem>>, vector<1x128xf32>
    %59 = vector.broadcast %58 : vector<1x128xf32> to vector<8x128xf32>
    %60 = arith.addf %57, %59 : vector<8x128xf32>
    %cst_20 = arith.constant 0.000000e+00 : f32
    %61 = vector.broadcast %cst_20 : f32 to vector<8x128xf32>
    %62 = arith.maximumf %60, %61 : vector<8x128xf32>
    %63 = arith.truncf %62 : vector<8x128xf32> to vector<8x128xbf16>
    %c0_21 = arith.constant 0 : index
    %c0_22 = arith.constant 0 : index
    %64 = vector.load %arg5[%c0_21, %c0_22] : memref<128x128xbf16, #tpu.memory_space<vmem>>, vector<128x128xbf16>
    %cst_23 = arith.constant dense<0.000000e+00> : vector<8x128xf32>
    %65 = tpu.matmul %63, %64, %cst_23 {dimension_numbers = #tpu.dot_dimension_numbers<[1], [0], [0], [1], [0, 0, 1, 1], [], []>} : vector<8x128xbf16>, vector<128x128xbf16>, vector<8x128xf32> -> vector<8x128xf32>
    %c4 = arith.constant 4 : index
    %c0_24 = arith.constant 0 : index
    %66 = vector.load %arg6[%c4, %c0_24] : memref<8x128xf32, #tpu.memory_space<vmem>>, vector<1x128xf32>
    %67 = vector.broadcast %66 : vector<1x128xf32> to vector<8x128xf32>
    %68 = arith.addf %65, %67 : vector<8x128xf32>
    %69 = arith.negf %68 : vector<8x128xf32>
    %70 = math.exp %69 : vector<8x128xf32>
    %cst_25 = arith.constant 1.000000e+00 : f32
    %71 = vector.broadcast %cst_25 : f32 to vector<8x128xf32>
    %72 = arith.addf %71, %70 : vector<8x128xf32>
    %73 = arith.divf %71, %72 : vector<8x128xf32>
    %74 = vector.shape_cast %73 : vector<8x128xf32> to vector<8x1x128xf32>
    %75 = vector.broadcast %74 : vector<8x1x128xf32> to vector<8x16x128xf32>
    %76 = arith.mulf %51, %75 : vector<8x16x128xf32>
    %77 = vector.shape_cast %17 : vector<128x128xf32> to vector<8x16x128xf32>
    %78 = arith.addf %76, %77 : vector<8x16x128xf32>
    %cst_26 = arith.constant 0.000000e+00 : f32
    %79 = vector.broadcast %cst_26 : f32 to vector<8x16x128xf32>
    %80 = arith.maximumf %78, %79 : vector<8x16x128xf32>
    %c0_27 = arith.constant 0 : index
    %c0_28 = arith.constant 0 : index
    %c0_29 = arith.constant 0 : index
    %81 = vector.load %arg7[%c0_27, %c0_28, %c0_29] : memref<8x16x128xf32, #tpu.memory_space<vmem>>, vector<8x16x128xf32>
    tpu.vector_store %arg7[%c0_27, %c0_28, %c0_29], %80 {strides = array<i32>} : memref<8x16x128xf32, #tpu.memory_space<vmem>>, vector<8x16x128xf32>,
    return
  }
  func.func @transform_0(%arg0: i32) -> (i32, i32, i32) {
    %c0_i32 = arith.constant 0 : i32
    %c0_i32_0 = arith.constant 0 : i32
    %c0_i32_1 = arith.constant 0 : i32
    return %arg0, %c0_i32, %c0_i32_0 : i32, i32, i32
  }
  func.func @transform_1(%arg0: i32) -> (i32, i32) {
    %c0_i32 = arith.constant 0 : i32
    %c0_i32_0 = arith.constant 0 : i32
    %c0_i32_1 = arith.constant 0 : i32
    return %c0_i32, %c0_i32_0 : i32, i32
  }
  func.func @transform_2(%arg0: i32) -> (i32, i32) {
    %c0_i32 = arith.constant 0 : i32
    %c0_i32_0 = arith.constant 0 : i32
    %c0_i32_1 = arith.constant 0 : i32
    return %c0_i32, %c0_i32_0 : i32, i32
  }
  func.func @transform_3(%arg0: i32) -> (i32, i32) {
    %c0_i32 = arith.constant 0 : i32
    %c0_i32_0 = arith.constant 0 : i32
    %c0_i32_1 = arith.constant 0 : i32
    return %c0_i32, %c0_i32_0 : i32, i32
  }
  func.func @transform_4(%arg0: i32) -> (i32, i32) {
    %c0_i32 = arith.constant 0 : i32
    %c0_i32_0 = arith.constant 0 : i32
    %c0_i32_1 = arith.constant 0 : i32
    return %c0_i32, %c0_i32_0 : i32, i32
  }
  func.func @transform_5(%arg0: i32) -> (i32, i32) {
    %c0_i32 = arith.constant 0 : i32
    %c0_i32_0 = arith.constant 0 : i32
    %c0_i32_1 = arith.constant 0 : i32
    return %c0_i32, %c0_i32_0 : i32, i32
  }
  func.func @transform_6(%arg0: i32) -> (i32, i32, i32) {
    %c0_i32 = arith.constant 0 : i32
    %c0_i32_0 = arith.constant 0 : i32
    %c0_i32_1 = arith.constant 0 : i32
    return %arg0, %c0_i32, %c0_i32_0 : i32, i32, i32
  }
}

module attributes {stable_mosaic.version = 11 : i64} {
  func.func @residual_se_kernel(%arg0: i32, %arg1: memref<8x16x128xbf16, #tpu.memory_space<vmem>>, %arg2: memref<128x512xbf16, #tpu.memory_space<vmem>>, %arg3: memref<128x384xbf16, #tpu.memory_space<vmem>>, %arg4: memref<128x128xbf16, #tpu.memory_space<vmem>>, %arg5: memref<128x128xbf16, #tpu.memory_space<vmem>>, %arg6: memref<8x128xf32, #tpu.memory_space<vmem>>, %arg7: memref<8x16x128xf32, #tpu.memory_space<vmem>>) attributes {dimension_semantics = [#tpu.dimension_semantics<parallel>], iteration_bounds = array<i64: 2>, scalar_prefetch = 0 : i64, scratch_operands = 0 : i64, tpu.core_type = #tpu.core_type<tc>, window_params = [{transform_indices = @transform_0, window_bounds = array<i64: 8, 16, 128>}, {pipeline_mode = #tpu.pipeline_mode<synchronous>, transform_indices = @transform_1, window_bounds = array<i64: 128, 512>}, {pipeline_mode = #tpu.pipeline_mode<synchronous>, transform_indices = @transform_2, window_bounds = array<i64: 128, 384>}, {pipeline_mode = #tpu.pipeline_mode<synchronous>, transform_indices = @transform_3, window_bounds = array<i64: 128, 128>}, {pipeline_mode = #tpu.pipeline_mode<synchronous>, transform_indices = @transform_4, window_bounds = array<i64: 128, 128>}, {pipeline_mode = #tpu.pipeline_mode<synchronous>, transform_indices = @transform_5, window_bounds = array<i64: 8, 128>}, {transform_indices = @transform_6, window_bounds = array<i64: 8, 16, 128>}]} {
    %c0 = arith.constant 0 : index
    %c0_0 = arith.constant 0 : index
    %c0_1 = arith.constant 0 : index
    %0 = vector.load %arg1[%c0, %c0_0, %c0_1] : memref<8x16x128xbf16, #tpu.memory_space<vmem>>, vector<8x16x128xbf16>
    %1 = vector.shape_cast %0 : vector<8x16x128xbf16> to vector<128x128xbf16>
    %2 = tpu.iota {dimensions = array<i32: 1>} : vector<8x16x1xi32>
    %3 = vector.shape_cast %2 : vector<8x16x1xi32> to vector<128x1xi32>
    %c0_i32 = arith.constant 0 : i32
    %4 = vector.broadcast %c0_i32 : i32 to vector<128x1xi32>
    %5 = arith.cmpi ne, %3, %4 : vector<128x1xi32>
    %6 = arith.extui %5 : vector<128x1xi1> to vector<128x1xi32>
    %7 = arith.sitofp %6 : vector<128x1xi32> to vector<128x1xf32>
    %c15_i32 = arith.constant 15 : i32
    %8 = vector.broadcast %c15_i32 : i32 to vector<128x1xi32>
    %9 = arith.cmpi ne, %3, %8 : vector<128x1xi32>
    %10 = arith.extui %9 : vector<128x1xi1> to vector<128x1xi32>
    %11 = arith.sitofp %10 : vector<128x1xi32> to vector<128x1xf32>
    %c0_2 = arith.constant 0 : index
    %c0_3 = arith.constant 0 : index
    %12 = vector.load %arg2[%c0_2, %c0_3] : memref<128x512xbf16, #tpu.memory_space<vmem>>, vector<128x512xbf16>
    %cst = arith.constant dense<0.000000e+00> : vector<128x512xf32>
    %13 = tpu.matmul %1, %12, %cst {dimension_numbers = #tpu.dot_dimension_numbers<[1], [0], [0], [1], [0, 0, 1, 1], [], []>} : vector<128x128xbf16>, vector<128x512xbf16>, vector<128x512xf32> -> vector<128x512xf32>
    %14 = vector.extract_strided_slice %13 {offsets = [0, 128], sizes = [128, 128], strides = [1, 1]} : vector<128x512xf32> to vector<128x128xf32>
    %c2 = arith.constant 2 : index
    %c0_4 = arith.constant 0 : index
    %15 = vector.load %arg6[%c2, %c0_4] : memref<8x128xf32, #tpu.memory_space<vmem>>, vector<1x128xf32>
    %16 = vector.broadcast %15 : vector<1x128xf32> to vector<128x128xf32>
    %17 = arith.addf %14, %16 : vector<128x128xf32>
    %18 = vector.extract_strided_slice %13 {offsets = [0, 0], sizes = [128, 128], strides = [1, 1]} : vector<128x512xf32> to vector<128x128xf32>
    %19 = vector.extract_strided_slice %13 {offsets = [0, 256], sizes = [128, 128], strides = [1, 1]} : vector<128x512xf32> to vector<128x128xf32>
    %c1_i32 = arith.constant 1 : i32
    %20 = tpu.dynamic_rotate %19 by %c1_i32 dim 0 : vector<128x128xf32>, i32 -> vector<128x128xf32>
    %21 = vector.broadcast %7 : vector<128x1xf32> to vector<128x128xf32>
    %22 = arith.mulf %20, %21 : vector<128x128xf32>
    %23 = arith.addf %18, %22 : vector<128x128xf32>
    %24 = vector.extract_strided_slice %13 {offsets = [0, 384], sizes = [128, 128], strides = [1, 1]} : vector<128x512xf32> to vector<128x128xf32>
    %c127_i32 = arith.constant 127 : i32
    %25 = tpu.dynamic_rotate %24 by %c127_i32 dim 0 : vector<128x128xf32>, i32 -> vector<128x128xf32>
    %26 = vector.broadcast %11 : vector<128x1xf32> to vector<128x128xf32>
    %27 = arith.mulf %25, %26 : vector<128x128xf32>
    %28 = arith.addf %23, %27 : vector<128x128xf32>
    %c0_5 = arith.constant 0 : index
    %c0_6 = arith.constant 0 : index
    %29 = vector.load %arg6[%c0_5, %c0_6] : memref<8x128xf32, #tpu.memory_space<vmem>>, vector<1x128xf32>
    %30 = vector.broadcast %29 : vector<1x128xf32> to vector<128x128xf32>
    %31 = arith.addf %28, %30 : vector<128x128xf32>
    %cst_7 = arith.constant 0.000000e+00 : f32
    %32 = vector.broadcast %cst_7 : f32 to vector<128x128xf32>
    %33 = arith.maximumf %31, %32 : vector<128x128xf32>
    %34 = arith.truncf %33 : vector<128x128xf32> to vector<128x128xbf16>
    %c0_8 = arith.constant 0 : index
    %c0_9 = arith.constant 0 : index
    %35 = vector.load %arg3[%c0_8, %c0_9] : memref<128x384xbf16, #tpu.memory_space<vmem>>, vector<128x384xbf16>
    %cst_10 = arith.constant dense<0.000000e+00> : vector<128x384xf32>
    %36 = tpu.matmul %34, %35, %cst_10 {dimension_numbers = #tpu.dot_dimension_numbers<[1], [0], [0], [1], [0, 0, 1, 1], [], []>} : vector<128x128xbf16>, vector<128x384xbf16>, vector<128x384xf32> -> vector<128x384xf32>
    %37 = vector.extract_strided_slice %36 {offsets = [0, 0], sizes = [128, 128], strides = [1, 1]} : vector<128x384xf32> to vector<128x128xf32>
    %38 = vector.extract_strided_slice %36 {offsets = [0, 128], sizes = [128, 128], strides = [1, 1]} : vector<128x384xf32> to vector<128x128xf32>
    %c1_i32_11 = arith.constant 1 : i32
    %39 = tpu.dynamic_rotate %38 by %c1_i32_11 dim 0 : vector<128x128xf32>, i32 -> vector<128x128xf32>
    %40 = vector.broadcast %7 : vector<128x1xf32> to vector<128x128xf32>
    %41 = arith.mulf %39, %40 : vector<128x128xf32>
    %42 = arith.addf %37, %41 : vector<128x128xf32>
    %43 = vector.extract_strided_slice %36 {offsets = [0, 256], sizes = [128, 128], strides = [1, 1]} : vector<128x384xf32> to vector<128x128xf32>
    %c127_i32_12 = arith.constant 127 : i32
    %44 = tpu.dynamic_rotate %43 by %c127_i32_12 dim 0 : vector<128x128xf32>, i32 -> vector<128x128xf32>
    %45 = vector.broadcast %11 : vector<128x1xf32> to vector<128x128xf32>
    %46 = arith.mulf %44, %45 : vector<128x128xf32>
    %47 = arith.addf %42, %46 : vector<128x128xf32>
    %c1 = arith.constant 1 : index
    %c0_13 = arith.constant 0 : index
    %48 = vector.load %arg6[%c1, %c0_13] : memref<8x128xf32, #tpu.memory_space<vmem>>, vector<1x128xf32>
    %49 = vector.broadcast %48 : vector<1x128xf32> to vector<128x128xf32>
    %50 = arith.addf %47, %49 : vector<128x128xf32>
    %51 = vector.shape_cast %50 : vector<128x128xf32> to vector<8x16x128xf32>
    %cst_14 = arith.constant dense<0.000000e+00> : vector<8x128xf32>
    %52 = vector.multi_reduction <add>, %51, %cst_14 [1] : vector<8x16x128xf32> to vector<8x128xf32>
    %cst_15 = arith.constant 1.600000e+01 : f32
    %53 = vector.broadcast %cst_15 : f32 to vector<8x128xf32>
    %54 = arith.divf %52, %53 : vector<8x128xf32>
    %55 = arith.truncf %54 : vector<8x128xf32> to vector<8x128xbf16>
    %c0_16 = arith.constant 0 : index
    %c0_17 = arith.constant 0 : index
    %56 = vector.load %arg4[%c0_16, %c0_17] : memref<128x128xbf16, #tpu.memory_space<vmem>>, vector<128x128xbf16>
    %cst_18 = arith.constant dense<0.000000e+00> : vector<8x128xf32>
    %57 = tpu.matmul %55, %56, %cst_18 {dimension_numbers = #tpu.dot_dimension_numbers<[1], [0], [0], [1], [0, 0, 1, 1], [], []>} : vector<8x128xbf16>, vector<128x128xbf16>, vector<8x128xf32> -> vector<8x128xf32>
    %c3 = arith.constant 3 : index
    %c0_19 = arith.constant 0 : index
    %58 = vector.load %arg6[%c3, %c0_19] : memref<8x128xf32, #tpu.memory_space<vmem>>, vector<1x128xf32>
    %59 = vector.broadcast %58 : vector<1x128xf32> to vector<8x128xf32>
    %60 = arith.addf %57, %59 : vector<8x128xf32>
    %cst_20 = arith.constant 0.000000e+00 : f32
    %61 = vector.broadcast %cst_20 : f32 to vector<8x128xf32>
    %62 = arith.maximumf %60, %61 : vector<8x128xf32>
    %63 = arith.truncf %62 : vector<8x128xf32> to vector<8x128xbf16>
    %c0_21 = arith.constant 0 : index
    %c0_22 = arith.constant 0 : index
    %64 = vector.load %arg5[%c0_21, %c0_22] : memref<128x128xbf16, #tpu.memory_space<vmem>>, vector<128x128xbf16>
    %cst_23 = arith.constant dense<0.000000e+00> : vector<8x128xf32>
    %65 = tpu.matmul %63, %64, %cst_23 {dimension_numbers = #tpu.dot_dimension_numbers<[1], [0], [0], [1], [0, 0, 1, 1], [], []>} : vector<8x128xbf16>, vector<128x128xbf16>, vector<8x128xf32> -> vector<8x128xf32>
    %c4 = arith.constant 4 : index
    %c0_24 = arith.constant 0 : index
    %66 = vector.load %arg6[%c4, %c0_24] : memref<8x128xf32, #tpu.memory_space<vmem>>, vector<1x128xf32>
    %67 = vector.broadcast %66 : vector<1x128xf32> to vector<8x128xf32>
    %68 = arith.addf %65, %67 : vector<8x128xf32>
    %69 = arith.negf %68 : vector<8x128xf32>
    %70 = math.exp %69 : vector<8x128xf32>
    %cst_25 = arith.constant 1.000000e+00 : f32
    %71 = vector.broadcast %cst_25 : f32 to vector<8x128xf32>
    %72 = arith.addf %71, %70 : vector<8x128xf32>
    %73 = arith.divf %71, %72 : vector<8x128xf32>
    %74 = vector.shape_cast %73 : vector<8x128xf32> to vector<8x1x128xf32>
    %75 = vector.broadcast %74 : vector<8x1x128xf32> to vector<8x16x128xf32>
    %76 = arith.mulf %51, %75 : vector<8x16x128xf32>
    %77 = vector.shape_cast %17 : vector<128x128xf32> to vector<8x16x128xf32>
    %78 = arith.addf %76, %77 : vector<8x16x128xf32>
    %cst_26 = arith.constant 0.000000e+00 : f32
    %79 = vector.broadcast %cst_26 : f32 to vector<8x16x128xf32>
    %80 = arith.maximumf %78, %79 : vector<8x16x128xf32>
    %c0_27 = arith.constant 0 : index
    %c0_28 = arith.constant 0 : index
    %c0_29 = arith.constant 0 : index
    %81 = vector.load %arg7[%c0_27, %c0_28, %c0_29] : memref<8x16x128xf32, #tpu.memory_space<vmem>>, vector<8x16x128xf32>
    tpu.vector_store %arg7[%c0_27, %c0_28, %c0_29], %80 {strides = array<i32>} : memref<8x16x128xf32, #tpu.memory_space<vmem>>, vector<8x16x128xf32>,
    return
  }
  func.func @transform_0(%arg0: i32) -> (i32, i32, i32) {
    %c0_i32 = arith.constant 0 : i32
    %c0_i32_0 = arith.constant 0 : i32
    %c0_i32_1 = arith.constant 0 : i32
    return %arg0, %c0_i32, %c0_i32_0 : i32, i32, i32
  }
  func.func @transform_1(%arg0: i32) -> (i32, i32) {
    %c0_i32 = arith.constant 0 : i32
    %c0_i32_0 = arith.constant 0 : i32
    %c0_i32_1 = arith.constant 0 : i32
    return %c0_i32, %c0_i32_0 : i32, i32
  }
  func.func @transform_2(%arg0: i32) -> (i32, i32) {
    %c0_i32 = arith.constant 0 : i32
    %c0_i32_0 = arith.constant 0 : i32
    %c0_i32_1 = arith.constant 0 : i32
    return %c0_i32, %c0_i32_0 : i32, i32
  }
  func.func @transform_3(%arg0: i32) -> (i32, i32) {
    %c0_i32 = arith.constant 0 : i32
    %c0_i32_0 = arith.constant 0 : i32
    %c0_i32_1 = arith.constant 0 : i32
    return %c0_i32, %c0_i32_0 : i32, i32
  }
  func.func @transform_4(%arg0: i32) -> (i32, i32) {
    %c0_i32 = arith.constant 0 : i32
    %c0_i32_0 = arith.constant 0 : i32
    %c0_i32_1 = arith.constant 0 : i32
    return %c0_i32, %c0_i32_0 : i32, i32
  }
  func.func @transform_5(%arg0: i32) -> (i32, i32) {
    %c0_i32 = arith.constant 0 : i32
    %c0_i32_0 = arith.constant 0 : i32
    %c0_i32_1 = arith.constant 0 : i32
    return %c0_i32, %c0_i32_0 : i32, i32
  }
  func.func @transform_6(%arg0: i32) -> (i32, i32, i32) {
    %c0_i32 = arith.constant 0 : i32
    %c0_i32_0 = arith.constant 0 : i32
    %c0_i32_1 = arith.constant 0 : i32
    return %arg0, %c0_i32, %c0_i32_0 : i32, i32, i32
  }
}

</mosaic_0001>

<llo_original>
// kernel: tpu_custom_call.1
$region0: #{tpu_custom_call.1}
  #allocation0 [shape = 'u32[]', space=smem, size = 0x4, offset = 0x4, fixed_abs, tag = 'smem constant byte address 0x4 - core index']
  #allocation1 [shape = 'u32[72,128]{1,0:T(1,128)}', space=vmem, size = 0x9000, scoped, tag = 'internal scratch']
  %s0 = inlined_call_operand.hbm [shape: bf16[16,16,128], index: 0, kind: input, shape index: {}]
  %s1 = inlined_call_operand.hbm [shape: bf16[128,512], index: 1, kind: input, shape index: {}]
  %s2 = inlined_call_operand.hbm [shape: bf16[128,384], index: 2, kind: input, shape index: {}]
  %s3 = inlined_call_operand.hbm [shape: bf16[128,128], index: 3, kind: input, shape index: {}]
  %s4 = inlined_call_operand.hbm [shape: bf16[128,128], index: 4, kind: input, shape index: {}]
  %s5 = inlined_call_operand.hbm [shape: f32[8,128], index: 5, kind: input, shape index: {}]
  %s6 = inlined_call_operand.hbm [shape: f32[16,16,128], index: 6, kind: output, shape index: {}]
  %s7 = sld [smem:[#allocation0]]
  $region81: #{tpu_custom_call.1} parent=0
    _
  %s9 = ssub.s32 1, %s7
  %s10 = scalar_select 0, %s9, %s7
  $region1: #{tpu_custom_call.1} parent=0
    #allocation2 [shape = 'u8[65536]{0}', space=vmem, size = 0x10000, scoped, tag = 'input window, operand 0']
    #allocation3 [shape = 's32[2]{0}', space=sflag, size = 0x8, scoped, tag = 'scoped memory for tpu_custom_call.1']
    #allocation4 [shape = 's32[2]{0}', space=sflag, size = 0x8, scoped, tag = 'scoped memory for tpu_custom_call.1']
    #allocation5 [shape = 'u8[131072]{0}', space=vmem, size = 0x20000, scoped, tag = 'input window, operand 1, single buffered']
    #allocation6 [shape = 's32[1]{0}', space=sflag, size = 0x4, scoped, tag = 'scoped memory for tpu_custom_call.1']
    #allocation7 [shape = 'u8[98304]{0}', space=vmem, size = 0x18000, scoped, tag = 'input window, operand 2, single buffered']
    #allocation8 [shape = 'u8[32768]{0}', space=vmem, size = 0x8000, scoped, tag = 'input window, operand 3, single buffered']
    #allocation9 [shape = 's32[1]{0}', space=sflag, size = 0x4, scoped, tag = 'scoped memory for tpu_custom_call.1']
    #allocation10 [shape = 'u8[32768]{0}', space=vmem, size = 0x8000, scoped, tag = 'input window, operand 4, single buffered']
    #allocation11 [shape = 'u8[4096]{0}', space=vmem, size = 0x1000, scoped, tag = 'input window, operand 5, single buffered']
    #allocation12 [shape = 's32[1]{0}', space=sflag, size = 0x4, scoped, tag = 'scoped memory for tpu_custom_call.1']
    #allocation13 [shape = 'u8[131072]{0}', space=vmem, size = 0x20000, scoped, tag = 'output window, operand 0']
    %11 = vsyncpa [#allocation3], 0
    %s12 = scalar_lea.sflag [#allocation3], 1
    %13 = vsyncpa %s12, 0
    %14 = vsyncpa [#allocation6], 0
    %15 = vsyncpa [#allocation9], 0
    %16 = vsyncpa [#allocation12], 0
    %17 = vsyncpa [#allocation4], 0
    %s18 = scalar_lea.sflag [#allocation4], 1
    %19 = vsyncpa %s18, 0
    loop: start=0, step=1, limit=4
    $region2: #{tpu_custom_call.1} parent=1 // loop_pre_header
      _
    $region3: #{tpu_custom_call.1} parent=1 // loop_header
      %s21 = sphi 0, %s25
      %p22 = scmp.ge.s32.totalorder %s21, 4
      %s31 = sphi 0, %s33
      %s34 = sphi 0, %s31
      %s35 = sphi 0, %s34
      %s51 = sphi 0, %s35
      %s55 = sphi 0, %s55
      %s57 = sphi 0, %s55
      %s58 = sphi 0, %s57
      %s72 = sphi 0, %s58
      %s76 = sphi 0, %s76
      %s78 = sphi 0, %s76
      %s79 = sphi 0, %s78
      %s93 = sphi 0, %s79
      %s97 = sphi 0, %s97
      %s99 = sphi 0, %s97
      %s100 = sphi 0, %s99
      %s114 = sphi 0, %s100
      %s118 = sphi 0, %s118
      %s120 = sphi 0, %s118
      %s121 = sphi 0, %s120
      %s135 = sphi 0, %s121
      %s139 = sphi 0, %s139
      %s141 = sphi 0, %s139
      %s142 = sphi 0, %s141
      %s156 = sphi 0, %s142
      %s162 = sphi 0, %s164
      %s165 = sphi 0, %s162
      %s166 = sphi 0, %s165
      %s182 = sphi 0, %s166
    $region4: #{tpu_custom_call.1} parent=1 // loop_header_branch
      %24 = sbr.rel (%p22) target = $region8
    $region5: #{tpu_custom_call.1} parent=1 // loop_body
      %s26 = ssub.s32 %s21, 1
      %s27 = ssub.s32 %s21, 2
      %s28 = sadd.s32 %s21, 1
      %s29 = ssub.s32 %s21, %s28
      %p30 = scmp.eq.s32.totalorder %s29, 0
      %s32 = sadd.s32 %s31, 1
      %s33 = scalar_select %p30, %s31, %s32
      %p36 = pneg %p30
      %p37 = scmp.eq.s32.totalorder %s21, 1
      %p38 = por %p36, %p37
      %p39 = scmp.ne.s32.totalorder %s31, %s34
      %p40 = scmp.eq.s32.totalorder %s21, 0
      %p41 = por %p39, %p40
      %p42 = scmp.ne.s32.totalorder %s31, %s34
      %p43 = scmp.eq.s32.totalorder %s26, 1
      %p44 = por %p42, %p43
      %p45 = scmp.ne.s32.totalorder %s34, %s35
      %p46 = scmp.eq.s32.totalorder %s26, 0
      %p47 = por %p45, %p46
      %p48 = scmp.ne.s32.totalorder %s34, %s35
      %p49 = scmp.eq.s32.totalorder %s27, 1
      %p50 = por %p48, %p49
      %p52 = scmp.ne.s32.totalorder %s35, %s51
      %p53 = scmp.eq.s32.totalorder %s27, 0
      %p54 = por %p52, %p53
      %s56 = sadd.s32 %s55, 1
      %p59 = scmp.eq.s32.totalorder %s21, 1
      %p60 = scmp.ne.s32.totalorder %s55, %s57
      %p61 = scmp.eq.s32.totalorder %s21, 0
      %p62 = por %p60, %p61
      %p63 = scmp.ne.s32.totalorder %s55, %s57
      %p64 = scmp.eq.s32.totalorder %s26, 1
      %p65 = por %p63, %p64
      %p66 = scmp.ne.s32.totalorder %s57, %s58
      %p67 = scmp.eq.s32.totalorder %s26, 0
      %p68 = por %p66, %p67
      %p69 = scmp.ne.s32.totalorder %s57, %s58
      %p70 = scmp.eq.s32.totalorder %s27, 1
      %p71 = por %p69, %p70
      %p73 = scmp.ne.s32.totalorder %s58, %s72
      %p74 = scmp.eq.s32.totalorder %s27, 0
      %p75 = por %p73, %p74
      %s77 = sadd.s32 %s76, 1
      %p80 = scmp.eq.s32.totalorder %s21, 1
      %p81 = scmp.ne.s32.totalorder %s76, %s78
      %p82 = scmp.eq.s32.totalorder %s21, 0
      %p83 = por %p81, %p82
      %p84 = scmp.ne.s32.totalorder %s76, %s78
      %p85 = scmp.eq.s32.totalorder %s26, 1
      %p86 = por %p84, %p85
      %p87 = scmp.ne.s32.totalorder %s78, %s79
      %p88 = scmp.eq.s32.totalorder %s26, 0
      %p89 = por %p87, %p88
      %p90 = scmp.ne.s32.totalorder %s78, %s79
      %p91 = scmp.eq.s32.totalorder %s27, 1
      %p92 = por %p90, %p91
      %p94 = scmp.ne.s32.totalorder %s79, %s93
      %p95 = scmp.eq.s32.totalorder %s27, 0
      %p96 = por %p94, %p95
      %s98 = sadd.s32 %s97, 1
      %p101 = scmp.eq.s32.totalorder %s21, 1
      %p102 = scmp.ne.s32.totalorder %s97, %s99
      %p103 = scmp.eq.s32.totalorder %s21, 0
      %p104 = por %p102, %p103
      %p105 = scmp.ne.s32.totalorder %s97, %s99
      %p106 = scmp.eq.s32.totalorder %s26, 1
      %p107 = por %p105, %p106
      %p108 = scmp.ne.s32.totalorder %s99, %s100
      %p109 = scmp.eq.s32.totalorder %s26, 0
      %p110 = por %p108, %p109
      %p111 = scmp.ne.s32.totalorder %s99, %s100
      %p112 = scmp.eq.s32.totalorder %s27, 1
      %p113 = por %p111, %p112
      %p115 = scmp.ne.s32.totalorder %s100, %s114
      %p116 = scmp.eq.s32.totalorder %s27, 0
      %p117 = por %p115, %p116
      %s119 = sadd.s32 %s118, 1
      %p122 = scmp.eq.s32.totalorder %s21, 1
      %p123 = scmp.ne.s32.totalorder %s118, %s120
      %p124 = scmp.eq.s32.totalorder %s21, 0
      %p125 = por %p123, %p124
      %p126 = scmp.ne.s32.totalorder %s118, %s120
      %p127 = scmp.eq.s32.totalorder %s26, 1
      %p128 = por %p126, %p127
      %p129 = scmp.ne.s32.totalorder %s120, %s121
      %p130 = scmp.eq.s32.totalorder %s26, 0
      %p131 = por %p129, %p130
      %p132 = scmp.ne.s32.totalorder %s120, %s121
      %p133 = scmp.eq.s32.totalorder %s27, 1
      %p134 = por %p132, %p133
      %p136 = scmp.ne.s32.totalorder %s121, %s135
      %p137 = scmp.eq.s32.totalorder %s27, 0
      %p138 = por %p136, %p137
      %s140 = sadd.s32 %s139, 1
      %p143 = scmp.eq.s32.totalorder %s21, 1
      %p144 = scmp.ne.s32.totalorder %s139, %s141
      %p145 = scmp.eq.s32.totalorder %s21, 0
      %p146 = por %p144, %p145
      %p147 = scmp.ne.s32.totalorder %s139, %s141
      %p148 = scmp.eq.s32.totalorder %s26, 1
      %p149 = por %p147, %p148
      %p150 = scmp.ne.s32.totalorder %s141, %s142
      %p151 = scmp.eq.s32.totalorder %s26, 0
      %p152 = por %p150, %p151
      %p153 = scmp.ne.s32.totalorder %s141, %s142
      %p154 = scmp.eq.s32.totalorder %s27, 1
      %p155 = por %p153, %p154
      %p157 = scmp.ne.s32.totalorder %s142, %s156
      %p158 = scmp.eq.s32.totalorder %s27, 0
      %p159 = por %p157, %p158
      %s160 = ssub.s32 %s21, %s28
      %p161 = scmp.eq.s32.totalorder %s160, 0
      %s163 = sadd.s32 %s162, 1
      %s164 = scalar_select %p161, %s162, %s163
      %p167 = pneg %p161
      %p168 = scmp.eq.s32.totalorder %s21, 1
      %p169 = por %p167, %p168
      %p170 = scmp.ne.s32.totalorder %s162, %s165
      %p171 = scmp.eq.s32.totalorder %s21, 0
      %p172 = por %p170, %p171
      %p173 = scmp.ne.s32.totalorder %s162, %s165
      %p174 = scmp.eq.s32.totalorder %s26, 1
      %p175 = por %p173, %p174
      %p176 = scmp.ne.s32.totalorder %s165, %s166
      %p177 = scmp.eq.s32.totalorder %s26, 0
      %p178 = por %p176, %p177
      %p179 = scmp.ne.s32.totalorder %s165, %s166
      %p180 = scmp.eq.s32.totalorder %s27, 1
      %p181 = por %p179, %p180
      %p183 = scmp.ne.s32.totalorder %s166, %s182
      %p184 = scmp.eq.s32.totalorder %s27, 0
      %p185 = por %p183, %p184
      %p186 = scmp.le.s32.totalorder 1, %s21
      %p187 = scmp.lt.s32.totalorder %s21, 3
      %p188 = pnand %p186, %p187
      %p189 = pneg %p188
      // Predicated region
      $region9: #{tpu_custom_call.1} parent=5 // pred_check
        _
      $region10: #{tpu_custom_call.1} parent=5 // pred_check_branch
        %191 = sbr.rel (%p188) target = $region12
      $region11: #{tpu_custom_call.1} parent=5 // pred_region
        %s192 = ssub.s32 %s21, 1
        // Predicated region
        $region13: #{tpu_custom_call.1} parent=11 // pred_check
          %p193 = pneg %p68
        $region14: #{tpu_custom_call.1} parent=11 // pred_check_branch
          %195 = sbr.rel (%p193) target = $region16
        $region15: #{tpu_custom_call.1} parent=11 // pred_region
          %197 = vsyncadd [#allocation6], 0
          %s198 = sshll.u32 %s1, 4
          %s199 = int_to_ptr.hbm [resolvable:$true] %s198
          %s200 = sshll.u32 [#allocation5], 4
          %s201 = int_to_ptr.vmem [resolvable:$true] %s200
          %206 = dma.hbm_to_vmem [thread:$0]  %s199, 4096, %s201, [#allocation6], 256, 256, 16
        $region16: #{tpu_custom_call.1} parent=11 // pred_fallthru
          _
        // Predicated region
        $region17: #{tpu_custom_call.1} parent=11 // pred_check
          %p207 = pneg %p89
        $region18: #{tpu_custom_call.1} parent=11 // pred_check_branch
          %209 = sbr.rel (%p207) target = $region20
        $region19: #{tpu_custom_call.1} parent=11 // pred_region
          %211 = vsyncadd [#allocation6], 0
          %s212 = sshll.u32 %s2, 4
          %s213 = int_to_ptr.hbm [resolvable:$true] %s212
          %s214 = sshll.u32 [#allocation7], 4
          %s215 = int_to_ptr.vmem [resolvable:$true] %s214
          %220 = dma.hbm_to_vmem [thread:$0]  %s213, 3072, %s215, [#allocation6], 192, 192, 12
        $region20: #{tpu_custom_call.1} parent=11 // pred_fallthru
          _
        // Predicated region
        $region21: #{tpu_custom_call.1} parent=11 // pred_check
          %p221 = pneg %p110
        $region22: #{tpu_custom_call.1} parent=11 // pred_check_branch
          %223 = sbr.rel (%p221) target = $region24
        $region23: #{tpu_custom_call.1} parent=11 // pred_region
          %225 = vsyncadd [#allocation9], 0
          %s226 = sshll.u32 %s3, 4
          %s227 = int_to_ptr.hbm [resolvable:$true] %s226
          %s228 = sshll.u32 [#allocation8], 4
          %s229 = int_to_ptr.vmem [resolvable:$true] %s228
          %234 = dma.hbm_to_vmem [thread:$0]  %s227, 1024, %s229, [#allocation9], 64, 64, 4
        $region24: #{tpu_custom_call.1} parent=11 // pred_fallthru
          _
        // Predicated region
        $region25: #{tpu_custom_call.1} parent=11 // pred_check
          %p235 = pneg %p131
        $region26: #{tpu_custom_call.1} parent=11 // pred_check_branch
          %237 = sbr.rel (%p235) target = $region28
        $region27: #{tpu_custom_call.1} parent=11 // pred_region
          %239 = vsyncadd [#allocation9], 0
          %s240 = sshll.u32 %s4, 4
          %s241 = int_to_ptr.hbm [resolvable:$true] %s240
          %s242 = sshll.u32 [#allocation10], 4
          %s243 = int_to_ptr.vmem [resolvable:$true] %s242
          %248 = dma.hbm_to_vmem [thread:$0]  %s241, 1024, %s243, [#allocation9], 64, 64, 4
        $region28: #{tpu_custom_call.1} parent=11 // pred_fallthru
          _
        // Predicated region
        $region29: #{tpu_custom_call.1} parent=11 // pred_check
          %p249 = pneg %p152
        $region30: #{tpu_custom_call.1} parent=11 // pred_check_branch
          %251 = sbr.rel (%p249) target = $region32
        $region31: #{tpu_custom_call.1} parent=11 // pred_region
          %253 = vsyncadd [#allocation12], 0
          %s255 = sshll.u32 %s5, 4
          %s256 = int_to_ptr.hbm [resolvable:$true] %s255
          %s257 = sshll.u32 [#allocation11], 4
          %s258 = int_to_ptr.vmem [resolvable:$true] %s257
          %260 = dma.hbm_to_vmem [thread:$0]  %s256, 128, %s258, [#allocation12]
        $region32: #{tpu_custom_call.1} parent=11 // pred_fallthru
          _
      $region12: #{tpu_custom_call.1} parent=5 // pred_fallthru
        _
      %p261 = scmp.lt.s32.totalorder %s21, 2
      // Predicated region
      $region33: #{tpu_custom_call.1} parent=5 // pred_check
        %p262 = pneg %p261
      $region34: #{tpu_custom_call.1} parent=5 // pred_check_branch
        %264 = sbr.rel (%p262) target = $region36
      $region35: #{tpu_custom_call.1} parent=5 // pred_region
        // Predicated region
        $region37: #{tpu_custom_call.1} parent=35 // pred_check
          %p265 = pneg %p41
        $region38: #{tpu_custom_call.1} parent=35 // pred_check_branch
          %267 = sbr.rel (%p265) target = $region40
        $region39: #{tpu_custom_call.1} parent=35 // pred_region
          %s268 = sand.u32 %s31, 1
          %s269 = scalar_lea.sflag [#allocation3], %s268
          %s270 = sand.u32 %s31, 1
          %s271 = smul.addr %s270, 64
          %s272 = scalar_lea.vmem [#allocation2], %s271
          %s273 = smul.u32 8, %s21
          %275 = vsyncadd %s269, 0
          %s276 = smul.addr %s273, 2
          %s277 = smul.addr %s276, 4
          %s278 = scalar_lea.hbm %s0, %s277
          %s279 = sshll.u32 %s278, 4
          %s280 = int_to_ptr.hbm [resolvable:$true] %s279
          %s281 = sshll.u32 %s272, 4
          %s282 = int_to_ptr.vmem [resolvable:$true] %s281
          %287 = dma.hbm_to_vmem [thread:$0]  %s280, 1024, %s282, %s269, 64, 64, 4
        $region40: #{tpu_custom_call.1} parent=35 // pred_fallthru
          _
      $region36: #{tpu_custom_call.1} parent=5 // pred_fallthru
        _
      %p288 = scmp.le.s32.totalorder 1, %s21
      %p289 = scmp.lt.s32.totalorder %s21, 3
      %p290 = pnand %p288, %p289
      %p291 = pneg %p290
      // Predicated region
      $region41: #{tpu_custom_call.1} parent=5 // pred_check
        _
      $region42: #{tpu_custom_call.1} parent=5 // pred_check_branch
        %293 = sbr.rel (%p290) target = $region44
      $region43: #{tpu_custom_call.1} parent=5 // pred_region
        %s294 = ssub.s32 %s21, 1
        %s295 = sand.u32 %s34, 1
        %s296 = scalar_lea.sflag [#allocation3], %s295
        %s297 = sand.u32 %s34, 1
        %s298 = smul.addr %s297, 64
        %s299 = scalar_lea.vmem [#allocation2], %s298
        // Predicated region
        $region45: #{tpu_custom_call.1} parent=43 // pred_check
          %p300 = pneg %p47
        $region46: #{tpu_custom_call.1} parent=43 // pred_check_branch
          %302 = sbr.rel (%p300) target = $region48
        $region47: #{tpu_custom_call.1} parent=43 // pred_region
          %304 = dma.done %s296, 1024
        $region48: #{tpu_custom_call.1} parent=43 // pred_fallthru
          _
        // Predicated region
        $region49: #{tpu_custom_call.1} parent=43 // pred_check
          %p305 = pneg %p68
        $region50: #{tpu_custom_call.1} parent=43 // pred_check_branch
          %307 = sbr.rel (%p305) target = $region52
        $region51: #{tpu_custom_call.1} parent=43 // pred_region
          %309 = dma.done [#allocation6], 4096
        $region52: #{tpu_custom_call.1} parent=43 // pred_fallthru
          _
        // Predicated region
        $region53: #{tpu_custom_call.1} parent=43 // pred_check
          %p310 = pneg %p89
        $region54: #{tpu_custom_call.1} parent=43 // pred_check_branch
          %312 = sbr.rel (%p310) target = $region56
        $region55: #{tpu_custom_call.1} parent=43 // pred_region
          %314 = dma.done [#allocation6], 3072
        $region56: #{tpu_custom_call.1} parent=43 // pred_fallthru
          _
        // Predicated region
        $region57: #{tpu_custom_call.1} parent=43 // pred_check
          %p315 = pneg %p110
        $region58: #{tpu_custom_call.1} parent=43 // pred_check_branch
          %317 = sbr.rel (%p315) target = $region60
        $region59: #{tpu_custom_call.1} parent=43 // pred_region
          %319 = dma.done [#allocation9], 1024
        $region60: #{tpu_custom_call.1} parent=43 // pred_fallthru
          _
        // Predicated region
        $region61: #{tpu_custom_call.1} parent=43 // pred_check
          %p320 = pneg %p131
        $region62: #{tpu_custom_call.1} parent=43 // pred_check_branch
          %322 = sbr.rel (%p320) target = $region64
        $region63: #{tpu_custom_call.1} parent=43 // pred_region
          %324 = dma.done [#allocation9], 1024
        $region64: #{tpu_custom_call.1} parent=43 // pred_fallthru
          _
        // Predicated region
        $region65: #{tpu_custom_call.1} parent=43 // pred_check
          %p325 = pneg %p152
        $region66: #{tpu_custom_call.1} parent=43 // pred_check_branch
          %327 = sbr.rel (%p325) target = $region68
        $region67: #{tpu_custom_call.1} parent=43 // pred_region
          %329 = dma.done [#allocation12], 128
        $region68: #{tpu_custom_call.1} parent=43 // pred_fallthru
          _
        %s330 = sand.u32 %s34, 1
        %s331 = scalar_lea.sflag [#allocation3], %s330
        %s332 = sand.u32 %s34, 1
        %s333 = smul.addr %s332, 64
        %s334 = scalar_lea.vmem [#allocation2], %s333
        %p335 = pneg %p47
        %p336 = pneg %p44
        %p337 = pneg %p68
        %p338 = pneg %p65
        %p339 = pneg %p89
        %p340 = pneg %p86
        %p341 = pneg %p110
        %p342 = pneg %p107
        %p343 = pneg %p131
        %p344 = pneg %p128
        %p345 = pneg %p152
        %p346 = pneg %p149
        %p347 = pneg %p178
        %p348 = pneg %p175
        %s349 = sand.u32 %s165, 1
        %s350 = scalar_lea.sflag [#allocation4], %s349
        %s351 = sand.u32 %s165, 1
        %s352 = smul.addr %s351, 128
        %s353 = scalar_lea.vmem [#allocation13], %s352
        %s354 = smul.u32 8, %s26
        %s355 = smul.u32 8, %s26
        %v356 = vld [vmem:[%s299] sm:$0xf]
        %v357 = vld [vmem:[%s299 + $0x4] sm:$0xf]
        %v358 = vld [vmem:[%s299 + $0x8] sm:$0xf]
        %v359 = vld [vmem:[%s299 + $0xc] sm:$0xf]
        %v360 = vld [vmem:[%s299 + $0x10] sm:$0xf]
        %v361 = vld [vmem:[%s299 + $0x14] sm:$0xf]
        %v362 = vld [vmem:[%s299 + $0x18] sm:$0xf]
        %v363 = vld [vmem:[%s299 + $0x1c] sm:$0xf]
        %v364 = vld [vmem:[%s299 + $0x20] sm:$0xf]
        %v365 = vld [vmem:[%s299 + $0x24] sm:$0xf]
        %v366 = vld [vmem:[%s299 + $0x28] sm:$0xf]
        %v367 = vld [vmem:[%s299 + $0x2c] sm:$0xf]
        %v368 = vld [vmem:[%s299 + $0x30] sm:$0xf]
        %v369 = vld [vmem:[%s299 + $0x34] sm:$0xf]
        %v370 = vld [vmem:[%s299 + $0x38] sm:$0xf]
        %v371 = vld [vmem:[%s299 + $0x3c] sm:$0xf]
        %v372 = vlaneseq
        %v373 = vshrl.u32 %v372, 7
        %v374 = vadd.s32 %v373, 8
        %vm375 = vcmp.ne.s32.totalorder %v373, 0
        %vm376 = vcmp.ne.s32.totalorder %v374, 0
        %v377 = vsel %vm375, 1, 0
        %v378 = vsel %vm376, 1, 0
        %v379 = vcvt.s32.f32 %v377
        %v380 = vcvt.s32.f32 %v378
        %vm381 = vcmp.ne.s32.totalorder %v373, 15
        %vm382 = vcmp.ne.s32.totalorder %v374, 15
        %v383 = vsel %vm381, 1, 0
        %v384 = vsel %vm382, 1, 0
        %v385 = vcvt.s32.f32 %v383
        %v386 = vcvt.s32.f32 %v384
        %v387 = vld [vmem:[#allocation5] sm:$0xff]
        %v388 = vld [vmem:[#allocation5 + $0x8] sm:$0xff]
        %v389 = vld [vmem:[#allocation5 + $0x10] sm:$0xff]
        %v390 = vld [vmem:[#allocation5 + $0x18] sm:$0xff]
        %v391 = vld [vmem:[#allocation5 + $0x20] sm:$0xff]
        %v392 = vld [vmem:[#allocation5 + $0x28] sm:$0xff]
        %v393 = vld [vmem:[#allocation5 + $0x30] sm:$0xff]
        %v394 = vld [vmem:[#allocation5 + $0x38] sm:$0xff]
        %v395 = vld [vmem:[#allocation5 + $0x40] sm:$0xff]
        %v396 = vld [vmem:[#allocation5 + $0x48] sm:$0xff]
        %v397 = vld [vmem:[#allocation5 + $0x50] sm:$0xff]
        %v398 = vld [vmem:[#allocation5 + $0x58] sm:$0xff]
        %v399 = vld [vmem:[#allocation5 + $0x60] sm:$0xff]
        %v400 = vld [vmem:[#allocation5 + $0x68] sm:$0xff]
        %v401 = vld [vmem:[#allocation5 + $0x70] sm:$0xff]
        %v402 = vld [vmem:[#allocation5 + $0x78] sm:$0xff]
        %v403 = vld [vmem:[#allocation5 + $0x80] sm:$0xff]
        %v404 = vld [vmem:[#allocation5 + $0x88] sm:$0xff]
        %v405 = vld [vmem:[#allocation5 + $0x90] sm:$0xff]
        %v406 = vld [vmem:[#allocation5 + $0x98] sm:$0xff]
        %v407 = vld [vmem:[#allocation5 + $0xa0] sm:$0xff]
        %v408 = vld [vmem:[#allocation5 + $0xa8] sm:$0xff]
        %v409 = vld [vmem:[#allocation5 + $0xb0] sm:$0xff]
        %v410 = vld [vmem:[#allocation5 + $0xb8] sm:$0xff]
        %v411 = vld [vmem:[#allocation5 + $0xc0] sm:$0xff]
        %v412 = vld [vmem:[#allocation5 + $0xc8] sm:$0xff]
        %v413 = vld [vmem:[#allocation5 + $0xd0] sm:$0xff]
        %v414 = vld [vmem:[#allocation5 + $0xd8] sm:$0xff]
        %v415 = vld [vmem:[#allocation5 + $0xe0] sm:$0xff]
        %v416 = vld [vmem:[#allocation5 + $0xe8] sm:$0xff]
        %v417 = vld [vmem:[#allocation5 + $0xf0] sm:$0xff]
        %v418 = vld [vmem:[#allocation5 + $0xf8] sm:$0xff]
        %v435 = vunpack.c.l.b16 %v356
        %v436 = vunpack.c.l.b16 %v357
        %v437 = vunpack.c.l.b16 %v358
        %v438 = vunpack.c.l.b16 %v359
        %v439 = vunpack.c.l.b16 %v360
        %v440 = vunpack.c.l.b16 %v361
        %v441 = vunpack.c.l.b16 %v362
        %v442 = vunpack.c.l.b16 %v363
        %v443 = vunpack.c.l.b16 %v364
        %v444 = vunpack.c.l.b16 %v365
        %v445 = vunpack.c.l.b16 %v366
        %v446 = vunpack.c.l.b16 %v367
        %v447 = vunpack.c.l.b16 %v368
        %v448 = vunpack.c.l.b16 %v369
        %v449 = vunpack.c.l.b16 %v370
        %v450 = vunpack.c.l.b16 %v371
        %v451 = vpack.c.b16 %v436, %v435
        %v452 = vpack.c.b16 %v438, %v437
        %v453 = vpack.c.b16 %v440, %v439
        %v454 = vpack.c.b16 %v442, %v441
        %v455 = vpack.c.b16 %v444, %v443
        %v456 = vpack.c.b16 %v446, %v445
        %v457 = vpack.c.b16 %v448, %v447
        %v458 = vpack.c.b16 %v450, %v449
        %v499 = vunpack.c.l.b16 %v387
        %v500 = vunpack.c.h.b16 %v387
        %v501 = vunpack.c.l.b16 %v388
        %v502 = vunpack.c.h.b16 %v388
        %v503 = vunpack.c.l.b16 %v389
        %v504 = vunpack.c.h.b16 %v389
        %v505 = vunpack.c.l.b16 %v390
        %v506 = vunpack.c.h.b16 %v390
        %v507 = vunpack.c.l.b16 %v391
        %v508 = vunpack.c.h.b16 %v391
        %v509 = vunpack.c.l.b16 %v392
        %v510 = vunpack.c.h.b16 %v392
        %v511 = vunpack.c.l.b16 %v393
        %v512 = vunpack.c.h.b16 %v393
        %v513 = vunpack.c.l.b16 %v394
        %v514 = vunpack.c.h.b16 %v394
        %v515 = vunpack.c.l.b16 %v395
        %v516 = vunpack.c.h.b16 %v395
        %v517 = vunpack.c.l.b16 %v396
        %v518 = vunpack.c.h.b16 %v396
        %v519 = vunpack.c.l.b16 %v397
        %v520 = vunpack.c.h.b16 %v397
        %v521 = vunpack.c.l.b16 %v398
        %v522 = vunpack.c.h.b16 %v398
        %v523 = vunpack.c.l.b16 %v399
        %v524 = vunpack.c.h.b16 %v399
        %v525 = vunpack.c.l.b16 %v400
        %v526 = vunpack.c.h.b16 %v400
        %v527 = vunpack.c.l.b16 %v401
        %v528 = vunpack.c.h.b16 %v401
        %v529 = vunpack.c.l.b16 %v402
        %v530 = vunpack.c.h.b16 %v402
        %v531 = vunpack.c.l.b16 %v403
        %v532 = vunpack.c.h.b16 %v403
        %v533 = vunpack.c.l.b16 %v404
        %v534 = vunpack.c.h.b16 %v404
        %v535 = vunpack.c.l.b16 %v405
        %v536 = vunpack.c.h.b16 %v405
        %v537 = vunpack.c.l.b16 %v406
        %v538 = vunpack.c.h.b16 %v406
        %v539 = vunpack.c.l.b16 %v407
        %v540 = vunpack.c.h.b16 %v407
        %v541 = vunpack.c.l.b16 %v408
        %v542 = vunpack.c.h.b16 %v408
        %v543 = vunpack.c.l.b16 %v409
        %v544 = vunpack.c.h.b16 %v409
        %v545 = vunpack.c.l.b16 %v410
        %v546 = vunpack.c.h.b16 %v410
        %v547 = vunpack.c.l.b16 %v411
        %v548 = vunpack.c.h.b16 %v411
        %v549 = vunpack.c.l.b16 %v412
        %v550 = vunpack.c.h.b16 %v412
        %v551 = vunpack.c.l.b16 %v413
        %v552 = vunpack.c.h.b16 %v413
        %v553 = vunpack.c.l.b16 %v414
        %v554 = vunpack.c.h.b16 %v414
        %v555 = vunpack.c.l.b16 %v415
        %v556 = vunpack.c.h.b16 %v415
        %v557 = vunpack.c.l.b16 %v416
        %v558 = vunpack.c.h.b16 %v416
        %v559 = vunpack.c.l.b16 %v417
        %v560 = vunpack.c.h.b16 %v417
        %v561 = vunpack.c.l.b16 %v418
        %v562 = vunpack.c.h.b16 %v418
        %v563 = vpack.c.b16 %v503, %v499
        %v564 = vpack.c.b16 %v504, %v500
        %v565 = vpack.c.b16 %v505, %v501
        %v566 = vpack.c.b16 %v506, %v502
        %v567 = vpack.c.b16 %v511, %v507
        %v568 = vpack.c.b16 %v512, %v508
        %v569 = vpack.c.b16 %v513, %v509
        %v570 = vpack.c.b16 %v514, %v510
        %v571 = vpack.c.b16 %v519, %v515
        %v572 = vpack.c.b16 %v520, %v516
        %v573 = vpack.c.b16 %v521, %v517
        %v574 = vpack.c.b16 %v522, %v518
        %v575 = vpack.c.b16 %v527, %v523
        %v576 = vpack.c.b16 %v528, %v524
        %v577 = vpack.c.b16 %v529, %v525
        %v578 = vpack.c.b16 %v530, %v526
        %v579 = vpack.c.b16 %v535, %v531
        %v580 = vpack.c.b16 %v536, %v532
        %v581 = vpack.c.b16 %v537, %v533
        %v582 = vpack.c.b16 %v538, %v534
        %v583 = vpack.c.b16 %v543, %v539
        %v584 = vpack.c.b16 %v544, %v540
        %v585 = vpack.c.b16 %v545, %v541
        %v586 = vpack.c.b16 %v546, %v542
        %v587 = vpack.c.b16 %v551, %v547
        %v588 = vpack.c.b16 %v552, %v548
        %v589 = vpack.c.b16 %v553, %v549
        %v590 = vpack.c.b16 %v554, %v550
        %v591 = vpack.c.b16 %v559, %v555
        %v592 = vpack.c.b16 %v560, %v556
        %v593 = vpack.c.b16 %v561, %v557
        %v594 = vpack.c.b16 %v562, %v558
        %627 = vmatpush.bf16.msra.mxu0 %v591
        %628 = vmatpush.bf16.msra.mxu0 %v587
        %629 = vmatpush.bf16.msra.mxu0 %v583
        %630 = vmatpush.bf16.msra.mxu0 %v579
        %631 = vmatpush.bf16.msra.mxu0 %v575
        %632 = vmatpush.bf16.msra.mxu0 %v571
        %633 = vmatpush.bf16.msra.mxu0 %v567
        %634 = vmatpush.bf16.msra.mxu0 %v563
        %635 = vmatmul.bf16.gmra.mxu0 %v451
        %v636 = vpop.f32.mrf.mxu0
        %v637 = vadd.f32 0.0, %v636
        %v638 = vpop.f32.mrf.mxu0
        %v639 = vadd.f32 0.0, %v638
        %640 = vmatmul.bf16.gmra.mxu0 %v452
        %v641 = vpop.f32.mrf.mxu0
        %v642 = vadd.f32 0.0, %v641
        %v643 = vpop.f32.mrf.mxu0
        %v644 = vadd.f32 0.0, %v643
        %645 = vmatmul.bf16.gmra.mxu0 %v453
        %v646 = vpop.f32.mrf.mxu0
        %v647 = vadd.f32 0.0, %v646
        %v648 = vpop.f32.mrf.mxu0
        %v649 = vadd.f32 0.0, %v648
        %650 = vmatmul.bf16.gmra.mxu0 %v454
        %v651 = vpop.f32.mrf.mxu0
        %v652 = vadd.f32 0.0, %v651
        %v653 = vpop.f32.mrf.mxu0
        %v654 = vadd.f32 0.0, %v653
        %655 = vmatmul.bf16.gmra.mxu0 %v455
        %v656 = vpop.f32.mrf.mxu0
        %v657 = vadd.f32 0.0, %v656
        %v658 = vpop.f32.mrf.mxu0
        %v659 = vadd.f32 0.0, %v658
        %660 = vmatmul.bf16.gmra.mxu0 %v456
        %v661 = vpop.f32.mrf.mxu0
        %v662 = vadd.f32 0.0, %v661
        %v663 = vpop.f32.mrf.mxu0
        %v664 = vadd.f32 0.0, %v663
        %665 = vmatmul.bf16.gmra.mxu0 %v457
        %v666 = vpop.f32.mrf.mxu0
        %v667 = vadd.f32 0.0, %v666
        %v668 = vpop.f32.mrf.mxu0
        %v669 = vadd.f32 0.0, %v668
        %670 = vmatmul.bf16.gmra.mxu0 %v458
        %v671 = vpop.f32.mrf.mxu0
        %v672 = vadd.f32 0.0, %v671
        %v673 = vpop.f32.mrf.mxu0
        %v674 = vadd.f32 0.0, %v673
        %675 = vdwg.mxu0
        %676 = vmatpush.bf16.msra.mxu0 %v592
        %677 = vmatpush.bf16.msra.mxu0 %v588
        %678 = vmatpush.bf16.msra.mxu0 %v584
        %679 = vmatpush.bf16.msra.mxu0 %v580
        %680 = vmatpush.bf16.msra.mxu0 %v576
        %681 = vmatpush.bf16.msra.mxu0 %v572
        %682 = vmatpush.bf16.msra.mxu0 %v568
        %683 = vmatpush.bf16.msra.mxu0 %v564
        %684 = vmatmul.bf16.gmra.mxu0 %v451
        %v685 = vpop.f32.mrf.mxu0
        %v686 = vadd.f32 0.0, %v685
        %v687 = vpop.f32.mrf.mxu0
        %v688 = vadd.f32 0.0, %v687
        %689 = vmatmul.bf16.gmra.mxu0 %v452
        %v690 = vpop.f32.mrf.mxu0
        %v691 = vadd.f32 0.0, %v690
        %v692 = vpop.f32.mrf.mxu0
        %v693 = vadd.f32 0.0, %v692
        %694 = vmatmul.bf16.gmra.mxu0 %v453
        %v695 = vpop.f32.mrf.mxu0
        %v696 = vadd.f32 0.0, %v695
        %v697 = vpop.f32.mrf.mxu0
        %v698 = vadd.f32 0.0, %v697
        %699 = vmatmul.bf16.gmra.mxu0 %v454
        %v700 = vpop.f32.mrf.mxu0
        %v701 = vadd.f32 0.0, %v700
        %v702 = vpop.f32.mrf.mxu0
        %v703 = vadd.f32 0.0, %v702
        %704 = vmatmul.bf16.gmra.mxu0 %v455
        %v705 = vpop.f32.mrf.mxu0
        %v706 = vadd.f32 0.0, %v705
        %v707 = vpop.f32.mrf.mxu0
        %v708 = vadd.f32 0.0, %v707
        %709 = vmatmul.bf16.gmra.mxu0 %v456
        %v710 = vpop.f32.mrf.mxu0
        %v711 = vadd.f32 0.0, %v710
        %v712 = vpop.f32.mrf.mxu0
        %v713 = vadd.f32 0.0, %v712
        %714 = vmatmul.bf16.gmra.mxu0 %v457
        %v715 = vpop.f32.mrf.mxu0
        %v716 = vadd.f32 0.0, %v715
        %v717 = vpop.f32.mrf.mxu0
        %v718 = vadd.f32 0.0, %v717
        %719 = vmatmul.bf16.gmra.mxu0 %v458
        %v720 = vpop.f32.mrf.mxu0
        %v721 = vadd.f32 0.0, %v720
        %v722 = vpop.f32.mrf.mxu0
        %v723 = vadd.f32 0.0, %v722
        %724 = vdwg.mxu0
        %725 = vmatpush.bf16.msra.mxu0 %v593
        %726 = vmatpush.bf16.msra.mxu0 %v589
        %727 = vmatpush.bf16.msra.mxu0 %v585
        %728 = vmatpush.bf16.msra.mxu0 %v581
        %729 = vmatpush.bf16.msra.mxu0 %v577
        %730 = vmatpush.bf16.msra.mxu0 %v573
        %731 = vmatpush.bf16.msra.mxu0 %v569
        %732 = vmatpush.bf16.msra.mxu0 %v565
        %733 = vmatmul.bf16.gmra.mxu0 %v451
        %v734 = vpop.f32.mrf.mxu0
        %v735 = vadd.f32 0.0, %v734
        %v736 = vpop.f32.mrf.mxu0
        %v737 = vadd.f32 0.0, %v736
        %738 = vmatmul.bf16.gmra.mxu0 %v452
        %v739 = vpop.f32.mrf.mxu0
        %v740 = vadd.f32 0.0, %v739
        %v741 = vpop.f32.mrf.mxu0
        %v742 = vadd.f32 0.0, %v741
        %743 = vmatmul.bf16.gmra.mxu0 %v453
        %v744 = vpop.f32.mrf.mxu0
        %v745 = vadd.f32 0.0, %v744
        %v746 = vpop.f32.mrf.mxu0
        %v747 = vadd.f32 0.0, %v746
        %748 = vmatmul.bf16.gmra.mxu0 %v454
        %v749 = vpop.f32.mrf.mxu0
        %v750 = vadd.f32 0.0, %v749
        %v751 = vpop.f32.mrf.mxu0
        %v752 = vadd.f32 0.0, %v751
        %753 = vmatmul.bf16.gmra.mxu0 %v455
        %v754 = vpop.f32.mrf.mxu0
        %v755 = vadd.f32 0.0, %v754
        %v756 = vpop.f32.mrf.mxu0
        %v757 = vadd.f32 0.0, %v756
        %758 = vmatmul.bf16.gmra.mxu0 %v456
        %v759 = vpop.f32.mrf.mxu0
        %v760 = vadd.f32 0.0, %v759
        %v761 = vpop.f32.mrf.mxu0
        %v762 = vadd.f32 0.0, %v761
        %763 = vmatmul.bf16.gmra.mxu0 %v457
        %v764 = vpop.f32.mrf.mxu0
        %v765 = vadd.f32 0.0, %v764
        %v766 = vpop.f32.mrf.mxu0
        %v767 = vadd.f32 0.0, %v766
        %768 = vmatmul.bf16.gmra.mxu0 %v458
        %v769 = vpop.f32.mrf.mxu0
        %v770 = vadd.f32 0.0, %v769
        %v771 = vpop.f32.mrf.mxu0
        %v772 = vadd.f32 0.0, %v771
        %773 = vdwg.mxu0
        %774 = vmatpush.bf16.msra.mxu0 %v594
        %775 = vmatpush.bf16.msra.mxu0 %v590
        %776 = vmatpush.bf16.msra.mxu0 %v586
        %777 = vmatpush.bf16.msra.mxu0 %v582
        %778 = vmatpush.bf16.msra.mxu0 %v578
        %779 = vmatpush.bf16.msra.mxu0 %v574
        %780 = vmatpush.bf16.msra.mxu0 %v570
        %781 = vmatpush.bf16.msra.mxu0 %v566
        %782 = vmatmul.bf16.gmra.mxu0 %v451
        %v783 = vpop.f32.mrf.mxu0
        %v784 = vadd.f32 0.0, %v783
        %v785 = vpop.f32.mrf.mxu0
        %v786 = vadd.f32 0.0, %v785
        %787 = vmatmul.bf16.gmra.mxu0 %v452
        %v788 = vpop.f32.mrf.mxu0
        %v789 = vadd.f32 0.0, %v788
        %v790 = vpop.f32.mrf.mxu0
        %v791 = vadd.f32 0.0, %v790
        %792 = vmatmul.bf16.gmra.mxu0 %v453
        %v793 = vpop.f32.mrf.mxu0
        %v794 = vadd.f32 0.0, %v793
        %v795 = vpop.f32.mrf.mxu0
        %v796 = vadd.f32 0.0, %v795
        %797 = vmatmul.bf16.gmra.mxu0 %v454
        %v798 = vpop.f32.mrf.mxu0
        %v799 = vadd.f32 0.0, %v798
        %v800 = vpop.f32.mrf.mxu0
        %v801 = vadd.f32 0.0, %v800
        %802 = vmatmul.bf16.gmra.mxu0 %v455
        %v803 = vpop.f32.mrf.mxu0
        %v804 = vadd.f32 0.0, %v803
        %v805 = vpop.f32.mrf.mxu0
        %v806 = vadd.f32 0.0, %v805
        %807 = vmatmul.bf16.gmra.mxu0 %v456
        %v808 = vpop.f32.mrf.mxu0
        %v809 = vadd.f32 0.0, %v808
        %v810 = vpop.f32.mrf.mxu0
        %v811 = vadd.f32 0.0, %v810
        %812 = vmatmul.bf16.gmra.mxu0 %v457
        %v813 = vpop.f32.mrf.mxu0
        %v814 = vadd.f32 0.0, %v813
        %v815 = vpop.f32.mrf.mxu0
        %v816 = vadd.f32 0.0, %v815
        %817 = vmatmul.bf16.gmra.mxu0 %v458
        %v818 = vpop.f32.mrf.mxu0
        %v819 = vadd.f32 0.0, %v818
        %v820 = vpop.f32.mrf.mxu0
        %v821 = vadd.f32 0.0, %v820
        %822 = vdwg.mxu0
        %v823 = vld [vmem:[#allocation11 + $0x2] sm:$0x1]
        %v824 = vperm.slane %v823, 0
        %v825 = vadd.f32 %v686, %v824
        %v826 = vadd.f32 %v688, %v824
        %v827 = vadd.f32 %v691, %v824
        %v828 = vadd.f32 %v693, %v824
        %v829 = vadd.f32 %v696, %v824
        %v830 = vadd.f32 %v698, %v824
        %v831 = vadd.f32 %v701, %v824
        %v832 = vadd.f32 %v703, %v824
        %v833 = vadd.f32 %v706, %v824
        %v834 = vadd.f32 %v708, %v824
        %v835 = vadd.f32 %v711, %v824
        %v836 = vadd.f32 %v713, %v824
        %v837 = vadd.f32 %v716, %v824
        %v838 = vadd.f32 %v718, %v824
        %v839 = vadd.f32 %v721, %v824
        %v840 = vadd.f32 %v723, %v824
        %v841 = vrot.slane %v735, 7
        %v842 = vrot.slane %v737, 7
        %v843 = vrot.slane %v740, 7
        %v844 = vrot.slane %v742, 7
        %v845 = vrot.slane %v745, 7
        %v846 = vrot.slane %v747, 7
        %v847 = vrot.slane %v750, 7
        %v848 = vrot.slane %v752, 7
        %v849 = vrot.slane %v755, 7
        %v850 = vrot.slane %v757, 7
        %v851 = vrot.slane %v760, 7
        %v852 = vrot.slane %v762, 7
        %v853 = vrot.slane %v765, 7
        %v854 = vrot.slane %v767, 7
        %v855 = vrot.slane %v770, 7
        %v856 = vrot.slane %v772, 7
        %vm857 = vcmp.lt.s32.totalorder %v373, 1
        %v858 = vsel %vm857, %v855, %v856
        %v859 = vsel %vm857, %v854, %v855
        %v860 = vsel %vm857, %v853, %v854
        %v861 = vsel %vm857, %v852, %v853
        %v862 = vsel %vm857, %v851, %v852
        %v863 = vsel %vm857, %v850, %v851
        %v864 = vsel %vm857, %v849, %v850
        %v865 = vsel %vm857, %v848, %v849
        %v866 = vsel %vm857, %v847, %v848
        %v867 = vsel %vm857, %v846, %v847
        %v868 = vsel %vm857, %v845, %v846
        %v869 = vsel %vm857, %v844, %v845
        %v870 = vsel %vm857, %v843, %v844
        %v871 = vsel %vm857, %v842, %v843
        %v872 = vsel %vm857, %v841, %v842
        %v873 = vsel %vm857, %v856, %v841
        %v874 = vmul.f32 %v873, %v379
        %v875 = vmul.f32 %v872, %v380
        %v876 = vmul.f32 %v871, %v379
        %v877 = vmul.f32 %v870, %v380
        %v878 = vmul.f32 %v869, %v379
        %v879 = vmul.f32 %v868, %v380
        %v880 = vmul.f32 %v867, %v379
        %v881 = vmul.f32 %v866, %v380
        %v882 = vmul.f32 %v865, %v379
        %v883 = vmul.f32 %v864, %v380
        %v884 = vmul.f32 %v863, %v379
        %v885 = vmul.f32 %v862, %v380
        %v886 = vmul.f32 %v861, %v379
        %v887 = vmul.f32 %v860, %v380
        %v888 = vmul.f32 %v859, %v379
        %v889 = vmul.f32 %v858, %v380
        %v890 = vadd.f32 %v637, %v874
        %v891 = vadd.f32 %v639, %v875
        %v892 = vadd.f32 %v642, %v876
        %v893 = vadd.f32 %v644, %v877
        %v894 = vadd.f32 %v647, %v878
        %v895 = vadd.f32 %v649, %v879
        %v896 = vadd.f32 %v652, %v880
        %v897 = vadd.f32 %v654, %v881
        %v898 = vadd.f32 %v657, %v882
        %v899 = vadd.f32 %v659, %v883
        %v900 = vadd.f32 %v662, %v884
        %v901 = vadd.f32 %v664, %v885
        %v902 = vadd.f32 %v667, %v886
        %v903 = vadd.f32 %v669, %v887
        %v904 = vadd.f32 %v672, %v888
        %v905 = vadd.f32 %v674, %v889
        %v906 = vrot.slane %v784, 1
        %v907 = vrot.slane %v786, 1
        %v908 = vrot.slane %v789, 1
        %v909 = vrot.slane %v791, 1
        %v910 = vrot.slane %v794, 1
        %v911 = vrot.slane %v796, 1
        %v912 = vrot.slane %v799, 1
        %v913 = vrot.slane %v801, 1
        %v914 = vrot.slane %v804, 1
        %v915 = vrot.slane %v806, 1
        %v916 = vrot.slane %v809, 1
        %v917 = vrot.slane %v811, 1
        %v918 = vrot.slane %v814, 1
        %v919 = vrot.slane %v816, 1
        %v920 = vrot.slane %v819, 1
        %v921 = vrot.slane %v821, 1
        %vm922 = vcmp.lt.s32.totalorder %v373, 7
        %v923 = vsel %vm922, %v920, %v921
        %v924 = vsel %vm922, %v919, %v920
        %v925 = vsel %vm922, %v918, %v919
        %v926 = vsel %vm922, %v917, %v918
        %v927 = vsel %vm922, %v916, %v917
        %v928 = vsel %vm922, %v915, %v916
        %v929 = vsel %vm922, %v914, %v915
        %v930 = vsel %vm922, %v913, %v914
        %v931 = vsel %vm922, %v912, %v913
        %v932 = vsel %vm922, %v911, %v912
        %v933 = vsel %vm922, %v910, %v911
        %v934 = vsel %vm922, %v909, %v910
        %v935 = vsel %vm922, %v908, %v909
        %v936 = vsel %vm922, %v907, %v908
        %v937 = vsel %vm922, %v906, %v907
        %v938 = vsel %vm922, %v921, %v906
        %v939 = vmul.f32 %v937, %v385
        %v940 = vmul.f32 %v936, %v386
        %v941 = vmul.f32 %v935, %v385
        %v942 = vmul.f32 %v934, %v386
        %v943 = vmul.f32 %v933, %v385
        %v944 = vmul.f32 %v932, %v386
        %v945 = vmul.f32 %v931, %v385
        %v946 = vmul.f32 %v930, %v386
        %v947 = vmul.f32 %v929, %v385
        %v948 = vmul.f32 %v928, %v386
        %v949 = vmul.f32 %v927, %v385
        %v950 = vmul.f32 %v926, %v386
        %v951 = vmul.f32 %v925, %v385
        %v952 = vmul.f32 %v924, %v386
        %v953 = vmul.f32 %v923, %v385
        %v954 = vmul.f32 %v938, %v386
        %v955 = vadd.f32 %v890, %v939
        %v956 = vadd.f32 %v891, %v940
        %v957 = vadd.f32 %v892, %v941
        %v958 = vadd.f32 %v893, %v942
        %v959 = vadd.f32 %v894, %v943
        %v960 = vadd.f32 %v895, %v944
        %v961 = vadd.f32 %v896, %v945
        %v962 = vadd.f32 %v897, %v946
        %v963 = vadd.f32 %v898, %v947
        %v964 = vadd.f32 %v899, %v948
        %v965 = vadd.f32 %v900, %v949
        %v966 = vadd.f32 %v901, %v950
        %v967 = vadd.f32 %v902, %v951
        %v968 = vadd.f32 %v903, %v952
        %v969 = vadd.f32 %v904, %v953
        %v970 = vadd.f32 %v905, %v954
        %v971 = vld [vmem:[#allocation11] sm:$0x1]
        %v972 = vperm.slane %v971, 0
        %v973 = vadd.f32 %v955, %v972
        %v974 = vadd.f32 %v956, %v972
        %v975 = vadd.f32 %v957, %v972
        %v976 = vadd.f32 %v958, %v972
        %v977 = vadd.f32 %v959, %v972
        %v978 = vadd.f32 %v960, %v972
        %v979 = vadd.f32 %v961, %v972
        %v980 = vadd.f32 %v962, %v972
        %v981 = vadd.f32 %v963, %v972
        %v982 = vadd.f32 %v964, %v972
        %v983 = vadd.f32 %v965, %v972
        %v984 = vadd.f32 %v966, %v972
        %v985 = vadd.f32 %v967, %v972
        %v986 = vadd.f32 %v968, %v972
        %v987 = vadd.f32 %v969, %v972
        %v988 = vadd.f32 %v970, %v972
        %v989 = vmax.f32 %v973, 0.0
        %v990 = vmax.f32 %v974, 0.0
        %v991 = vmax.f32 %v975, 0.0
        %v992 = vmax.f32 %v976, 0.0
        %v993 = vmax.f32 %v977, 0.0
        %v994 = vmax.f32 %v978, 0.0
        %v995 = vmax.f32 %v979, 0.0
        %v996 = vmax.f32 %v980, 0.0
        %v997 = vmax.f32 %v981, 0.0
        %v998 = vmax.f32 %v982, 0.0
        %v999 = vmax.f32 %v983, 0.0
        %v1000 = vmax.f32 %v984, 0.0
        %v1001 = vmax.f32 %v985, 0.0
        %v1002 = vmax.f32 %v986, 0.0
        %v1003 = vmax.f32 %v987, 0.0
        %v1004 = vmax.f32 %v988, 0.0
        %v1005 = vpack.c.bf16 %v990, %v989
        %v1006 = vpack.c.bf16 %v992, %v991
        %v1007 = vpack.c.bf16 %v994, %v993
        %v1008 = vpack.c.bf16 %v996, %v995
        %v1009 = vpack.c.bf16 %v998, %v997
        %v1010 = vpack.c.bf16 %v1000, %v999
        %v1011 = vpack.c.bf16 %v1002, %v1001
        %v1012 = vpack.c.bf16 %v1004, %v1003
        %v1013 = vld [vmem:[#allocation7] sm:$0xff]
        %v1014 = vld [vmem:[#allocation7 + $0x8] sm:$0xf]
        %v1015 = vld [vmem:[#allocation7 + $0xc] sm:$0xff]
        %v1016 = vld [vmem:[#allocation7 + $0x14] sm:$0xf]
        %v1017 = vld [vmem:[#allocation7 + $0x18] sm:$0xff]
        %v1018 = vld [vmem:[#allocation7 + $0x20] sm:$0xf]
        %v1019 = vld [vmem:[#allocation7 + $0x24] sm:$0xff]
        %v1020 = vld [vmem:[#allocation7 + $0x2c] sm:$0xf]
        %v1021 = vld [vmem:[#allocation7 + $0x30] sm:$0xff]
        %v1022 = vld [vmem:[#allocation7 + $0x38] sm:$0xf]
        %v1023 = vld [vmem:[#allocation7 + $0x3c] sm:$0xff]
        %v1024 = vld [vmem:[#allocation7 + $0x44] sm:$0xf]
        %v1025 = vld [vmem:[#allocation7 + $0x48] sm:$0xff]
        %v1026 = vld [vmem:[#allocation7 + $0x50] sm:$0xf]
        %v1027 = vld [vmem:[#allocation7 + $0x54] sm:$0xff]
        %v1028 = vld [vmem:[#allocation7 + $0x5c] sm:$0xf]
        %v1029 = vld [vmem:[#allocation7 + $0x60] sm:$0xff]
        %v1030 = vld [vmem:[#allocation7 + $0x68] sm:$0xf]
        %v1031 = vld [vmem:[#allocation7 + $0x6c] sm:$0xff]
        %v1032 = vld [vmem:[#allocation7 + $0x74] sm:$0xf]
        %v1033 = vld [vmem:[#allocation7 + $0x78] sm:$0xff]
        %v1034 = vld [vmem:[#allocation7 + $0x80] sm:$0xf]
        %v1035 = vld [vmem:[#allocation7 + $0x84] sm:$0xff]
        %v1036 = vld [vmem:[#allocation7 + $0x8c] sm:$0xf]
        %v1037 = vld [vmem:[#allocation7 + $0x90] sm:$0xff]
        %v1038 = vld [vmem:[#allocation7 + $0x98] sm:$0xf]
        %v1039 = vld [vmem:[#allocation7 + $0x9c] sm:$0xff]
        %v1040 = vld [vmem:[#allocation7 + $0xa4] sm:$0xf]
        %v1041 = vld [vmem:[#allocation7 + $0xa8] sm:$0xff]
        %v1042 = vld [vmem:[#allocation7 + $0xb0] sm:$0xf]
        %v1043 = vld [vmem:[#allocation7 + $0xb4] sm:$0xff]
        %v1044 = vld [vmem:[#allocation7 + $0xbc] sm:$0xf]
        %v1077 = vunpack.c.l.b16 %v1013
        %v1078 = vunpack.c.h.b16 %v1013
        %v1079 = vunpack.c.l.b16 %v1014
        %v1080 = vunpack.c.l.b16 %v1015
        %v1081 = vunpack.c.h.b16 %v1015
        %v1082 = vunpack.c.l.b16 %v1016
        %v1083 = vunpack.c.l.b16 %v1017
        %v1084 = vunpack.c.h.b16 %v1017
        %v1085 = vunpack.c.l.b16 %v1018
        %v1086 = vunpack.c.l.b16 %v1019
        %v1087 = vunpack.c.h.b16 %v1019
        %v1088 = vunpack.c.l.b16 %v1020
        %v1089 = vunpack.c.l.b16 %v1021
        %v1090 = vunpack.c.h.b16 %v1021
        %v1091 = vunpack.c.l.b16 %v1022
        %v1092 = vunpack.c.l.b16 %v1023
        %v1093 = vunpack.c.h.b16 %v1023
        %v1094 = vunpack.c.l.b16 %v1024
        %v1095 = vunpack.c.l.b16 %v1025
        %v1096 = vunpack.c.h.b16 %v1025
        %v1097 = vunpack.c.l.b16 %v1026
        %v1098 = vunpack.c.l.b16 %v1027
        %v1099 = vunpack.c.h.b16 %v1027
        %v1100 = vunpack.c.l.b16 %v1028
        %v1101 = vunpack.c.l.b16 %v1029
        %v1102 = vunpack.c.h.b16 %v1029
        %v1103 = vunpack.c.l.b16 %v1030
        %v1104 = vunpack.c.l.b16 %v1031
        %v1105 = vunpack.c.h.b16 %v1031
        %v1106 = vunpack.c.l.b16 %v1032
        %v1107 = vunpack.c.l.b16 %v1033
        %v1108 = vunpack.c.h.b16 %v1033
        %v1109 = vunpack.c.l.b16 %v1034
        %v1110 = vunpack.c.l.b16 %v1035
        %v1111 = vunpack.c.h.b16 %v1035
        %v1112 = vunpack.c.l.b16 %v1036
        %v1113 = vunpack.c.l.b16 %v1037
        %v1114 = vunpack.c.h.b16 %v1037
        %v1115 = vunpack.c.l.b16 %v1038
        %v1116 = vunpack.c.l.b16 %v1039
        %v1117 = vunpack.c.h.b16 %v1039
        %v1118 = vunpack.c.l.b16 %v1040
        %v1119 = vunpack.c.l.b16 %v1041
        %v1120 = vunpack.c.h.b16 %v1041
        %v1121 = vunpack.c.l.b16 %v1042
        %v1122 = vunpack.c.l.b16 %v1043
        %v1123 = vunpack.c.h.b16 %v1043
        %v1124 = vunpack.c.l.b16 %v1044
        %v1125 = vpack.c.b16 %v1080, %v1077
        %v1126 = vpack.c.b16 %v1081, %v1078
        %v1127 = vpack.c.b16 %v1082, %v1079
        %v1128 = vpack.c.b16 %v1086, %v1083
        %v1129 = vpack.c.b16 %v1087, %v1084
        %v1130 = vpack.c.b16 %v1088, %v1085
        %v1131 = vpack.c.b16 %v1092, %v1089
        %v1132 = vpack.c.b16 %v1093, %v1090
        %v1133 = vpack.c.b16 %v1094, %v1091
        %v1134 = vpack.c.b16 %v1098, %v1095
        %v1135 = vpack.c.b16 %v1099, %v1096
        %v1136 = vpack.c.b16 %v1100, %v1097
        %v1137 = vpack.c.b16 %v1104, %v1101
        %v1138 = vpack.c.b16 %v1105, %v1102
        %v1139 = vpack.c.b16 %v1106, %v1103
        %v1140 = vpack.c.b16 %v1110, %v1107
        %v1141 = vpack.c.b16 %v1111, %v1108
        %v1142 = vpack.c.b16 %v1112, %v1109
        %v1143 = vpack.c.b16 %v1116, %v1113
        %v1144 = vpack.c.b16 %v1117, %v1114
        %v1145 = vpack.c.b16 %v1118, %v1115
        %v1146 = vpack.c.b16 %v1122, %v1119
        %v1147 = vpack.c.b16 %v1123, %v1120
        %v1148 = vpack.c.b16 %v1124, %v1121
        %1173 = vmatpush.bf16.msra.mxu0 %v1146
        %1174 = vmatpush.bf16.msra.mxu0 %v1143
        %1175 = vmatpush.bf16.msra.mxu0 %v1140
        %1176 = vmatpush.bf16.msra.mxu0 %v1137
        %1177 = vmatpush.bf16.msra.mxu0 %v1134
        %1178 = vmatpush.bf16.msra.mxu0 %v1131
        %1179 = vmatpush.bf16.msra.mxu0 %v1128
        %1180 = vmatpush.bf16.msra.mxu0 %v1125
        %1181 = vmatmul.bf16.gmra.mxu0 %v1005
        %v1182 = vpop.f32.mrf.mxu0
        %v1183 = vadd.f32 0.0, %v1182
        %v1184 = vpop.f32.mrf.mxu0
        %v1185 = vadd.f32 0.0, %v1184
        %1186 = vmatmul.bf16.gmra.mxu0 %v1006
        %v1187 = vpop.f32.mrf.mxu0
        %v1188 = vadd.f32 0.0, %v1187
        %v1189 = vpop.f32.mrf.mxu0
        %v1190 = vadd.f32 0.0, %v1189
        %1191 = vmatmul.bf16.gmra.mxu0 %v1007
        %v1192 = vpop.f32.mrf.mxu0
        %v1193 = vadd.f32 0.0, %v1192
        %v1194 = vpop.f32.mrf.mxu0
        %v1195 = vadd.f32 0.0, %v1194
        %1196 = vmatmul.bf16.gmra.mxu0 %v1008
        %v1197 = vpop.f32.mrf.mxu0
        %v1198 = vadd.f32 0.0, %v1197
        %v1199 = vpop.f32.mrf.mxu0
        %v1200 = vadd.f32 0.0, %v1199
        %1201 = vmatmul.bf16.gmra.mxu0 %v1009
        %v1202 = vpop.f32.mrf.mxu0
        %v1203 = vadd.f32 0.0, %v1202
        %v1204 = vpop.f32.mrf.mxu0
        %v1205 = vadd.f32 0.0, %v1204
        %1206 = vmatmul.bf16.gmra.mxu0 %v1010
        %v1207 = vpop.f32.mrf.mxu0
        %v1208 = vadd.f32 0.0, %v1207
        %v1209 = vpop.f32.mrf.mxu0
        %v1210 = vadd.f32 0.0, %v1209
        %1211 = vmatmul.bf16.gmra.mxu0 %v1011
        %v1212 = vpop.f32.mrf.mxu0
        %v1213 = vadd.f32 0.0, %v1212
        %v1214 = vpop.f32.mrf.mxu0
        %v1215 = vadd.f32 0.0, %v1214
        %1216 = vmatmul.bf16.gmra.mxu0 %v1012
        %v1217 = vpop.f32.mrf.mxu0
        %v1218 = vadd.f32 0.0, %v1217
        %v1219 = vpop.f32.mrf.mxu0
        %v1220 = vadd.f32 0.0, %v1219
        %1221 = vdwg.mxu0
        %1222 = vmatpush.bf16.msra.mxu0 %v1147
        %1223 = vmatpush.bf16.msra.mxu0 %v1144
        %1224 = vmatpush.bf16.msra.mxu0 %v1141
        %1225 = vmatpush.bf16.msra.mxu0 %v1138
        %1226 = vmatpush.bf16.msra.mxu0 %v1135
        %1227 = vmatpush.bf16.msra.mxu0 %v1132
        %1228 = vmatpush.bf16.msra.mxu0 %v1129
        %1229 = vmatpush.bf16.msra.mxu0 %v1126
        %1230 = vmatmul.bf16.gmra.mxu0 %v1005
        %v1231 = vpop.f32.mrf.mxu0
        %v1232 = vadd.f32 0.0, %v1231
        %v1233 = vpop.f32.mrf.mxu0
        %v1234 = vadd.f32 0.0, %v1233
        %1235 = vmatmul.bf16.gmra.mxu0 %v1006
        %v1236 = vpop.f32.mrf.mxu0
        %v1237 = vadd.f32 0.0, %v1236
        %v1238 = vpop.f32.mrf.mxu0
        %v1239 = vadd.f32 0.0, %v1238
        %1240 = vmatmul.bf16.gmra.mxu0 %v1007
        %v1241 = vpop.f32.mrf.mxu0
        %v1242 = vadd.f32 0.0, %v1241
        %v1243 = vpop.f32.mrf.mxu0
        %v1244 = vadd.f32 0.0, %v1243
        %1245 = vmatmul.bf16.gmra.mxu0 %v1008
        %v1246 = vpop.f32.mrf.mxu0
        %v1247 = vadd.f32 0.0, %v1246
        %v1248 = vpop.f32.mrf.mxu0
        %v1249 = vadd.f32 0.0, %v1248
        %1250 = vmatmul.bf16.gmra.mxu0 %v1009
        %v1251 = vpop.f32.mrf.mxu0
        %v1252 = vadd.f32 0.0, %v1251
        %v1253 = vpop.f32.mrf.mxu0
        %v1254 = vadd.f32 0.0, %v1253
        %1255 = vmatmul.bf16.gmra.mxu0 %v1010
        %v1256 = vpop.f32.mrf.mxu0
        %v1257 = vadd.f32 0.0, %v1256
        %v1258 = vpop.f32.mrf.mxu0
        %v1259 = vadd.f32 0.0, %v1258
        %1260 = vmatmul.bf16.gmra.mxu0 %v1011
        %v1261 = vpop.f32.mrf.mxu0
        %v1262 = vadd.f32 0.0, %v1261
        %v1263 = vpop.f32.mrf.mxu0
        %v1264 = vadd.f32 0.0, %v1263
        %1265 = vmatmul.bf16.gmra.mxu0 %v1012
        %v1266 = vpop.f32.mrf.mxu0
        %v1267 = vadd.f32 0.0, %v1266
        %v1268 = vpop.f32.mrf.mxu0
        %v1269 = vadd.f32 0.0, %v1268
        %1270 = vdwg.mxu0
        %1271 = vmatpush.bf16.msra.mxu0 %v1148
        %1272 = vmatpush.bf16.msra.mxu0 %v1145
        %1273 = vmatpush.bf16.msra.mxu0 %v1142
        %1274 = vmatpush.bf16.msra.mxu0 %v1139
        %1275 = vmatpush.bf16.msra.mxu0 %v1136
        %1276 = vmatpush.bf16.msra.mxu0 %v1133
        %1277 = vmatpush.bf16.msra.mxu0 %v1130
        %1278 = vmatpush.bf16.msra.mxu0 %v1127
        %1279 = vmatmul.bf16.gmra.mxu0 %v1005
        %v1280 = vpop.f32.mrf.mxu0
        %v1281 = vadd.f32 0.0, %v1280
        %v1282 = vpop.f32.mrf.mxu0
        %v1283 = vadd.f32 0.0, %v1282
        %1284 = vmatmul.bf16.gmra.mxu0 %v1006
        %v1285 = vpop.f32.mrf.mxu0
        %v1286 = vadd.f32 0.0, %v1285
        %v1287 = vpop.f32.mrf.mxu0
        %v1288 = vadd.f32 0.0, %v1287
        %1289 = vmatmul.bf16.gmra.mxu0 %v1007
        %v1290 = vpop.f32.mrf.mxu0
        %v1291 = vadd.f32 0.0, %v1290
        %v1292 = vpop.f32.mrf.mxu0
        %v1293 = vadd.f32 0.0, %v1292
        %1294 = vmatmul.bf16.gmra.mxu0 %v1008
        %v1295 = vpop.f32.mrf.mxu0
        %v1296 = vadd.f32 0.0, %v1295
        %v1297 = vpop.f32.mrf.mxu0
        %v1298 = vadd.f32 0.0, %v1297
        %1299 = vmatmul.bf16.gmra.mxu0 %v1009
        %v1300 = vpop.f32.mrf.mxu0
        %v1301 = vadd.f32 0.0, %v1300
        %v1302 = vpop.f32.mrf.mxu0
        %v1303 = vadd.f32 0.0, %v1302
        %1304 = vmatmul.bf16.gmra.mxu0 %v1010
        %v1305 = vpop.f32.mrf.mxu0
        %v1306 = vadd.f32 0.0, %v1305
        %v1307 = vpop.f32.mrf.mxu0
        %v1308 = vadd.f32 0.0, %v1307
        %1309 = vmatmul.bf16.gmra.mxu0 %v1011
        %v1310 = vpop.f32.mrf.mxu0
        %v1311 = vadd.f32 0.0, %v1310
        %v1312 = vpop.f32.mrf.mxu0
        %v1313 = vadd.f32 0.0, %v1312
        %1314 = vmatmul.bf16.gmra.mxu0 %v1012
        %v1315 = vpop.f32.mrf.mxu0
        %v1316 = vadd.f32 0.0, %v1315
        %v1317 = vpop.f32.mrf.mxu0
        %v1318 = vadd.f32 0.0, %v1317
        %1319 = vdwg.mxu0
        %v1320 = vrot.slane %v1232, 7
        %v1321 = vrot.slane %v1234, 7
        %v1322 = vrot.slane %v1237, 7
        %v1323 = vrot.slane %v1239, 7
        %v1324 = vrot.slane %v1242, 7
        %v1325 = vrot.slane %v1244, 7
        %v1326 = vrot.slane %v1247, 7
        %v1327 = vrot.slane %v1249, 7
        %v1328 = vrot.slane %v1252, 7
        %v1329 = vrot.slane %v1254, 7
        %v1330 = vrot.slane %v1257, 7
        %v1331 = vrot.slane %v1259, 7
        %v1332 = vrot.slane %v1262, 7
        %v1333 = vrot.slane %v1264, 7
        %v1334 = vrot.slane %v1267, 7
        %v1335 = vrot.slane %v1269, 7
        %v1336 = vsel %vm857, %v1334, %v1335
        %v1337 = vsel %vm857, %v1333, %v1334
        %v1338 = vsel %vm857, %v1332, %v1333
        %v1339 = vsel %vm857, %v1331, %v1332
        %v1340 = vsel %vm857, %v1330, %v1331
        %v1341 = vsel %vm857, %v1329, %v1330
        %v1342 = vsel %vm857, %v1328, %v1329
        %v1343 = vsel %vm857, %v1327, %v1328
        %v1344 = vsel %vm857, %v1326, %v1327
        %v1345 = vsel %vm857, %v1325, %v1326
        %v1346 = vsel %vm857, %v1324, %v1325
        %v1347 = vsel %vm857, %v1323, %v1324
        %v1348 = vsel %vm857, %v1322, %v1323
        %v1349 = vsel %vm857, %v1321, %v1322
        %v1350 = vsel %vm857, %v1320, %v1321
        %v1351 = vsel %vm857, %v1335, %v1320
        %v1352 = vmul.f32 %v1351, %v379
        %v1353 = vmul.f32 %v1350, %v380
        %v1354 = vmul.f32 %v1349, %v379
        %v1355 = vmul.f32 %v1348, %v380
        %v1356 = vmul.f32 %v1347, %v379
        %v1357 = vmul.f32 %v1346, %v380
        %v1358 = vmul.f32 %v1345, %v379
        %v1359 = vmul.f32 %v1344, %v380
        %v1360 = vmul.f32 %v1343, %v379
        %v1361 = vmul.f32 %v1342, %v380
        %v1362 = vmul.f32 %v1341, %v379
        %v1363 = vmul.f32 %v1340, %v380
        %v1364 = vmul.f32 %v1339, %v379
        %v1365 = vmul.f32 %v1338, %v380
        %v1366 = vmul.f32 %v1337, %v379
        %v1367 = vmul.f32 %v1336, %v380
        %v1368 = vadd.f32 %v1183, %v1352
        %v1369 = vadd.f32 %v1185, %v1353
        %v1370 = vadd.f32 %v1188, %v1354
        %v1371 = vadd.f32 %v1190, %v1355
        %v1372 = vadd.f32 %v1193, %v1356
        %v1373 = vadd.f32 %v1195, %v1357
        %v1374 = vadd.f32 %v1198, %v1358
        %v1375 = vadd.f32 %v1200, %v1359
        %v1376 = vadd.f32 %v1203, %v1360
        %v1377 = vadd.f32 %v1205, %v1361
        %v1378 = vadd.f32 %v1208, %v1362
        %v1379 = vadd.f32 %v1210, %v1363
        %v1380 = vadd.f32 %v1213, %v1364
        %v1381 = vadd.f32 %v1215, %v1365
        %v1382 = vadd.f32 %v1218, %v1366
        %v1383 = vadd.f32 %v1220, %v1367
        %v1384 = vrot.slane %v1281, 1
        %v1385 = vrot.slane %v1283, 1
        %v1386 = vrot.slane %v1286, 1
        %v1387 = vrot.slane %v1288, 1
        %v1388 = vrot.slane %v1291, 1
        %v1389 = vrot.slane %v1293, 1
        %v1390 = vrot.slane %v1296, 1
        %v1391 = vrot.slane %v1298, 1
        %v1392 = vrot.slane %v1301, 1
        %v1393 = vrot.slane %v1303, 1
        %v1394 = vrot.slane %v1306, 1
        %v1395 = vrot.slane %v1308, 1
        %v1396 = vrot.slane %v1311, 1
        %v1397 = vrot.slane %v1313, 1
        %v1398 = vrot.slane %v1316, 1
        %v1399 = vrot.slane %v1318, 1
        %v1400 = vsel %vm922, %v1398, %v1399
        %v1401 = vsel %vm922, %v1397, %v1398
        %v1402 = vsel %vm922, %v1396, %v1397
        %v1403 = vsel %vm922, %v1395, %v1396
        %v1404 = vsel %vm922, %v1394, %v1395
        %v1405 = vsel %vm922, %v1393, %v1394
        %v1406 = vsel %vm922, %v1392, %v1393
        %v1407 = vsel %vm922, %v1391, %v1392
        %v1408 = vsel %vm922, %v1390, %v1391
        %v1409 = vsel %vm922, %v1389, %v1390
        %v1410 = vsel %vm922, %v1388, %v1389
        %v1411 = vsel %vm922, %v1387, %v1388
        %v1412 = vsel %vm922, %v1386, %v1387
        %v1413 = vsel %vm922, %v1385, %v1386
        %v1414 = vsel %vm922, %v1384, %v1385
        %v1415 = vsel %vm922, %v1399, %v1384
        %v1416 = vmul.f32 %v1414, %v385
        %v1417 = vmul.f32 %v1413, %v386
        %v1418 = vmul.f32 %v1412, %v385
        %v1419 = vmul.f32 %v1411, %v386
        %v1420 = vmul.f32 %v1410, %v385
        %v1421 = vmul.f32 %v1409, %v386
        %v1422 = vmul.f32 %v1408, %v385
        %v1423 = vmul.f32 %v1407, %v386
        %v1424 = vmul.f32 %v1406, %v385
        %v1425 = vmul.f32 %v1405, %v386
        %v1426 = vmul.f32 %v1404, %v385
        %v1427 = vmul.f32 %v1403, %v386
        %v1428 = vmul.f32 %v1402, %v385
        %v1429 = vmul.f32 %v1401, %v386
        %v1430 = vmul.f32 %v1400, %v385
        %v1431 = vmul.f32 %v1415, %v386
        %v1432 = vadd.f32 %v1368, %v1416
        %v1433 = vadd.f32 %v1369, %v1417
        %v1434 = vadd.f32 %v1370, %v1418
        %v1435 = vadd.f32 %v1371, %v1419
        %v1436 = vadd.f32 %v1372, %v1420
        %v1437 = vadd.f32 %v1373, %v1421
        %v1438 = vadd.f32 %v1374, %v1422
        %v1439 = vadd.f32 %v1375, %v1423
        %v1440 = vadd.f32 %v1376, %v1424
        %v1441 = vadd.f32 %v1377, %v1425
        %v1442 = vadd.f32 %v1378, %v1426
        %v1443 = vadd.f32 %v1379, %v1427
        %v1444 = vadd.f32 %v1380, %v1428
        %v1445 = vadd.f32 %v1381, %v1429
        %v1446 = vadd.f32 %v1382, %v1430
        %v1447 = vadd.f32 %v1383, %v1431
        %v1448 = vld [vmem:[#allocation11 + $0x1] sm:$0x1]
        %v1449 = vperm.slane %v1448, 0
        %v1450 = vadd.f32 %v1432, %v1449
        %v1451 = vadd.f32 %v1433, %v1449
        %v1452 = vadd.f32 %v1434, %v1449
        %v1453 = vadd.f32 %v1435, %v1449
        %v1454 = vadd.f32 %v1436, %v1449
        %v1455 = vadd.f32 %v1437, %v1449
        %v1456 = vadd.f32 %v1438, %v1449
        %v1457 = vadd.f32 %v1439, %v1449
        %v1458 = vadd.f32 %v1440, %v1449
        %v1459 = vadd.f32 %v1441, %v1449
        %v1460 = vadd.f32 %v1442, %v1449
        %v1461 = vadd.f32 %v1443, %v1449
        %v1462 = vadd.f32 %v1444, %v1449
        %v1463 = vadd.f32 %v1445, %v1449
        %v1464 = vadd.f32 %v1446, %v1449
        %v1465 = vadd.f32 %v1447, %v1449
        %v1466 = vadd.f32 %v1450, %v1451
        %v1467 = vrot.slane %v1466, 4
        %v1468 = vadd.f32 %v1466, %v1467
        %v1469 = vrot.slane %v1468, 2
        %v1470 = vadd.f32 %v1468, %v1469
        %v1471 = vrot.slane %v1470, 1
        %v1472 = vadd.f32 %v1470, %v1471
        %v1473 = vadd.f32 %v1452, %v1453
        %v1474 = vrot.slane %v1473, 4
        %v1475 = vadd.f32 %v1473, %v1474
        %v1476 = vrot.slane %v1475, 2
        %v1477 = vadd.f32 %v1475, %v1476
        %v1478 = vrot.slane %v1477, 1
        %v1479 = vadd.f32 %v1477, %v1478
        %v1480 = vadd.f32 %v1454, %v1455
        %v1481 = vrot.slane %v1480, 4
        %v1482 = vadd.f32 %v1480, %v1481
        %v1483 = vrot.slane %v1482, 2
        %v1484 = vadd.f32 %v1482, %v1483
        %v1485 = vrot.slane %v1484, 1
        %v1486 = vadd.f32 %v1484, %v1485
        %v1487 = vadd.f32 %v1456, %v1457
        %v1488 = vrot.slane %v1487, 4
        %v1489 = vadd.f32 %v1487, %v1488
        %v1490 = vrot.slane %v1489, 2
        %v1491 = vadd.f32 %v1489, %v1490
        %v1492 = vrot.slane %v1491, 1
        %v1493 = vadd.f32 %v1491, %v1492
        %v1494 = vadd.f32 %v1458, %v1459
        %v1495 = vrot.slane %v1494, 4
        %v1496 = vadd.f32 %v1494, %v1495
        %v1497 = vrot.slane %v1496, 2
        %v1498 = vadd.f32 %v1496, %v1497
        %v1499 = vrot.slane %v1498, 1
        %v1500 = vadd.f32 %v1498, %v1499
        %v1501 = vadd.f32 %v1460, %v1461
        %v1502 = vrot.slane %v1501, 4
        %v1503 = vadd.f32 %v1501, %v1502
        %v1504 = vrot.slane %v1503, 2
        %v1505 = vadd.f32 %v1503, %v1504
        %v1506 = vrot.slane %v1505, 1
        %v1507 = vadd.f32 %v1505, %v1506
        %v1508 = vadd.f32 %v1462, %v1463
        %v1509 = vrot.slane %v1508, 4
        %v1510 = vadd.f32 %v1508, %v1509
        %v1511 = vrot.slane %v1510, 2
        %v1512 = vadd.f32 %v1510, %v1511
        %v1513 = vrot.slane %v1512, 1
        %v1514 = vadd.f32 %v1512, %v1513
        %v1515 = vadd.f32 %v1464, %v1465
        %v1516 = vrot.slane %v1515, 4
        %v1517 = vadd.f32 %v1515, %v1516
        %v1518 = vrot.slane %v1517, 2
        %v1519 = vadd.f32 %v1517, %v1518
        %v1520 = vrot.slane %v1519, 1
        %v1521 = vadd.f32 %v1519, %v1520
        %v1522 = vrcp.pop 16.0
        %v1523 = vmul.f32 16.0, %v1522
        %v1524 = vsub.f32 1.0, %v1523
        %v1525 = vmul.f32 %v1522, %v1524
        %v1526 = vadd.f32 %v1522, %v1525
        %vm1527 = vweird.f32 %v1522
        %v1528 = vsel %vm1527, %v1522, %v1526
        %v1529 = vmul.f32 %v1472, %v1528
        %v1530 = vmul.f32 %v1479, %v1528
        %v1531 = vmul.f32 %v1486, %v1528
        %v1532 = vmul.f32 %v1493, %v1528
        %v1533 = vmul.f32 %v1500, %v1528
        %v1534 = vmul.f32 %v1507, %v1528
        %v1535 = vmul.f32 %v1514, %v1528
        %v1536 = vmul.f32 %v1521, %v1528
        %v1537 = vpack.c.bf16 %v1529, %v1529
        %v1538 = vpack.c.bf16 %v1530, %v1530
        %v1539 = vpack.c.bf16 %v1531, %v1531
        %v1540 = vpack.c.bf16 %v1532, %v1532
        %v1541 = vpack.c.bf16 %v1533, %v1533
        %v1542 = vpack.c.bf16 %v1534, %v1534
        %v1543 = vpack.c.bf16 %v1535, %v1535
        %v1544 = vpack.c.bf16 %v1536, %v1536
        %v1545 = vld [vmem:[#allocation8] sm:$0xf]
        %v1546 = vld [vmem:[#allocation8 + $0x4] sm:$0xf]
        %v1547 = vld [vmem:[#allocation8 + $0x8] sm:$0xf]
        %v1548 = vld [vmem:[#allocation8 + $0xc] sm:$0xf]
        %v1549 = vld [vmem:[#allocation8 + $0x10] sm:$0xf]
        %v1550 = vld [vmem:[#allocation8 + $0x14] sm:$0xf]
        %v1551 = vld [vmem:[#allocation8 + $0x18] sm:$0xf]
        %v1552 = vld [vmem:[#allocation8 + $0x1c] sm:$0xf]
        %v1553 = vld [vmem:[#allocation8 + $0x20] sm:$0xf]
        %v1554 = vld [vmem:[#allocation8 + $0x24] sm:$0xf]
        %v1555 = vld [vmem:[#allocation8 + $0x28] sm:$0xf]
        %v1556 = vld [vmem:[#allocation8 + $0x2c] sm:$0xf]
        %v1557 = vld [vmem:[#allocation8 + $0x30] sm:$0xf]
        %v1558 = vld [vmem:[#allocation8 + $0x34] sm:$0xf]
        %v1559 = vld [vmem:[#allocation8 + $0x38] sm:$0xf]
        %v1560 = vld [vmem:[#allocation8 + $0x3c] sm:$0xf]
        %v1561 = vld [vmem:[#allocation11 + $0x3] sm:$0x1]
        %v1562 = vperm.slane %v1561, 0
        %v1571 = vunpack.c.l.b16 %v1537
        %v1572 = vunpack.c.l.b16 %v1538
        %v1573 = vunpack.c.l.b16 %v1539
        %v1574 = vunpack.c.l.b16 %v1540
        %v1575 = vunpack.c.l.b16 %v1541
        %v1576 = vunpack.c.l.b16 %v1542
        %v1577 = vunpack.c.l.b16 %v1543
        %v1578 = vunpack.c.l.b16 %v1544
        %vm1579 = vcmask 1041409
        %v1580 = vsel %vm1579, %v1572, %v1571
        %vm1581 = vcmask 1042434
        %v1582 = vsel %vm1581, %v1573, %v1580
        %vm1583 = vcmask 1043459
        %v1584 = vsel %vm1583, %v1574, %v1582
        %vm1585 = vcmask 1044484
        %v1586 = vsel %vm1585, %v1575, %v1584
        %vm1587 = vcmask 1045509
        %v1588 = vsel %vm1587, %v1576, %v1586
        %vm1589 = vcmask 1046534
        %v1590 = vsel %vm1589, %v1577, %v1588
        %vm1591 = vcmask 1047559
        %v1592 = vsel %vm1591, %v1578, %v1590
        %v1593 = vpack.c.b16 %v1592, %v1592
        %v1611 = vunpack.c.l.b16 %v1545
        %v1612 = vunpack.c.l.b16 %v1546
        %v1613 = vunpack.c.l.b16 %v1547
        %v1614 = vunpack.c.l.b16 %v1548
        %v1615 = vunpack.c.l.b16 %v1549
        %v1616 = vunpack.c.l.b16 %v1550
        %v1617 = vunpack.c.l.b16 %v1551
        %v1618 = vunpack.c.l.b16 %v1552
        %v1619 = vunpack.c.l.b16 %v1553
        %v1620 = vunpack.c.l.b16 %v1554
        %v1621 = vunpack.c.l.b16 %v1555
        %v1622 = vunpack.c.l.b16 %v1556
        %v1623 = vunpack.c.l.b16 %v1557
        %v1624 = vunpack.c.l.b16 %v1558
        %v1625 = vunpack.c.l.b16 %v1559
        %v1626 = vunpack.c.l.b16 %v1560
        %v1627 = vpack.c.b16 %v1612, %v1611
        %v1628 = vpack.c.b16 %v1614, %v1613
        %v1629 = vpack.c.b16 %v1616, %v1615
        %v1630 = vpack.c.b16 %v1618, %v1617
        %v1631 = vpack.c.b16 %v1620, %v1619
        %v1632 = vpack.c.b16 %v1622, %v1621
        %v1633 = vpack.c.b16 %v1624, %v1623
        %v1634 = vpack.c.b16 %v1626, %v1625
        %1643 = vmatpush.bf16.msra.mxu0 %v1634
        %1644 = vmatpush.bf16.msra.mxu0 %v1633
        %1645 = vmatpush.bf16.msra.mxu0 %v1632
        %1646 = vmatpush.bf16.msra.mxu0 %v1631
        %1647 = vmatpush.bf16.msra.mxu0 %v1630
        %1648 = vmatpush.bf16.msra.mxu0 %v1629
        %1649 = vmatpush.bf16.msra.mxu0 %v1628
        %1650 = vmatpush.bf16.msra.mxu0 %v1627
        %1651 = vmatmul.bf16.gmra.mxu0 %v1593
        %v1652 = vpop.f32.mrf.mxu0
        %v1653 = vadd.f32 %v1562, %v1652
        %v1654 = vpop.f32.mrf.mxu0
        %1655 = vdwg.mxu0
        %v1656 = vmax.f32 %v1653, 0.0
        %v1657 = vpack.c.bf16 %v1656, %v1656
        %v1658 = vld [vmem:[#allocation10] sm:$0xf]
        %v1659 = vld [vmem:[#allocation10 + $0x4] sm:$0xf]
        %v1660 = vld [vmem:[#allocation10 + $0x8] sm:$0xf]
        %v1661 = vld [vmem:[#allocation10 + $0xc] sm:$0xf]
        %v1662 = vld [vmem:[#allocation10 + $0x10] sm:$0xf]
        %v1663 = vld [vmem:[#allocation10 + $0x14] sm:$0xf]
        %v1664 = vld [vmem:[#allocation10 + $0x18] sm:$0xf]
        %v1665 = vld [vmem:[#allocation10 + $0x1c] sm:$0xf]
        %v1666 = vld [vmem:[#allocation10 + $0x20] sm:$0xf]
        %v1667 = vld [vmem:[#allocation10 + $0x24] sm:$0xf]
        %v1668 = vld [vmem:[#allocation10 + $0x28] sm:$0xf]
        %v1669 = vld [vmem:[#allocation10 + $0x2c] sm:$0xf]
        %v1670 = vld [vmem:[#allocation10 + $0x30] sm:$0xf]
        %v1671 = vld [vmem:[#allocation10 + $0x34] sm:$0xf]
        %v1672 = vld [vmem:[#allocation10 + $0x38] sm:$0xf]
        %v1673 = vld [vmem:[#allocation10 + $0x3c] sm:$0xf]
        %v1674 = vld [vmem:[#allocation11 + $0x4] sm:$0x1]
        %v1675 = vperm.slane %v1674, 0
        %v1692 = vunpack.c.l.b16 %v1658
        %v1693 = vunpack.c.l.b16 %v1659
        %v1694 = vunpack.c.l.b16 %v1660
        %v1695 = vunpack.c.l.b16 %v1661
        %v1696 = vunpack.c.l.b16 %v1662
        %v1697 = vunpack.c.l.b16 %v1663
        %v1698 = vunpack.c.l.b16 %v1664
        %v1699 = vunpack.c.l.b16 %v1665
        %v1700 = vunpack.c.l.b16 %v1666
        %v1701 = vunpack.c.l.b16 %v1667
        %v1702 = vunpack.c.l.b16 %v1668
        %v1703 = vunpack.c.l.b16 %v1669
        %v1704 = vunpack.c.l.b16 %v1670
        %v1705 = vunpack.c.l.b16 %v1671
        %v1706 = vunpack.c.l.b16 %v1672
        %v1707 = vunpack.c.l.b16 %v1673
        %v1708 = vpack.c.b16 %v1693, %v1692
        %v1709 = vpack.c.b16 %v1695, %v1694
        %v1710 = vpack.c.b16 %v1697, %v1696
        %v1711 = vpack.c.b16 %v1699, %v1698
        %v1712 = vpack.c.b16 %v1701, %v1700
        %v1713 = vpack.c.b16 %v1703, %v1702
        %v1714 = vpack.c.b16 %v1705, %v1704
        %v1715 = vpack.c.b16 %v1707, %v1706
        %1724 = vmatpush.bf16.msra.mxu0 %v1715
        %1725 = vmatpush.bf16.msra.mxu0 %v1714
        %1726 = vmatpush.bf16.msra.mxu0 %v1713
        %1727 = vmatpush.bf16.msra.mxu0 %v1712
        %1728 = vmatpush.bf16.msra.mxu0 %v1711
        %1729 = vmatpush.bf16.msra.mxu0 %v1710
        %1730 = vmatpush.bf16.msra.mxu0 %v1709
        %1731 = vmatpush.bf16.msra.mxu0 %v1708
        %1732 = vmatmul.bf16.gmra.mxu0 %v1657
        %v1733 = vpop.f32.mrf.mxu0
        %v1734 = vadd.f32 %v1675, %v1733
        %v1735 = vpop.f32.mrf.mxu0
        %1736 = vdwg.mxu0
        %v1737 = vxor.u32 %v1734, 2147483648
        %v1738 = vmul.f32 %v1737, 1.442695
        %v1739 = vpow.pop %v1738
        %v1740 = vadd.f32 %v1739, 1.0
        %v1741 = vrcp.pop %v1740
        %v1742 = vmul.f32 %v1740, %v1741
        %v1743 = vsub.f32 1.0, %v1742
        %v1744 = vmul.f32 %v1741, %v1743
        %v1745 = vadd.f32 %v1741, %v1744
        %vm1746 = vweird.f32 %v1740
        %vm1747 = vweird.f32 %v1741
        %vm1748 = vmor %vm1746, %vm1747
        %v1749 = vsel %vm1748, %v1741, %v1745
        %v1750 = vand.u32 2147483647, %v1740
        %vm1751 = vcmp.eq.f32.partialorder %v1750, 8.507059e+37
        %v1752 = vand.u32 %v1740, 2147483648
        %v1753 = vor.u32 1.1754944e-38, %v1752
        %v1754 = vsel %vm1751, %v1753, %v1749
        %v1755 = vmul.f32 1.0, %v1754
        %v1757 = vrot.slane %v1755, 1
        %v1758 = vrot.slane %v1755, 2
        %v1759 = vrot.slane %v1755, 3
        %v1760 = vrot.slane %v1755, 4
        %v1761 = vrot.slane %v1755, 5
        %v1762 = vrot.slane %v1755, 6
        %v1763 = vrot.slane %v1755, 7
        %v1764 = vperm.slane %v1755, 0
        %v1765 = vperm.slane %v1757, 0
        %v1766 = vperm.slane %v1758, 0
        %v1767 = vperm.slane %v1759, 0
        %v1768 = vperm.slane %v1760, 0
        %v1769 = vperm.slane %v1761, 0
        %v1770 = vperm.slane %v1762, 0
        %v1771 = vperm.slane %v1763, 0
        %v1780 = vmul.f32 %v1450, %v1764
        %v1781 = vmul.f32 %v1451, %v1764
        %v1782 = vmul.f32 %v1452, %v1765
        %v1783 = vmul.f32 %v1453, %v1765
        %v1784 = vmul.f32 %v1454, %v1766
        %v1785 = vmul.f32 %v1455, %v1766
        %v1786 = vmul.f32 %v1456, %v1767
        %v1787 = vmul.f32 %v1457, %v1767
        %v1788 = vmul.f32 %v1458, %v1768
        %v1789 = vmul.f32 %v1459, %v1768
        %v1790 = vmul.f32 %v1460, %v1769
        %v1791 = vmul.f32 %v1461, %v1769
        %v1792 = vmul.f32 %v1462, %v1770
        %v1793 = vmul.f32 %v1463, %v1770
        %v1794 = vmul.f32 %v1464, %v1771
        %v1795 = vmul.f32 %v1465, %v1771
        %v1796 = vadd.f32 %v1780, %v825
        %v1797 = vadd.f32 %v1781, %v826
        %v1798 = vadd.f32 %v1782, %v827
        %v1799 = vadd.f32 %v1783, %v828
        %v1800 = vadd.f32 %v1784, %v829
        %v1801 = vadd.f32 %v1785, %v830
        %v1802 = vadd.f32 %v1786, %v831
        %v1803 = vadd.f32 %v1787, %v832
        %v1804 = vadd.f32 %v1788, %v833
        %v1805 = vadd.f32 %v1789, %v834
        %v1806 = vadd.f32 %v1790, %v835
        %v1807 = vadd.f32 %v1791, %v836
        %v1808 = vadd.f32 %v1792, %v837
        %v1809 = vadd.f32 %v1793, %v838
        %v1810 = vadd.f32 %v1794, %v839
        %v1811 = vadd.f32 %v1795, %v840
        %v1812 = vmax.f32 %v1796, 0.0
        %v1813 = vmax.f32 %v1797, 0.0
        %v1814 = vmax.f32 %v1798, 0.0
        %v1815 = vmax.f32 %v1799, 0.0
        %v1816 = vmax.f32 %v1800, 0.0
        %v1817 = vmax.f32 %v1801, 0.0
        %v1818 = vmax.f32 %v1802, 0.0
        %v1819 = vmax.f32 %v1803, 0.0
        %v1820 = vmax.f32 %v1804, 0.0
        %v1821 = vmax.f32 %v1805, 0.0
        %v1822 = vmax.f32 %v1806, 0.0
        %v1823 = vmax.f32 %v1807, 0.0
        %v1824 = vmax.f32 %v1808, 0.0
        %v1825 = vmax.f32 %v1809, 0.0
        %v1826 = vmax.f32 %v1810, 0.0
        %v1827 = vmax.f32 %v1811, 0.0
        %1828 = vst [vmem:[%s353] sm:$0xff] %v1812
        %1829 = vst [vmem:[%s353 + $0x8] sm:$0xff] %v1813
        %1830 = vst [vmem:[%s353 + $0x10] sm:$0xff] %v1814
        %1831 = vst [vmem:[%s353 + $0x18] sm:$0xff] %v1815
        %1832 = vst [vmem:[%s353 + $0x20] sm:$0xff] %v1816
        %1833 = vst [vmem:[%s353 + $0x28] sm:$0xff] %v1817
        %1834 = vst [vmem:[%s353 + $0x30] sm:$0xff] %v1818
        %1835 = vst [vmem:[%s353 + $0x38] sm:$0xff] %v1819
        %1836 = vst [vmem:[%s353 + $0x40] sm:$0xff] %v1820
        %1837 = vst [vmem:[%s353 + $0x48] sm:$0xff] %v1821
        %1838 = vst [vmem:[%s353 + $0x50] sm:$0xff] %v1822
        %1839 = vst [vmem:[%s353 + $0x58] sm:$0xff] %v1823
        %1840 = vst [vmem:[%s353 + $0x60] sm:$0xff] %v1824
        %1841 = vst [vmem:[%s353 + $0x68] sm:$0xff] %v1825
        %1842 = vst [vmem:[%s353 + $0x70] sm:$0xff] %v1826
        %1843 = vst [vmem:[%s353 + $0x78] sm:$0xff] %v1827
        %s1844 = sand.u32 %s165, 1
        %s1845 = scalar_lea.sflag [#allocation4], %s1844
        %s1846 = sand.u32 %s165, 1
        %s1847 = smul.addr %s1846, 128
        %s1848 = scalar_lea.vmem [#allocation13], %s1847
        // Predicated region
        $region69: #{tpu_custom_call.1} parent=43 // pred_check
          %p1849 = pneg %p175
        $region70: #{tpu_custom_call.1} parent=43 // pred_check_branch
          %1851 = sbr.rel (%p1849) target = $region72
        $region71: #{tpu_custom_call.1} parent=43 // pred_region
          %s1852 = smul.u32 8, %s26
          %1854 = vsyncadd %s1845, 0
          %s1855 = smul.addr %s1852, 2
          %s1856 = smul.addr %s1855, 8
          %s1857 = scalar_lea.hbm %s6, %s1856
          %s1858 = sshll.u32 %s1848, 4
          %s1859 = int_to_ptr.vmem [resolvable:$true] %s1858
          %s1860 = sshll.u32 %s1857, 4
          %s1861 = int_to_ptr.hbm [resolvable:$true] %s1860
          %1866 = dma.vmem_to_hbm [thread:$0]  %s1859, 2048, %s1861, %s1845, 128, 128, 8
        $region72: #{tpu_custom_call.1} parent=43 // pred_fallthru
          _
      $region44: #{tpu_custom_call.1} parent=5 // pred_fallthru
        _
      %p1867 = scmp.le.s32.totalorder 2, %s21
      // Predicated region
      $region73: #{tpu_custom_call.1} parent=5 // pred_check
        %p1868 = pneg %p1867
      $region74: #{tpu_custom_call.1} parent=5 // pred_check_branch
        %1870 = sbr.rel (%p1868) target = $region76
      $region75: #{tpu_custom_call.1} parent=5 // pred_region
        %s1871 = ssub.s32 %s21, 2
        // Predicated region
        $region77: #{tpu_custom_call.1} parent=75 // pred_check
          %p1872 = pneg %p181
        $region78: #{tpu_custom_call.1} parent=75 // pred_check_branch
          %1874 = sbr.rel (%p1872) target = $region80
        $region79: #{tpu_custom_call.1} parent=75 // pred_region
          %s1875 = sand.u32 %s166, 1
          %s1876 = scalar_lea.sflag [#allocation4], %s1875
          %s1877 = sand.u32 %s166, 1
          %s1878 = smul.addr %s1877, 128
          %s1879 = scalar_lea.vmem [#allocation13], %s1878
          %1881 = dma.done %s1876, 2048
        $region80: #{tpu_custom_call.1} parent=75 // pred_fallthru
          _
      $region76: #{tpu_custom_call.1} parent=5 // pred_fallthru
        _
    $region6: #{tpu_custom_call.1} parent=1 // loop_footer
      %s25 = sadd.s32 1, %s21
    $region7: #{tpu_custom_call.1} parent=1 // loop_footer_branch
      %20 = sbr.rel target = $region3
    $region8: #{tpu_custom_call.1} parent=1 // loop_exit
      _
    %1882 = vsyncpa [#allocation3], 1
    %s1883 = scalar_lea.sflag [#allocation3], 1
    %1884 = vsyncpa %s1883, 1
    %1885 = vsyncpa [#allocation6], 1
    %1886 = vsyncpa [#allocation9], 1
    %1887 = vsyncpa [#allocation12], 1
    %1888 = vsyncpa [#allocation4], 1
    %s1889 = scalar_lea.sflag [#allocation4], 1
    %1890 = vsyncpa %s1889, 1

// kernel: tpu_custom_call.1
$region0: #{tpu_custom_call.1}
  #allocation0 [shape = 'u32[]', space=smem, size = 0x4, offset = 0x4, fixed_abs, tag = 'smem constant byte address 0x4 - core index']
  #allocation1 [shape = 'u32[72,128]{1,0:T(1,128)}', space=vmem, size = 0x9000, scoped, tag = 'internal scratch']
  %s0 = inlined_call_operand.hbm [shape: bf16[16,16,128], index: 0, kind: input, shape index: {}]
  %s1 = inlined_call_operand.hbm [shape: bf16[128,512], index: 1, kind: input, shape index: {}]
  %s2 = inlined_call_operand.hbm [shape: bf16[128,384], index: 2, kind: input, shape index: {}]
  %s3 = inlined_call_operand.hbm [shape: bf16[128,128], index: 3, kind: input, shape index: {}]
  %s4 = inlined_call_operand.hbm [shape: bf16[128,128], index: 4, kind: input, shape index: {}]
  %s5 = inlined_call_operand.hbm [shape: f32[8,128], index: 5, kind: input, shape index: {}]
  %s6 = inlined_call_operand.hbm [shape: f32[16,16,128], index: 6, kind: output, shape index: {}]
  %s7 = sld [smem:[#allocation0]]
  $region81: #{tpu_custom_call.1} parent=0
    _
  %s9 = ssub.s32 1, %s7
  %s10 = scalar_select 0, %s9, %s7
  $region1: #{tpu_custom_call.1} parent=0
    #allocation2 [shape = 'u8[65536]{0}', space=vmem, size = 0x10000, scoped, tag = 'input window, operand 0']
    #allocation3 [shape = 's32[2]{0}', space=sflag, size = 0x8, scoped, tag = 'scoped memory for tpu_custom_call.1']
    #allocation4 [shape = 's32[2]{0}', space=sflag, size = 0x8, scoped, tag = 'scoped memory for tpu_custom_call.1']
    #allocation5 [shape = 'u8[131072]{0}', space=vmem, size = 0x20000, scoped, tag = 'input window, operand 1, single buffered']
    #allocation6 [shape = 's32[1]{0}', space=sflag, size = 0x4, scoped, tag = 'scoped memory for tpu_custom_call.1']
    #allocation7 [shape = 'u8[98304]{0}', space=vmem, size = 0x18000, scoped, tag = 'input window, operand 2, single buffered']
    #allocation8 [shape = 'u8[32768]{0}', space=vmem, size = 0x8000, scoped, tag = 'input window, operand 3, single buffered']
    #allocation9 [shape = 's32[1]{0}', space=sflag, size = 0x4, scoped, tag = 'scoped memory for tpu_custom_call.1']
    #allocation10 [shape = 'u8[32768]{0}', space=vmem, size = 0x8000, scoped, tag = 'input window, operand 4, single buffered']
    #allocation11 [shape = 'u8[4096]{0}', space=vmem, size = 0x1000, scoped, tag = 'input window, operand 5, single buffered']
    #allocation12 [shape = 's32[1]{0}', space=sflag, size = 0x4, scoped, tag = 'scoped memory for tpu_custom_call.1']
    #allocation13 [shape = 'u8[131072]{0}', space=vmem, size = 0x20000, scoped, tag = 'output window, operand 0']
    %11 = vsyncpa [#allocation3], 0
    %s12 = scalar_lea.sflag [#allocation3], 1
    %13 = vsyncpa %s12, 0
    %14 = vsyncpa [#allocation6], 0
    %15 = vsyncpa [#allocation9], 0
    %16 = vsyncpa [#allocation12], 0
    %17 = vsyncpa [#allocation4], 0
    %s18 = scalar_lea.sflag [#allocation4], 1
    %19 = vsyncpa %s18, 0
    loop: start=0, step=1, limit=4
    $region2: #{tpu_custom_call.1} parent=1 // loop_pre_header
      _
    $region3: #{tpu_custom_call.1} parent=1 // loop_header
      %s21 = sphi 0, %s25
      %p22 = scmp.ge.s32.totalorder %s21, 4
      %s31 = sphi 0, %s33
      %s34 = sphi 0, %s31
      %s35 = sphi 0, %s34
      %s51 = sphi 0, %s35
      %s55 = sphi 0, %s55
      %s57 = sphi 0, %s55
      %s58 = sphi 0, %s57
      %s72 = sphi 0, %s58
      %s76 = sphi 0, %s76
      %s78 = sphi 0, %s76
      %s79 = sphi 0, %s78
      %s93 = sphi 0, %s79
      %s97 = sphi 0, %s97
      %s99 = sphi 0, %s97
      %s100 = sphi 0, %s99
      %s114 = sphi 0, %s100
      %s118 = sphi 0, %s118
      %s120 = sphi 0, %s118
      %s121 = sphi 0, %s120
      %s135 = sphi 0, %s121
      %s139 = sphi 0, %s139
      %s141 = sphi 0, %s139
      %s142 = sphi 0, %s141
      %s156 = sphi 0, %s142
      %s162 = sphi 0, %s164
      %s165 = sphi 0, %s162
      %s166 = sphi 0, %s165
      %s182 = sphi 0, %s166
    $region4: #{tpu_custom_call.1} parent=1 // loop_header_branch
      %24 = sbr.rel (%p22) target = $region8
    $region5: #{tpu_custom_call.1} parent=1 // loop_body
      %s26 = ssub.s32 %s21, 1
      %s27 = ssub.s32 %s21, 2
      %s28 = sadd.s32 %s21, 1
      %s29 = ssub.s32 %s21, %s28
      %p30 = scmp.eq.s32.totalorder %s29, 0
      %s32 = sadd.s32 %s31, 1
      %s33 = scalar_select %p30, %s31, %s32
      %p36 = pneg %p30
      %p37 = scmp.eq.s32.totalorder %s21, 1
      %p38 = por %p36, %p37
      %p39 = scmp.ne.s32.totalorder %s31, %s34
      %p40 = scmp.eq.s32.totalorder %s21, 0
      %p41 = por %p39, %p40
      %p42 = scmp.ne.s32.totalorder %s31, %s34
      %p43 = scmp.eq.s32.totalorder %s26, 1
      %p44 = por %p42, %p43
      %p45 = scmp.ne.s32.totalorder %s34, %s35
      %p46 = scmp.eq.s32.totalorder %s26, 0
      %p47 = por %p45, %p46
      %p48 = scmp.ne.s32.totalorder %s34, %s35
      %p49 = scmp.eq.s32.totalorder %s27, 1
      %p50 = por %p48, %p49
      %p52 = scmp.ne.s32.totalorder %s35, %s51
      %p53 = scmp.eq.s32.totalorder %s27, 0
      %p54 = por %p52, %p53
      %s56 = sadd.s32 %s55, 1
      %p59 = scmp.eq.s32.totalorder %s21, 1
      %p60 = scmp.ne.s32.totalorder %s55, %s57
      %p61 = scmp.eq.s32.totalorder %s21, 0
      %p62 = por %p60, %p61
      %p63 = scmp.ne.s32.totalorder %s55, %s57
      %p64 = scmp.eq.s32.totalorder %s26, 1
      %p65 = por %p63, %p64
      %p66 = scmp.ne.s32.totalorder %s57, %s58
      %p67 = scmp.eq.s32.totalorder %s26, 0
      %p68 = por %p66, %p67
      %p69 = scmp.ne.s32.totalorder %s57, %s58
      %p70 = scmp.eq.s32.totalorder %s27, 1
      %p71 = por %p69, %p70
      %p73 = scmp.ne.s32.totalorder %s58, %s72
      %p74 = scmp.eq.s32.totalorder %s27, 0
      %p75 = por %p73, %p74
      %s77 = sadd.s32 %s76, 1
      %p80 = scmp.eq.s32.totalorder %s21, 1
      %p81 = scmp.ne.s32.totalorder %s76, %s78
      %p82 = scmp.eq.s32.totalorder %s21, 0
      %p83 = por %p81, %p82
      %p84 = scmp.ne.s32.totalorder %s76, %s78
      %p85 = scmp.eq.s32.totalorder %s26, 1
      %p86 = por %p84, %p85
      %p87 = scmp.ne.s32.totalorder %s78, %s79
      %p88 = scmp.eq.s32.totalorder %s26, 0
      %p89 = por %p87, %p88
      %p90 = scmp.ne.s32.totalorder %s78, %s79
      %p91 = scmp.eq.s32.totalorder %s27, 1
      %p92 = por %p90, %p91
      %p94 = scmp.ne.s32.totalorder %s79, %s93
      %p95 = scmp.eq.s32.totalorder %s27, 0
      %p96 = por %p94, %p95
      %s98 = sadd.s32 %s97, 1
      %p101 = scmp.eq.s32.totalorder %s21, 1
      %p102 = scmp.ne.s32.totalorder %s97, %s99
      %p103 = scmp.eq.s32.totalorder %s21, 0
      %p104 = por %p102, %p103
      %p105 = scmp.ne.s32.totalorder %s97, %s99
      %p106 = scmp.eq.s32.totalorder %s26, 1
      %p107 = por %p105, %p106
      %p108 = scmp.ne.s32.totalorder %s99, %s100
      %p109 = scmp.eq.s32.totalorder %s26, 0
      %p110 = por %p108, %p109
      %p111 = scmp.ne.s32.totalorder %s99, %s100
      %p112 = scmp.eq.s32.totalorder %s27, 1
      %p113 = por %p111, %p112
      %p115 = scmp.ne.s32.totalorder %s100, %s114
      %p116 = scmp.eq.s32.totalorder %s27, 0
      %p117 = por %p115, %p116
      %s119 = sadd.s32 %s118, 1
      %p122 = scmp.eq.s32.totalorder %s21, 1
      %p123 = scmp.ne.s32.totalorder %s118, %s120
      %p124 = scmp.eq.s32.totalorder %s21, 0
      %p125 = por %p123, %p124
      %p126 = scmp.ne.s32.totalorder %s118, %s120
      %p127 = scmp.eq.s32.totalorder %s26, 1
      %p128 = por %p126, %p127
      %p129 = scmp.ne.s32.totalorder %s120, %s121
      %p130 = scmp.eq.s32.totalorder %s26, 0
      %p131 = por %p129, %p130
      %p132 = scmp.ne.s32.totalorder %s120, %s121
      %p133 = scmp.eq.s32.totalorder %s27, 1
      %p134 = por %p132, %p133
      %p136 = scmp.ne.s32.totalorder %s121, %s135
      %p137 = scmp.eq.s32.totalorder %s27, 0
      %p138 = por %p136, %p137
      %s140 = sadd.s32 %s139, 1
      %p143 = scmp.eq.s32.totalorder %s21, 1
      %p144 = scmp.ne.s32.totalorder %s139, %s141
      %p145 = scmp.eq.s32.totalorder %s21, 0
      %p146 = por %p144, %p145
      %p147 = scmp.ne.s32.totalorder %s139, %s141
      %p148 = scmp.eq.s32.totalorder %s26, 1
      %p149 = por %p147, %p148
      %p150 = scmp.ne.s32.totalorder %s141, %s142
      %p151 = scmp.eq.s32.totalorder %s26, 0
      %p152 = por %p150, %p151
      %p153 = scmp.ne.s32.totalorder %s141, %s142
      %p154 = scmp.eq.s32.totalorder %s27, 1
      %p155 = por %p153, %p154
      %p157 = scmp.ne.s32.totalorder %s142, %s156
      %p158 = scmp.eq.s32.totalorder %s27, 0
      %p159 = por %p157, %p158
      %s160 = ssub.s32 %s21, %s28
      %p161 = scmp.eq.s32.totalorder %s160, 0
      %s163 = sadd.s32 %s162, 1
      %s164 = scalar_select %p161, %s162, %s163
      %p167 = pneg %p161
      %p168 = scmp.eq.s32.totalorder %s21, 1
      %p169 = por %p167, %p168
      %p170 = scmp.ne.s32.totalorder %s162, %s165
      %p171 = scmp.eq.s32.totalorder %s21, 0
      %p172 = por %p170, %p171
      %p173 = scmp.ne.s32.totalorder %s162, %s165
      %p174 = scmp.eq.s32.totalorder %s26, 1
      %p175 = por %p173, %p174
      %p176 = scmp.ne.s32.totalorder %s165, %s166
      %p177 = scmp.eq.s32.totalorder %s26, 0
      %p178 = por %p176, %p177
      %p179 = scmp.ne.s32.totalorder %s165, %s166
      %p180 = scmp.eq.s32.totalorder %s27, 1
      %p181 = por %p179, %p180
      %p183 = scmp.ne.s32.totalorder %s166, %s182
      %p184 = scmp.eq.s32.totalorder %s27, 0
      %p185 = por %p183, %p184
      %p186 = scmp.le.s32.totalorder 1, %s21
      %p187 = scmp.lt.s32.totalorder %s21, 3
      %p188 = pnand %p186, %p187
      %p189 = pneg %p188
      // Predicated region
      $region9: #{tpu_custom_call.1} parent=5 // pred_check
        _
      $region10: #{tpu_custom_call.1} parent=5 // pred_check_branch
        %191 = sbr.rel (%p188) target = $region12
      $region11: #{tpu_custom_call.1} parent=5 // pred_region
        %s192 = ssub.s32 %s21, 1
        // Predicated region
        $region13: #{tpu_custom_call.1} parent=11 // pred_check
          %p193 = pneg %p68
        $region14: #{tpu_custom_call.1} parent=11 // pred_check_branch
          %195 = sbr.rel (%p193) target = $region16
        $region15: #{tpu_custom_call.1} parent=11 // pred_region
          %197 = vsyncadd [#allocation6], 0
          %s198 = sshll.u32 %s1, 4
          %s199 = int_to_ptr.hbm [resolvable:$true] %s198
          %s200 = sshll.u32 [#allocation5], 4
          %s201 = int_to_ptr.vmem [resolvable:$true] %s200
          %206 = dma.hbm_to_vmem [thread:$0]  %s199, 4096, %s201, [#allocation6], 256, 256, 16
        $region16: #{tpu_custom_call.1} parent=11 // pred_fallthru
          _
        // Predicated region
        $region17: #{tpu_custom_call.1} parent=11 // pred_check
          %p207 = pneg %p89
        $region18: #{tpu_custom_call.1} parent=11 // pred_check_branch
          %209 = sbr.rel (%p207) target = $region20
        $region19: #{tpu_custom_call.1} parent=11 // pred_region
          %211 = vsyncadd [#allocation6], 0
          %s212 = sshll.u32 %s2, 4
          %s213 = int_to_ptr.hbm [resolvable:$true] %s212
          %s214 = sshll.u32 [#allocation7], 4
          %s215 = int_to_ptr.vmem [resolvable:$true] %s214
          %220 = dma.hbm_to_vmem [thread:$0]  %s213, 3072, %s215, [#allocation6], 192, 192, 12
        $region20: #{tpu_custom_call.1} parent=11 // pred_fallthru
          _
        // Predicated region
        $region21: #{tpu_custom_call.1} parent=11 // pred_check
          %p221 = pneg %p110
        $region22: #{tpu_custom_call.1} parent=11 // pred_check_branch
          %223 = sbr.rel (%p221) target = $region24
        $region23: #{tpu_custom_call.1} parent=11 // pred_region
          %225 = vsyncadd [#allocation9], 0
          %s226 = sshll.u32 %s3, 4
          %s227 = int_to_ptr.hbm [resolvable:$true] %s226
          %s228 = sshll.u32 [#allocation8], 4
          %s229 = int_to_ptr.vmem [resolvable:$true] %s228
          %234 = dma.hbm_to_vmem [thread:$0]  %s227, 1024, %s229, [#allocation9], 64, 64, 4
        $region24: #{tpu_custom_call.1} parent=11 // pred_fallthru
          _
        // Predicated region
        $region25: #{tpu_custom_call.1} parent=11 // pred_check
          %p235 = pneg %p131
        $region26: #{tpu_custom_call.1} parent=11 // pred_check_branch
          %237 = sbr.rel (%p235) target = $region28
        $region27: #{tpu_custom_call.1} parent=11 // pred_region
          %239 = vsyncadd [#allocation9], 0
          %s240 = sshll.u32 %s4, 4
          %s241 = int_to_ptr.hbm [resolvable:$true] %s240
          %s242 = sshll.u32 [#allocation10], 4
          %s243 = int_to_ptr.vmem [resolvable:$true] %s242
          %248 = dma.hbm_to_vmem [thread:$0]  %s241, 1024, %s243, [#allocation9], 64, 64, 4
        $region28: #{tpu_custom_call.1} parent=11 // pred_fallthru
          _
        // Predicated region
        $region29: #{tpu_custom_call.1} parent=11 // pred_check
          %p249 = pneg %p152
        $region30: #{tpu_custom_call.1} parent=11 // pred_check_branch
          %251 = sbr.rel (%p249) target = $region32
        $region31: #{tpu_custom_call.1} parent=11 // pred_region
          %253 = vsyncadd [#allocation12], 0
          %s255 = sshll.u32 %s5, 4
          %s256 = int_to_ptr.hbm [resolvable:$true] %s255
          %s257 = sshll.u32 [#allocation11], 4
          %s258 = int_to_ptr.vmem [resolvable:$true] %s257
          %260 = dma.hbm_to_vmem [thread:$0]  %s256, 128, %s258, [#allocation12]
        $region32: #{tpu_custom_call.1} parent=11 // pred_fallthru
          _
      $region12: #{tpu_custom_call.1} parent=5 // pred_fallthru
        _
      %p261 = scmp.lt.s32.totalorder %s21, 2
      // Predicated region
      $region33: #{tpu_custom_call.1} parent=5 // pred_check
        %p262 = pneg %p261
      $region34: #{tpu_custom_call.1} parent=5 // pred_check_branch
        %264 = sbr.rel (%p262) target = $region36
      $region35: #{tpu_custom_call.1} parent=5 // pred_region
        // Predicated region
        $region37: #{tpu_custom_call.1} parent=35 // pred_check
          %p265 = pneg %p41
        $region38: #{tpu_custom_call.1} parent=35 // pred_check_branch
          %267 = sbr.rel (%p265) target = $region40
        $region39: #{tpu_custom_call.1} parent=35 // pred_region
          %s268 = sand.u32 %s31, 1
          %s269 = scalar_lea.sflag [#allocation3], %s268
          %s270 = sand.u32 %s31, 1
          %s271 = smul.addr %s270, 64
          %s272 = scalar_lea.vmem [#allocation2], %s271
          %s273 = smul.u32 8, %s21
          %275 = vsyncadd %s269, 0
          %s276 = smul.addr %s273, 2
          %s277 = smul.addr %s276, 4
          %s278 = scalar_lea.hbm %s0, %s277
          %s279 = sshll.u32 %s278, 4
          %s280 = int_to_ptr.hbm [resolvable:$true] %s279
          %s281 = sshll.u32 %s272, 4
          %s282 = int_to_ptr.vmem [resolvable:$true] %s281
          %287 = dma.hbm_to_vmem [thread:$0]  %s280, 1024, %s282, %s269, 64, 64, 4
        $region40: #{tpu_custom_call.1} parent=35 // pred_fallthru
          _
      $region36: #{tpu_custom_call.1} parent=5 // pred_fallthru
        _
      %p288 = scmp.le.s32.totalorder 1, %s21
      %p289 = scmp.lt.s32.totalorder %s21, 3
      %p290 = pnand %p288, %p289
      %p291 = pneg %p290
      // Predicated region
      $region41: #{tpu_custom_call.1} parent=5 // pred_check
        _
      $region42: #{tpu_custom_call.1} parent=5 // pred_check_branch
        %293 = sbr.rel (%p290) target = $region44
      $region43: #{tpu_custom_call.1} parent=5 // pred_region
        %s294 = ssub.s32 %s21, 1
        %s295 = sand.u32 %s34, 1
        %s296 = scalar_lea.sflag [#allocation3], %s295
        %s297 = sand.u32 %s34, 1
        %s298 = smul.addr %s297, 64
        %s299 = scalar_lea.vmem [#allocation2], %s298
        // Predicated region
        $region45: #{tpu_custom_call.1} parent=43 // pred_check
          %p300 = pneg %p47
        $region46: #{tpu_custom_call.1} parent=43 // pred_check_branch
          %302 = sbr.rel (%p300) target = $region48
        $region47: #{tpu_custom_call.1} parent=43 // pred_region
          %304 = dma.done %s296, 1024
        $region48: #{tpu_custom_call.1} parent=43 // pred_fallthru
          _
        // Predicated region
        $region49: #{tpu_custom_call.1} parent=43 // pred_check
          %p305 = pneg %p68
        $region50: #{tpu_custom_call.1} parent=43 // pred_check_branch
          %307 = sbr.rel (%p305) target = $region52
        $region51: #{tpu_custom_call.1} parent=43 // pred_region
          %309 = dma.done [#allocation6], 4096
        $region52: #{tpu_custom_call.1} parent=43 // pred_fallthru
          _
        // Predicated region
        $region53: #{tpu_custom_call.1} parent=43 // pred_check
          %p310 = pneg %p89
        $region54: #{tpu_custom_call.1} parent=43 // pred_check_branch
          %312 = sbr.rel (%p310) target = $region56
        $region55: #{tpu_custom_call.1} parent=43 // pred_region
          %314 = dma.done [#allocation6], 3072
        $region56: #{tpu_custom_call.1} parent=43 // pred_fallthru
          _
        // Predicated region
        $region57: #{tpu_custom_call.1} parent=43 // pred_check
          %p315 = pneg %p110
        $region58: #{tpu_custom_call.1} parent=43 // pred_check_branch
          %317 = sbr.rel (%p315) target = $region60
        $region59: #{tpu_custom_call.1} parent=43 // pred_region
          %319 = dma.done [#allocation9], 1024
        $region60: #{tpu_custom_call.1} parent=43 // pred_fallthru
          _
        // Predicated region
        $region61: #{tpu_custom_call.1} parent=43 // pred_check
          %p320 = pneg %p131
        $region62: #{tpu_custom_call.1} parent=43 // pred_check_branch
          %322 = sbr.rel (%p320) target = $region64
        $region63: #{tpu_custom_call.1} parent=43 // pred_region
          %324 = dma.done [#allocation9], 1024
        $region64: #{tpu_custom_call.1} parent=43 // pred_fallthru
          _
        // Predicated region
        $region65: #{tpu_custom_call.1} parent=43 // pred_check
          %p325 = pneg %p152
        $region66: #{tpu_custom_call.1} parent=43 // pred_check_branch
          %327 = sbr.rel (%p325) target = $region68
        $region67: #{tpu_custom_call.1} parent=43 // pred_region
          %329 = dma.done [#allocation12], 128
        $region68: #{tpu_custom_call.1} parent=43 // pred_fallthru
          _
        %s330 = sand.u32 %s34, 1
        %s331 = scalar_lea.sflag [#allocation3], %s330
        %s332 = sand.u32 %s34, 1
        %s333 = smul.addr %s332, 64
        %s334 = scalar_lea.vmem [#allocation2], %s333
        %p335 = pneg %p47
        %p336 = pneg %p44
        %p337 = pneg %p68
        %p338 = pneg %p65
        %p339 = pneg %p89
        %p340 = pneg %p86
        %p341 = pneg %p110
        %p342 = pneg %p107
        %p343 = pneg %p131
        %p344 = pneg %p128
        %p345 = pneg %p152
        %p346 = pneg %p149
        %p347 = pneg %p178
        %p348 = pneg %p175
        %s349 = sand.u32 %s165, 1
        %s350 = scalar_lea.sflag [#allocation4], %s349
        %s351 = sand.u32 %s165, 1
        %s352 = smul.addr %s351, 128
        %s353 = scalar_lea.vmem [#allocation13], %s352
        %s354 = smul.u32 8, %s26
        %s355 = smul.u32 8, %s26
        %v356 = vld [vmem:[%s299] sm:$0xf]
        %v357 = vld [vmem:[%s299 + $0x4] sm:$0xf]
        %v358 = vld [vmem:[%s299 + $0x8] sm:$0xf]
        %v359 = vld [vmem:[%s299 + $0xc] sm:$0xf]
        %v360 = vld [vmem:[%s299 + $0x10] sm:$0xf]
        %v361 = vld [vmem:[%s299 + $0x14] sm:$0xf]
        %v362 = vld [vmem:[%s299 + $0x18] sm:$0xf]
        %v363 = vld [vmem:[%s299 + $0x1c] sm:$0xf]
        %v364 = vld [vmem:[%s299 + $0x20] sm:$0xf]
        %v365 = vld [vmem:[%s299 + $0x24] sm:$0xf]
        %v366 = vld [vmem:[%s299 + $0x28] sm:$0xf]
        %v367 = vld [vmem:[%s299 + $0x2c] sm:$0xf]
        %v368 = vld [vmem:[%s299 + $0x30] sm:$0xf]
        %v369 = vld [vmem:[%s299 + $0x34] sm:$0xf]
        %v370 = vld [vmem:[%s299 + $0x38] sm:$0xf]
        %v371 = vld [vmem:[%s299 + $0x3c] sm:$0xf]
        %v372 = vlaneseq
        %v373 = vshrl.u32 %v372, 7
        %v374 = vadd.s32 %v373, 8
        %vm375 = vcmp.ne.s32.totalorder %v373, 0
        %vm376 = vcmp.ne.s32.totalorder %v374, 0
        %v377 = vsel %vm375, 1, 0
        %v378 = vsel %vm376, 1, 0
        %v379 = vcvt.s32.f32 %v377
        %v380 = vcvt.s32.f32 %v378
        %vm381 = vcmp.ne.s32.totalorder %v373, 15
        %vm382 = vcmp.ne.s32.totalorder %v374, 15
        %v383 = vsel %vm381, 1, 0
        %v384 = vsel %vm382, 1, 0
        %v385 = vcvt.s32.f32 %v383
        %v386 = vcvt.s32.f32 %v384
        %v387 = vld [vmem:[#allocation5] sm:$0xff]
        %v388 = vld [vmem:[#allocation5 + $0x8] sm:$0xff]
        %v389 = vld [vmem:[#allocation5 + $0x10] sm:$0xff]
        %v390 = vld [vmem:[#allocation5 + $0x18] sm:$0xff]
        %v391 = vld [vmem:[#allocation5 + $0x20] sm:$0xff]
        %v392 = vld [vmem:[#allocation5 + $0x28] sm:$0xff]
        %v393 = vld [vmem:[#allocation5 + $0x30] sm:$0xff]
        %v394 = vld [vmem:[#allocation5 + $0x38] sm:$0xff]
        %v395 = vld [vmem:[#allocation5 + $0x40] sm:$0xff]
        %v396 = vld [vmem:[#allocation5 + $0x48] sm:$0xff]
        %v397 = vld [vmem:[#allocation5 + $0x50] sm:$0xff]
        %v398 = vld [vmem:[#allocation5 + $0x58] sm:$0xff]
        %v399 = vld [vmem:[#allocation5 + $0x60] sm:$0xff]
        %v400 = vld [vmem:[#allocation5 + $0x68] sm:$0xff]
        %v401 = vld [vmem:[#allocation5 + $0x70] sm:$0xff]
        %v402 = vld [vmem:[#allocation5 + $0x78] sm:$0xff]
        %v403 = vld [vmem:[#allocation5 + $0x80] sm:$0xff]
        %v404 = vld [vmem:[#allocation5 + $0x88] sm:$0xff]
        %v405 = vld [vmem:[#allocation5 + $0x90] sm:$0xff]
        %v406 = vld [vmem:[#allocation5 + $0x98] sm:$0xff]
        %v407 = vld [vmem:[#allocation5 + $0xa0] sm:$0xff]
        %v408 = vld [vmem:[#allocation5 + $0xa8] sm:$0xff]
        %v409 = vld [vmem:[#allocation5 + $0xb0] sm:$0xff]
        %v410 = vld [vmem:[#allocation5 + $0xb8] sm:$0xff]
        %v411 = vld [vmem:[#allocation5 + $0xc0] sm:$0xff]
        %v412 = vld [vmem:[#allocation5 + $0xc8] sm:$0xff]
        %v413 = vld [vmem:[#allocation5 + $0xd0] sm:$0xff]
        %v414 = vld [vmem:[#allocation5 + $0xd8] sm:$0xff]
        %v415 = vld [vmem:[#allocation5 + $0xe0] sm:$0xff]
        %v416 = vld [vmem:[#allocation5 + $0xe8] sm:$0xff]
        %v417 = vld [vmem:[#allocation5 + $0xf0] sm:$0xff]
        %v418 = vld [vmem:[#allocation5 + $0xf8] sm:$0xff]
        %v435 = vunpack.c.l.b16 %v356
        %v436 = vunpack.c.l.b16 %v357
        %v437 = vunpack.c.l.b16 %v358
        %v438 = vunpack.c.l.b16 %v359
        %v439 = vunpack.c.l.b16 %v360
        %v440 = vunpack.c.l.b16 %v361
        %v441 = vunpack.c.l.b16 %v362
        %v442 = vunpack.c.l.b16 %v363
        %v443 = vunpack.c.l.b16 %v364
        %v444 = vunpack.c.l.b16 %v365
        %v445 = vunpack.c.l.b16 %v366
        %v446 = vunpack.c.l.b16 %v367
        %v447 = vunpack.c.l.b16 %v368
        %v448 = vunpack.c.l.b16 %v369
        %v449 = vunpack.c.l.b16 %v370
        %v450 = vunpack.c.l.b16 %v371
        %v451 = vpack.c.b16 %v436, %v435
        %v452 = vpack.c.b16 %v438, %v437
        %v453 = vpack.c.b16 %v440, %v439
        %v454 = vpack.c.b16 %v442, %v441
        %v455 = vpack.c.b16 %v444, %v443
        %v456 = vpack.c.b16 %v446, %v445
        %v457 = vpack.c.b16 %v448, %v447
        %v458 = vpack.c.b16 %v450, %v449
        %v499 = vunpack.c.l.b16 %v387
        %v500 = vunpack.c.h.b16 %v387
        %v501 = vunpack.c.l.b16 %v388
        %v502 = vunpack.c.h.b16 %v388
        %v503 = vunpack.c.l.b16 %v389
        %v504 = vunpack.c.h.b16 %v389
        %v505 = vunpack.c.l.b16 %v390
        %v506 = vunpack.c.h.b16 %v390
        %v507 = vunpack.c.l.b16 %v391
        %v508 = vunpack.c.h.b16 %v391
        %v509 = vunpack.c.l.b16 %v392
        %v510 = vunpack.c.h.b16 %v392
        %v511 = vunpack.c.l.b16 %v393
        %v512 = vunpack.c.h.b16 %v393
        %v513 = vunpack.c.l.b16 %v394
        %v514 = vunpack.c.h.b16 %v394
        %v515 = vunpack.c.l.b16 %v395
        %v516 = vunpack.c.h.b16 %v395
        %v517 = vunpack.c.l.b16 %v396
        %v518 = vunpack.c.h.b16 %v396
        %v519 = vunpack.c.l.b16 %v397
        %v520 = vunpack.c.h.b16 %v397
        %v521 = vunpack.c.l.b16 %v398
        %v522 = vunpack.c.h.b16 %v398
        %v523 = vunpack.c.l.b16 %v399
        %v524 = vunpack.c.h.b16 %v399
        %v525 = vunpack.c.l.b16 %v400
        %v526 = vunpack.c.h.b16 %v400
        %v527 = vunpack.c.l.b16 %v401
        %v528 = vunpack.c.h.b16 %v401
        %v529 = vunpack.c.l.b16 %v402
        %v530 = vunpack.c.h.b16 %v402
        %v531 = vunpack.c.l.b16 %v403
        %v532 = vunpack.c.h.b16 %v403
        %v533 = vunpack.c.l.b16 %v404
        %v534 = vunpack.c.h.b16 %v404
        %v535 = vunpack.c.l.b16 %v405
        %v536 = vunpack.c.h.b16 %v405
        %v537 = vunpack.c.l.b16 %v406
        %v538 = vunpack.c.h.b16 %v406
        %v539 = vunpack.c.l.b16 %v407
        %v540 = vunpack.c.h.b16 %v407
        %v541 = vunpack.c.l.b16 %v408
        %v542 = vunpack.c.h.b16 %v408
        %v543 = vunpack.c.l.b16 %v409
        %v544 = vunpack.c.h.b16 %v409
        %v545 = vunpack.c.l.b16 %v410
        %v546 = vunpack.c.h.b16 %v410
        %v547 = vunpack.c.l.b16 %v411
        %v548 = vunpack.c.h.b16 %v411
        %v549 = vunpack.c.l.b16 %v412
        %v550 = vunpack.c.h.b16 %v412
        %v551 = vunpack.c.l.b16 %v413
        %v552 = vunpack.c.h.b16 %v413
        %v553 = vunpack.c.l.b16 %v414
        %v554 = vunpack.c.h.b16 %v414
        %v555 = vunpack.c.l.b16 %v415
        %v556 = vunpack.c.h.b16 %v415
        %v557 = vunpack.c.l.b16 %v416
        %v558 = vunpack.c.h.b16 %v416
        %v559 = vunpack.c.l.b16 %v417
        %v560 = vunpack.c.h.b16 %v417
        %v561 = vunpack.c.l.b16 %v418
        %v562 = vunpack.c.h.b16 %v418
        %v563 = vpack.c.b16 %v503, %v499
        %v564 = vpack.c.b16 %v504, %v500
        %v565 = vpack.c.b16 %v505, %v501
        %v566 = vpack.c.b16 %v506, %v502
        %v567 = vpack.c.b16 %v511, %v507
        %v568 = vpack.c.b16 %v512, %v508
        %v569 = vpack.c.b16 %v513, %v509
        %v570 = vpack.c.b16 %v514, %v510
        %v571 = vpack.c.b16 %v519, %v515
        %v572 = vpack.c.b16 %v520, %v516
        %v573 = vpack.c.b16 %v521, %v517
        %v574 = vpack.c.b16 %v522, %v518
        %v575 = vpack.c.b16 %v527, %v523
        %v576 = vpack.c.b16 %v528, %v524
        %v577 = vpack.c.b16 %v529, %v525
        %v578 = vpack.c.b16 %v530, %v526
        %v579 = vpack.c.b16 %v535, %v531
        %v580 = vpack.c.b16 %v536, %v532
        %v581 = vpack.c.b16 %v537, %v533
        %v582 = vpack.c.b16 %v538, %v534
        %v583 = vpack.c.b16 %v543, %v539
        %v584 = vpack.c.b16 %v544, %v540
        %v585 = vpack.c.b16 %v545, %v541
        %v586 = vpack.c.b16 %v546, %v542
        %v587 = vpack.c.b16 %v551, %v547
        %v588 = vpack.c.b16 %v552, %v548
        %v589 = vpack.c.b16 %v553, %v549
        %v590 = vpack.c.b16 %v554, %v550
        %v591 = vpack.c.b16 %v559, %v555
        %v592 = vpack.c.b16 %v560, %v556
        %v593 = vpack.c.b16 %v561, %v557
        %v594 = vpack.c.b16 %v562, %v558
        %627 = vmatpush.bf16.msra.mxu0 %v591
        %628 = vmatpush.bf16.msra.mxu0 %v587
        %629 = vmatpush.bf16.msra.mxu0 %v583
        %630 = vmatpush.bf16.msra.mxu0 %v579
        %631 = vmatpush.bf16.msra.mxu0 %v575
        %632 = vmatpush.bf16.msra.mxu0 %v571
        %633 = vmatpush.bf16.msra.mxu0 %v567
        %634 = vmatpush.bf16.msra.mxu0 %v563
        %635 = vmatmul.bf16.gmra.mxu0 %v451
        %v636 = vpop.f32.mrf.mxu0
        %v637 = vadd.f32 0.0, %v636
        %v638 = vpop.f32.mrf.mxu0
        %v639 = vadd.f32 0.0, %v638
        %640 = vmatmul.bf16.gmra.mxu0 %v452
        %v641 = vpop.f32.mrf.mxu0
        %v642 = vadd.f32 0.0, %v641
        %v643 = vpop.f32.mrf.mxu0
        %v644 = vadd.f32 0.0, %v643
        %645 = vmatmul.bf16.gmra.mxu0 %v453
        %v646 = vpop.f32.mrf.mxu0
        %v647 = vadd.f32 0.0, %v646
        %v648 = vpop.f32.mrf.mxu0
        %v649 = vadd.f32 0.0, %v648
        %650 = vmatmul.bf16.gmra.mxu0 %v454
        %v651 = vpop.f32.mrf.mxu0
        %v652 = vadd.f32 0.0, %v651
        %v653 = vpop.f32.mrf.mxu0
        %v654 = vadd.f32 0.0, %v653
        %655 = vmatmul.bf16.gmra.mxu0 %v455
        %v656 = vpop.f32.mrf.mxu0
        %v657 = vadd.f32 0.0, %v656
        %v658 = vpop.f32.mrf.mxu0
        %v659 = vadd.f32 0.0, %v658
        %660 = vmatmul.bf16.gmra.mxu0 %v456
        %v661 = vpop.f32.mrf.mxu0
        %v662 = vadd.f32 0.0, %v661
        %v663 = vpop.f32.mrf.mxu0
        %v664 = vadd.f32 0.0, %v663
        %665 = vmatmul.bf16.gmra.mxu0 %v457
        %v666 = vpop.f32.mrf.mxu0
        %v667 = vadd.f32 0.0, %v666
        %v668 = vpop.f32.mrf.mxu0
        %v669 = vadd.f32 0.0, %v668
        %670 = vmatmul.bf16.gmra.mxu0 %v458
        %v671 = vpop.f32.mrf.mxu0
        %v672 = vadd.f32 0.0, %v671
        %v673 = vpop.f32.mrf.mxu0
        %v674 = vadd.f32 0.0, %v673
        %675 = vdwg.mxu0
        %676 = vmatpush.bf16.msra.mxu0 %v592
        %677 = vmatpush.bf16.msra.mxu0 %v588
        %678 = vmatpush.bf16.msra.mxu0 %v584
        %679 = vmatpush.bf16.msra.mxu0 %v580
        %680 = vmatpush.bf16.msra.mxu0 %v576
        %681 = vmatpush.bf16.msra.mxu0 %v572
        %682 = vmatpush.bf16.msra.mxu0 %v568
        %683 = vmatpush.bf16.msra.mxu0 %v564
        %684 = vmatmul.bf16.gmra.mxu0 %v451
        %v685 = vpop.f32.mrf.mxu0
        %v686 = vadd.f32 0.0, %v685
        %v687 = vpop.f32.mrf.mxu0
        %v688 = vadd.f32 0.0, %v687
        %689 = vmatmul.bf16.gmra.mxu0 %v452
        %v690 = vpop.f32.mrf.mxu0
        %v691 = vadd.f32 0.0, %v690
        %v692 = vpop.f32.mrf.mxu0
        %v693 = vadd.f32 0.0, %v692
        %694 = vmatmul.bf16.gmra.mxu0 %v453
        %v695 = vpop.f32.mrf.mxu0
        %v696 = vadd.f32 0.0, %v695
        %v697 = vpop.f32.mrf.mxu0
        %v698 = vadd.f32 0.0, %v697
        %699 = vmatmul.bf16.gmra.mxu0 %v454
        %v700 = vpop.f32.mrf.mxu0
        %v701 = vadd.f32 0.0, %v700
        %v702 = vpop.f32.mrf.mxu0
        %v703 = vadd.f32 0.0, %v702
        %704 = vmatmul.bf16.gmra.mxu0 %v455
        %v705 = vpop.f32.mrf.mxu0
        %v706 = vadd.f32 0.0, %v705
        %v707 = vpop.f32.mrf.mxu0
        %v708 = vadd.f32 0.0, %v707
        %709 = vmatmul.bf16.gmra.mxu0 %v456
        %v710 = vpop.f32.mrf.mxu0
        %v711 = vadd.f32 0.0, %v710
        %v712 = vpop.f32.mrf.mxu0
        %v713 = vadd.f32 0.0, %v712
        %714 = vmatmul.bf16.gmra.mxu0 %v457
        %v715 = vpop.f32.mrf.mxu0
        %v716 = vadd.f32 0.0, %v715
        %v717 = vpop.f32.mrf.mxu0
        %v718 = vadd.f32 0.0, %v717
        %719 = vmatmul.bf16.gmra.mxu0 %v458
        %v720 = vpop.f32.mrf.mxu0
        %v721 = vadd.f32 0.0, %v720
        %v722 = vpop.f32.mrf.mxu0
        %v723 = vadd.f32 0.0, %v722
        %724 = vdwg.mxu0
        %725 = vmatpush.bf16.msra.mxu0 %v593
        %726 = vmatpush.bf16.msra.mxu0 %v589
        %727 = vmatpush.bf16.msra.mxu0 %v585
        %728 = vmatpush.bf16.msra.mxu0 %v581
        %729 = vmatpush.bf16.msra.mxu0 %v577
        %730 = vmatpush.bf16.msra.mxu0 %v573
        %731 = vmatpush.bf16.msra.mxu0 %v569
        %732 = vmatpush.bf16.msra.mxu0 %v565
        %733 = vmatmul.bf16.gmra.mxu0 %v451
        %v734 = vpop.f32.mrf.mxu0
        %v735 = vadd.f32 0.0, %v734
        %v736 = vpop.f32.mrf.mxu0
        %v737 = vadd.f32 0.0, %v736
        %738 = vmatmul.bf16.gmra.mxu0 %v452
        %v739 = vpop.f32.mrf.mxu0
        %v740 = vadd.f32 0.0, %v739
        %v741 = vpop.f32.mrf.mxu0
        %v742 = vadd.f32 0.0, %v741
        %743 = vmatmul.bf16.gmra.mxu0 %v453
        %v744 = vpop.f32.mrf.mxu0
        %v745 = vadd.f32 0.0, %v744
        %v746 = vpop.f32.mrf.mxu0
        %v747 = vadd.f32 0.0, %v746
        %748 = vmatmul.bf16.gmra.mxu0 %v454
        %v749 = vpop.f32.mrf.mxu0
        %v750 = vadd.f32 0.0, %v749
        %v751 = vpop.f32.mrf.mxu0
        %v752 = vadd.f32 0.0, %v751
        %753 = vmatmul.bf16.gmra.mxu0 %v455
        %v754 = vpop.f32.mrf.mxu0
        %v755 = vadd.f32 0.0, %v754
        %v756 = vpop.f32.mrf.mxu0
        %v757 = vadd.f32 0.0, %v756
        %758 = vmatmul.bf16.gmra.mxu0 %v456
        %v759 = vpop.f32.mrf.mxu0
        %v760 = vadd.f32 0.0, %v759
        %v761 = vpop.f32.mrf.mxu0
        %v762 = vadd.f32 0.0, %v761
        %763 = vmatmul.bf16.gmra.mxu0 %v457
        %v764 = vpop.f32.mrf.mxu0
        %v765 = vadd.f32 0.0, %v764
        %v766 = vpop.f32.mrf.mxu0
        %v767 = vadd.f32 0.0, %v766
        %768 = vmatmul.bf16.gmra.mxu0 %v458
        %v769 = vpop.f32.mrf.mxu0
        %v770 = vadd.f32 0.0, %v769
        %v771 = vpop.f32.mrf.mxu0
        %v772 = vadd.f32 0.0, %v771
        %773 = vdwg.mxu0
        %774 = vmatpush.bf16.msra.mxu0 %v594
        %775 = vmatpush.bf16.msra.mxu0 %v590
        %776 = vmatpush.bf16.msra.mxu0 %v586
        %777 = vmatpush.bf16.msra.mxu0 %v582
        %778 = vmatpush.bf16.msra.mxu0 %v578
        %779 = vmatpush.bf16.msra.mxu0 %v574
        %780 = vmatpush.bf16.msra.mxu0 %v570
        %781 = vmatpush.bf16.msra.mxu0 %v566
        %782 = vmatmul.bf16.gmra.mxu0 %v451
        %v783 = vpop.f32.mrf.mxu0
        %v784 = vadd.f32 0.0, %v783
        %v785 = vpop.f32.mrf.mxu0
        %v786 = vadd.f32 0.0, %v785
        %787 = vmatmul.bf16.gmra.mxu0 %v452
        %v788 = vpop.f32.mrf.mxu0
        %v789 = vadd.f32 0.0, %v788
        %v790 = vpop.f32.mrf.mxu0
        %v791 = vadd.f32 0.0, %v790
        %792 = vmatmul.bf16.gmra.mxu0 %v453
        %v793 = vpop.f32.mrf.mxu0
        %v794 = vadd.f32 0.0, %v793
        %v795 = vpop.f32.mrf.mxu0
        %v796 = vadd.f32 0.0, %v795
        %797 = vmatmul.bf16.gmra.mxu0 %v454
        %v798 = vpop.f32.mrf.mxu0
        %v799 = vadd.f32 0.0, %v798
        %v800 = vpop.f32.mrf.mxu0
        %v801 = vadd.f32 0.0, %v800
        %802 = vmatmul.bf16.gmra.mxu0 %v455
        %v803 = vpop.f32.mrf.mxu0
        %v804 = vadd.f32 0.0, %v803
        %v805 = vpop.f32.mrf.mxu0
        %v806 = vadd.f32 0.0, %v805
        %807 = vmatmul.bf16.gmra.mxu0 %v456
        %v808 = vpop.f32.mrf.mxu0
        %v809 = vadd.f32 0.0, %v808
        %v810 = vpop.f32.mrf.mxu0
        %v811 = vadd.f32 0.0, %v810
        %812 = vmatmul.bf16.gmra.mxu0 %v457
        %v813 = vpop.f32.mrf.mxu0
        %v814 = vadd.f32 0.0, %v813
        %v815 = vpop.f32.mrf.mxu0
        %v816 = vadd.f32 0.0, %v815
        %817 = vmatmul.bf16.gmra.mxu0 %v458
        %v818 = vpop.f32.mrf.mxu0
        %v819 = vadd.f32 0.0, %v818
        %v820 = vpop.f32.mrf.mxu0
        %v821 = vadd.f32 0.0, %v820
        %822 = vdwg.mxu0
        %v823 = vld [vmem:[#allocation11 + $0x2] sm:$0x1]
        %v824 = vperm.slane %v823, 0
        %v825 = vadd.f32 %v686, %v824
        %v826 = vadd.f32 %v688, %v824
        %v827 = vadd.f32 %v691, %v824
        %v828 = vadd.f32 %v693, %v824
        %v829 = vadd.f32 %v696, %v824
        %v830 = vadd.f32 %v698, %v824
        %v831 = vadd.f32 %v701, %v824
        %v832 = vadd.f32 %v703, %v824
        %v833 = vadd.f32 %v706, %v824
        %v834 = vadd.f32 %v708, %v824
        %v835 = vadd.f32 %v711, %v824
        %v836 = vadd.f32 %v713, %v824
        %v837 = vadd.f32 %v716, %v824
        %v838 = vadd.f32 %v718, %v824
        %v839 = vadd.f32 %v721, %v824
        %v840 = vadd.f32 %v723, %v824
        %v841 = vrot.slane %v735, 7
        %v842 = vrot.slane %v737, 7
        %v843 = vrot.slane %v740, 7
        %v844 = vrot.slane %v742, 7
        %v845 = vrot.slane %v745, 7
        %v846 = vrot.slane %v747, 7
        %v847 = vrot.slane %v750, 7
        %v848 = vrot.slane %v752, 7
        %v849 = vrot.slane %v755, 7
        %v850 = vrot.slane %v757, 7
        %v851 = vrot.slane %v760, 7
        %v852 = vrot.slane %v762, 7
        %v853 = vrot.slane %v765, 7
        %v854 = vrot.slane %v767, 7
        %v855 = vrot.slane %v770, 7
        %v856 = vrot.slane %v772, 7
        %vm857 = vcmp.lt.s32.totalorder %v373, 1
        %v858 = vsel %vm857, %v855, %v856
        %v859 = vsel %vm857, %v854, %v855
        %v860 = vsel %vm857, %v853, %v854
        %v861 = vsel %vm857, %v852, %v853
        %v862 = vsel %vm857, %v851, %v852
        %v863 = vsel %vm857, %v850, %v851
        %v864 = vsel %vm857, %v849, %v850
        %v865 = vsel %vm857, %v848, %v849
        %v866 = vsel %vm857, %v847, %v848
        %v867 = vsel %vm857, %v846, %v847
        %v868 = vsel %vm857, %v845, %v846
        %v869 = vsel %vm857, %v844, %v845
        %v870 = vsel %vm857, %v843, %v844
        %v871 = vsel %vm857, %v842, %v843
        %v872 = vsel %vm857, %v841, %v842
        %v873 = vsel %vm857, %v856, %v841
        %v874 = vmul.f32 %v873, %v379
        %v875 = vmul.f32 %v872, %v380
        %v876 = vmul.f32 %v871, %v379
        %v877 = vmul.f32 %v870, %v380
        %v878 = vmul.f32 %v869, %v379
        %v879 = vmul.f32 %v868, %v380
        %v880 = vmul.f32 %v867, %v379
        %v881 = vmul.f32 %v866, %v380
        %v882 = vmul.f32 %v865, %v379
        %v883 = vmul.f32 %v864, %v380
        %v884 = vmul.f32 %v863, %v379
        %v885 = vmul.f32 %v862, %v380
        %v886 = vmul.f32 %v861, %v379
        %v887 = vmul.f32 %v860, %v380
        %v888 = vmul.f32 %v859, %v379
        %v889 = vmul.f32 %v858, %v380
        %v890 = vadd.f32 %v637, %v874
        %v891 = vadd.f32 %v639, %v875
        %v892 = vadd.f32 %v642, %v876
        %v893 = vadd.f32 %v644, %v877
        %v894 = vadd.f32 %v647, %v878
        %v895 = vadd.f32 %v649, %v879
        %v896 = vadd.f32 %v652, %v880
        %v897 = vadd.f32 %v654, %v881
        %v898 = vadd.f32 %v657, %v882
        %v899 = vadd.f32 %v659, %v883
        %v900 = vadd.f32 %v662, %v884
        %v901 = vadd.f32 %v664, %v885
        %v902 = vadd.f32 %v667, %v886
        %v903 = vadd.f32 %v669, %v887
        %v904 = vadd.f32 %v672, %v888
        %v905 = vadd.f32 %v674, %v889
        %v906 = vrot.slane %v784, 1
        %v907 = vrot.slane %v786, 1
        %v908 = vrot.slane %v789, 1
        %v909 = vrot.slane %v791, 1
        %v910 = vrot.slane %v794, 1
        %v911 = vrot.slane %v796, 1
        %v912 = vrot.slane %v799, 1
        %v913 = vrot.slane %v801, 1
        %v914 = vrot.slane %v804, 1
        %v915 = vrot.slane %v806, 1
        %v916 = vrot.slane %v809, 1
        %v917 = vrot.slane %v811, 1
        %v918 = vrot.slane %v814, 1
        %v919 = vrot.slane %v816, 1
        %v920 = vrot.slane %v819, 1
        %v921 = vrot.slane %v821, 1
        %vm922 = vcmp.lt.s32.totalorder %v373, 7
        %v923 = vsel %vm922, %v920, %v921
        %v924 = vsel %vm922, %v919, %v920
        %v925 = vsel %vm922, %v918, %v919
        %v926 = vsel %vm922, %v917, %v918
        %v927 = vsel %vm922, %v916, %v917
        %v928 = vsel %vm922, %v915, %v916
        %v929 = vsel %vm922, %v914, %v915
        %v930 = vsel %vm922, %v913, %v914
        %v931 = vsel %vm922, %v912, %v913
        %v932 = vsel %vm922, %v911, %v912
        %v933 = vsel %vm922, %v910, %v911
        %v934 = vsel %vm922, %v909, %v910
        %v935 = vsel %vm922, %v908, %v909
        %v936 = vsel %vm922, %v907, %v908
        %v937 = vsel %vm922, %v906, %v907
        %v938 = vsel %vm922, %v921, %v906
        %v939 = vmul.f32 %v937, %v385
        %v940 = vmul.f32 %v936, %v386
        %v941 = vmul.f32 %v935, %v385
        %v942 = vmul.f32 %v934, %v386
        %v943 = vmul.f32 %v933, %v385
        %v944 = vmul.f32 %v932, %v386
        %v945 = vmul.f32 %v931, %v385
        %v946 = vmul.f32 %v930, %v386
        %v947 = vmul.f32 %v929, %v385
        %v948 = vmul.f32 %v928, %v386
        %v949 = vmul.f32 %v927, %v385
        %v950 = vmul.f32 %v926, %v386
        %v951 = vmul.f32 %v925, %v385
        %v952 = vmul.f32 %v924, %v386
        %v953 = vmul.f32 %v923, %v385
        %v954 = vmul.f32 %v938, %v386
        %v955 = vadd.f32 %v890, %v939
        %v956 = vadd.f32 %v891, %v940
        %v957 = vadd.f32 %v892, %v941
        %v958 = vadd.f32 %v893, %v942
        %v959 = vadd.f32 %v894, %v943
        %v960 = vadd.f32 %v895, %v944
        %v961 = vadd.f32 %v896, %v945
        %v962 = vadd.f32 %v897, %v946
        %v963 = vadd.f32 %v898, %v947
        %v964 = vadd.f32 %v899, %v948
        %v965 = vadd.f32 %v900, %v949
        %v966 = vadd.f32 %v901, %v950
        %v967 = vadd.f32 %v902, %v951
        %v968 = vadd.f32 %v903, %v952
        %v969 = vadd.f32 %v904, %v953
        %v970 = vadd.f32 %v905, %v954
        %v971 = vld [vmem:[#allocation11] sm:$0x1]
        %v972 = vperm.slane %v971, 0
        %v973 = vadd.f32 %v955, %v972
        %v974 = vadd.f32 %v956, %v972
        %v975 = vadd.f32 %v957, %v972
        %v976 = vadd.f32 %v958, %v972
        %v977 = vadd.f32 %v959, %v972
        %v978 = vadd.f32 %v960, %v972
        %v979 = vadd.f32 %v961, %v972
        %v980 = vadd.f32 %v962, %v972
        %v981 = vadd.f32 %v963, %v972
        %v982 = vadd.f32 %v964, %v972
        %v983 = vadd.f32 %v965, %v972
        %v984 = vadd.f32 %v966, %v972
        %v985 = vadd.f32 %v967, %v972
        %v986 = vadd.f32 %v968, %v972
        %v987 = vadd.f32 %v969, %v972
        %v988 = vadd.f32 %v970, %v972
        %v989 = vmax.f32 %v973, 0.0
        %v990 = vmax.f32 %v974, 0.0
        %v991 = vmax.f32 %v975, 0.0
        %v992 = vmax.f32 %v976, 0.0
        %v993 = vmax.f32 %v977, 0.0
        %v994 = vmax.f32 %v978, 0.0
        %v995 = vmax.f32 %v979, 0.0
        %v996 = vmax.f32 %v980, 0.0
        %v997 = vmax.f32 %v981, 0.0
        %v998 = vmax.f32 %v982, 0.0
        %v999 = vmax.f32 %v983, 0.0
        %v1000 = vmax.f32 %v984, 0.0
        %v1001 = vmax.f32 %v985, 0.0
        %v1002 = vmax.f32 %v986, 0.0
        %v1003 = vmax.f32 %v987, 0.0
        %v1004 = vmax.f32 %v988, 0.0
        %v1005 = vpack.c.bf16 %v990, %v989
        %v1006 = vpack.c.bf16 %v992, %v991
        %v1007 = vpack.c.bf16 %v994, %v993
        %v1008 = vpack.c.bf16 %v996, %v995
        %v1009 = vpack.c.bf16 %v998, %v997
        %v1010 = vpack.c.bf16 %v1000, %v999
        %v1011 = vpack.c.bf16 %v1002, %v1001
        %v1012 = vpack.c.bf16 %v1004, %v1003
        %v1013 = vld [vmem:[#allocation7] sm:$0xff]
        %v1014 = vld [vmem:[#allocation7 + $0x8] sm:$0xf]
        %v1015 = vld [vmem:[#allocation7 + $0xc] sm:$0xff]
        %v1016 = vld [vmem:[#allocation7 + $0x14] sm:$0xf]
        %v1017 = vld [vmem:[#allocation7 + $0x18] sm:$0xff]
        %v1018 = vld [vmem:[#allocation7 + $0x20] sm:$0xf]
        %v1019 = vld [vmem:[#allocation7 + $0x24] sm:$0xff]
        %v1020 = vld [vmem:[#allocation7 + $0x2c] sm:$0xf]
        %v1021 = vld [vmem:[#allocation7 + $0x30] sm:$0xff]
        %v1022 = vld [vmem:[#allocation7 + $0x38] sm:$0xf]
        %v1023 = vld [vmem:[#allocation7 + $0x3c] sm:$0xff]
        %v1024 = vld [vmem:[#allocation7 + $0x44] sm:$0xf]
        %v1025 = vld [vmem:[#allocation7 + $0x48] sm:$0xff]
        %v1026 = vld [vmem:[#allocation7 + $0x50] sm:$0xf]
        %v1027 = vld [vmem:[#allocation7 + $0x54] sm:$0xff]
        %v1028 = vld [vmem:[#allocation7 + $0x5c] sm:$0xf]
        %v1029 = vld [vmem:[#allocation7 + $0x60] sm:$0xff]
        %v1030 = vld [vmem:[#allocation7 + $0x68] sm:$0xf]
        %v1031 = vld [vmem:[#allocation7 + $0x6c] sm:$0xff]
        %v1032 = vld [vmem:[#allocation7 + $0x74] sm:$0xf]
        %v1033 = vld [vmem:[#allocation7 + $0x78] sm:$0xff]
        %v1034 = vld [vmem:[#allocation7 + $0x80] sm:$0xf]
        %v1035 = vld [vmem:[#allocation7 + $0x84] sm:$0xff]
        %v1036 = vld [vmem:[#allocation7 + $0x8c] sm:$0xf]
        %v1037 = vld [vmem:[#allocation7 + $0x90] sm:$0xff]
        %v1038 = vld [vmem:[#allocation7 + $0x98] sm:$0xf]
        %v1039 = vld [vmem:[#allocation7 + $0x9c] sm:$0xff]
        %v1040 = vld [vmem:[#allocation7 + $0xa4] sm:$0xf]
        %v1041 = vld [vmem:[#allocation7 + $0xa8] sm:$0xff]
        %v1042 = vld [vmem:[#allocation7 + $0xb0] sm:$0xf]
        %v1043 = vld [vmem:[#allocation7 + $0xb4] sm:$0xff]
        %v1044 = vld [vmem:[#allocation7 + $0xbc] sm:$0xf]
        %v1077 = vunpack.c.l.b16 %v1013
        %v1078 = vunpack.c.h.b16 %v1013
        %v1079 = vunpack.c.l.b16 %v1014
        %v1080 = vunpack.c.l.b16 %v1015
        %v1081 = vunpack.c.h.b16 %v1015
        %v1082 = vunpack.c.l.b16 %v1016
        %v1083 = vunpack.c.l.b16 %v1017
        %v1084 = vunpack.c.h.b16 %v1017
        %v1085 = vunpack.c.l.b16 %v1018
        %v1086 = vunpack.c.l.b16 %v1019
        %v1087 = vunpack.c.h.b16 %v1019
        %v1088 = vunpack.c.l.b16 %v1020
        %v1089 = vunpack.c.l.b16 %v1021
        %v1090 = vunpack.c.h.b16 %v1021
        %v1091 = vunpack.c.l.b16 %v1022
        %v1092 = vunpack.c.l.b16 %v1023
        %v1093 = vunpack.c.h.b16 %v1023
        %v1094 = vunpack.c.l.b16 %v1024
        %v1095 = vunpack.c.l.b16 %v1025
        %v1096 = vunpack.c.h.b16 %v1025
        %v1097 = vunpack.c.l.b16 %v1026
        %v1098 = vunpack.c.l.b16 %v1027
        %v1099 = vunpack.c.h.b16 %v1027
        %v1100 = vunpack.c.l.b16 %v1028
        %v1101 = vunpack.c.l.b16 %v1029
        %v1102 = vunpack.c.h.b16 %v1029
        %v1103 = vunpack.c.l.b16 %v1030
        %v1104 = vunpack.c.l.b16 %v1031
        %v1105 = vunpack.c.h.b16 %v1031
        %v1106 = vunpack.c.l.b16 %v1032
        %v1107 = vunpack.c.l.b16 %v1033
        %v1108 = vunpack.c.h.b16 %v1033
        %v1109 = vunpack.c.l.b16 %v1034
        %v1110 = vunpack.c.l.b16 %v1035
        %v1111 = vunpack.c.h.b16 %v1035
        %v1112 = vunpack.c.l.b16 %v1036
        %v1113 = vunpack.c.l.b16 %v1037
        %v1114 = vunpack.c.h.b16 %v1037
        %v1115 = vunpack.c.l.b16 %v1038
        %v1116 = vunpack.c.l.b16 %v1039
        %v1117 = vunpack.c.h.b16 %v1039
        %v1118 = vunpack.c.l.b16 %v1040
        %v1119 = vunpack.c.l.b16 %v1041
        %v1120 = vunpack.c.h.b16 %v1041
        %v1121 = vunpack.c.l.b16 %v1042
        %v1122 = vunpack.c.l.b16 %v1043
        %v1123 = vunpack.c.h.b16 %v1043
        %v1124 = vunpack.c.l.b16 %v1044
        %v1125 = vpack.c.b16 %v1080, %v1077
        %v1126 = vpack.c.b16 %v1081, %v1078
        %v1127 = vpack.c.b16 %v1082, %v1079
        %v1128 = vpack.c.b16 %v1086, %v1083
        %v1129 = vpack.c.b16 %v1087, %v1084
        %v1130 = vpack.c.b16 %v1088, %v1085
        %v1131 = vpack.c.b16 %v1092, %v1089
        %v1132 = vpack.c.b16 %v1093, %v1090
        %v1133 = vpack.c.b16 %v1094, %v1091
        %v1134 = vpack.c.b16 %v1098, %v1095
        %v1135 = vpack.c.b16 %v1099, %v1096
        %v1136 = vpack.c.b16 %v1100, %v1097
        %v1137 = vpack.c.b16 %v1104, %v1101
        %v1138 = vpack.c.b16 %v1105, %v1102
        %v1139 = vpack.c.b16 %v1106, %v1103
        %v1140 = vpack.c.b16 %v1110, %v1107
        %v1141 = vpack.c.b16 %v1111, %v1108
        %v1142 = vpack.c.b16 %v1112, %v1109
        %v1143 = vpack.c.b16 %v1116, %v1113
        %v1144 = vpack.c.b16 %v1117, %v1114
        %v1145 = vpack.c.b16 %v1118, %v1115
        %v1146 = vpack.c.b16 %v1122, %v1119
        %v1147 = vpack.c.b16 %v1123, %v1120
        %v1148 = vpack.c.b16 %v1124, %v1121
        %1173 = vmatpush.bf16.msra.mxu0 %v1146
        %1174 = vmatpush.bf16.msra.mxu0 %v1143
        %1175 = vmatpush.bf16.msra.mxu0 %v1140
        %1176 = vmatpush.bf16.msra.mxu0 %v1137
        %1177 = vmatpush.bf16.msra.mxu0 %v1134
        %1178 = vmatpush.bf16.msra.mxu0 %v1131
        %1179 = vmatpush.bf16.msra.mxu0 %v1128
        %1180 = vmatpush.bf16.msra.mxu0 %v1125
        %1181 = vmatmul.bf16.gmra.mxu0 %v1005
        %v1182 = vpop.f32.mrf.mxu0
        %v1183 = vadd.f32 0.0, %v1182
        %v1184 = vpop.f32.mrf.mxu0
        %v1185 = vadd.f32 0.0, %v1184
        %1186 = vmatmul.bf16.gmra.mxu0 %v1006
        %v1187 = vpop.f32.mrf.mxu0
        %v1188 = vadd.f32 0.0, %v1187
        %v1189 = vpop.f32.mrf.mxu0
        %v1190 = vadd.f32 0.0, %v1189
        %1191 = vmatmul.bf16.gmra.mxu0 %v1007
        %v1192 = vpop.f32.mrf.mxu0
        %v1193 = vadd.f32 0.0, %v1192
        %v1194 = vpop.f32.mrf.mxu0
        %v1195 = vadd.f32 0.0, %v1194
        %1196 = vmatmul.bf16.gmra.mxu0 %v1008
        %v1197 = vpop.f32.mrf.mxu0
        %v1198 = vadd.f32 0.0, %v1197
        %v1199 = vpop.f32.mrf.mxu0
        %v1200 = vadd.f32 0.0, %v1199
        %1201 = vmatmul.bf16.gmra.mxu0 %v1009
        %v1202 = vpop.f32.mrf.mxu0
        %v1203 = vadd.f32 0.0, %v1202
        %v1204 = vpop.f32.mrf.mxu0
        %v1205 = vadd.f32 0.0, %v1204
        %1206 = vmatmul.bf16.gmra.mxu0 %v1010
        %v1207 = vpop.f32.mrf.mxu0
        %v1208 = vadd.f32 0.0, %v1207
        %v1209 = vpop.f32.mrf.mxu0
        %v1210 = vadd.f32 0.0, %v1209
        %1211 = vmatmul.bf16.gmra.mxu0 %v1011
        %v1212 = vpop.f32.mrf.mxu0
        %v1213 = vadd.f32 0.0, %v1212
        %v1214 = vpop.f32.mrf.mxu0
        %v1215 = vadd.f32 0.0, %v1214
        %1216 = vmatmul.bf16.gmra.mxu0 %v1012
        %v1217 = vpop.f32.mrf.mxu0
        %v1218 = vadd.f32 0.0, %v1217
        %v1219 = vpop.f32.mrf.mxu0
        %v1220 = vadd.f32 0.0, %v1219
        %1221 = vdwg.mxu0
        %1222 = vmatpush.bf16.msra.mxu0 %v1147
        %1223 = vmatpush.bf16.msra.mxu0 %v1144
        %1224 = vmatpush.bf16.msra.mxu0 %v1141
        %1225 = vmatpush.bf16.msra.mxu0 %v1138
        %1226 = vmatpush.bf16.msra.mxu0 %v1135
        %1227 = vmatpush.bf16.msra.mxu0 %v1132
        %1228 = vmatpush.bf16.msra.mxu0 %v1129
        %1229 = vmatpush.bf16.msra.mxu0 %v1126
        %1230 = vmatmul.bf16.gmra.mxu0 %v1005
        %v1231 = vpop.f32.mrf.mxu0
        %v1232 = vadd.f32 0.0, %v1231
        %v1233 = vpop.f32.mrf.mxu0
        %v1234 = vadd.f32 0.0, %v1233
        %1235 = vmatmul.bf16.gmra.mxu0 %v1006
        %v1236 = vpop.f32.mrf.mxu0
        %v1237 = vadd.f32 0.0, %v1236
        %v1238 = vpop.f32.mrf.mxu0
        %v1239 = vadd.f32 0.0, %v1238
        %1240 = vmatmul.bf16.gmra.mxu0 %v1007
        %v1241 = vpop.f32.mrf.mxu0
        %v1242 = vadd.f32 0.0, %v1241
        %v1243 = vpop.f32.mrf.mxu0
        %v1244 = vadd.f32 0.0, %v1243
        %1245 = vmatmul.bf16.gmra.mxu0 %v1008
        %v1246 = vpop.f32.mrf.mxu0
        %v1247 = vadd.f32 0.0, %v1246
        %v1248 = vpop.f32.mrf.mxu0
        %v1249 = vadd.f32 0.0, %v1248
        %1250 = vmatmul.bf16.gmra.mxu0 %v1009
        %v1251 = vpop.f32.mrf.mxu0
        %v1252 = vadd.f32 0.0, %v1251
        %v1253 = vpop.f32.mrf.mxu0
        %v1254 = vadd.f32 0.0, %v1253
        %1255 = vmatmul.bf16.gmra.mxu0 %v1010
        %v1256 = vpop.f32.mrf.mxu0
        %v1257 = vadd.f32 0.0, %v1256
        %v1258 = vpop.f32.mrf.mxu0
        %v1259 = vadd.f32 0.0, %v1258
        %1260 = vmatmul.bf16.gmra.mxu0 %v1011
        %v1261 = vpop.f32.mrf.mxu0
        %v1262 = vadd.f32 0.0, %v1261
        %v1263 = vpop.f32.mrf.mxu0
        %v1264 = vadd.f32 0.0, %v1263
        %1265 = vmatmul.bf16.gmra.mxu0 %v1012
        %v1266 = vpop.f32.mrf.mxu0
        %v1267 = vadd.f32 0.0, %v1266
        %v1268 = vpop.f32.mrf.mxu0
        %v1269 = vadd.f32 0.0, %v1268
        %1270 = vdwg.mxu0
        %1271 = vmatpush.bf16.msra.mxu0 %v1148
        %1272 = vmatpush.bf16.msra.mxu0 %v1145
        %1273 = vmatpush.bf16.msra.mxu0 %v1142
        %1274 = vmatpush.bf16.msra.mxu0 %v1139
        %1275 = vmatpush.bf16.msra.mxu0 %v1136
        %1276 = vmatpush.bf16.msra.mxu0 %v1133
        %1277 = vmatpush.bf16.msra.mxu0 %v1130
        %1278 = vmatpush.bf16.msra.mxu0 %v1127
        %1279 = vmatmul.bf16.gmra.mxu0 %v1005
        %v1280 = vpop.f32.mrf.mxu0
        %v1281 = vadd.f32 0.0, %v1280
        %v1282 = vpop.f32.mrf.mxu0
        %v1283 = vadd.f32 0.0, %v1282
        %1284 = vmatmul.bf16.gmra.mxu0 %v1006
        %v1285 = vpop.f32.mrf.mxu0
        %v1286 = vadd.f32 0.0, %v1285
        %v1287 = vpop.f32.mrf.mxu0
        %v1288 = vadd.f32 0.0, %v1287
        %1289 = vmatmul.bf16.gmra.mxu0 %v1007
        %v1290 = vpop.f32.mrf.mxu0
        %v1291 = vadd.f32 0.0, %v1290
        %v1292 = vpop.f32.mrf.mxu0
        %v1293 = vadd.f32 0.0, %v1292
        %1294 = vmatmul.bf16.gmra.mxu0 %v1008
        %v1295 = vpop.f32.mrf.mxu0
        %v1296 = vadd.f32 0.0, %v1295
        %v1297 = vpop.f32.mrf.mxu0
        %v1298 = vadd.f32 0.0, %v1297
        %1299 = vmatmul.bf16.gmra.mxu0 %v1009
        %v1300 = vpop.f32.mrf.mxu0
        %v1301 = vadd.f32 0.0, %v1300
        %v1302 = vpop.f32.mrf.mxu0
        %v1303 = vadd.f32 0.0, %v1302
        %1304 = vmatmul.bf16.gmra.mxu0 %v1010
        %v1305 = vpop.f32.mrf.mxu0
        %v1306 = vadd.f32 0.0, %v1305
        %v1307 = vpop.f32.mrf.mxu0
        %v1308 = vadd.f32 0.0, %v1307
        %1309 = vmatmul.bf16.gmra.mxu0 %v1011
        %v1310 = vpop.f32.mrf.mxu0
        %v1311 = vadd.f32 0.0, %v1310
        %v1312 = vpop.f32.mrf.mxu0
        %v1313 = vadd.f32 0.0, %v1312
        %1314 = vmatmul.bf16.gmra.mxu0 %v1012
        %v1315 = vpop.f32.mrf.mxu0
        %v1316 = vadd.f32 0.0, %v1315
        %v1317 = vpop.f32.mrf.mxu0
        %v1318 = vadd.f32 0.0, %v1317
        %1319 = vdwg.mxu0
        %v1320 = vrot.slane %v1232, 7
        %v1321 = vrot.slane %v1234, 7
        %v1322 = vrot.slane %v1237, 7
        %v1323 = vrot.slane %v1239, 7
        %v1324 = vrot.slane %v1242, 7
        %v1325 = vrot.slane %v1244, 7
        %v1326 = vrot.slane %v1247, 7
        %v1327 = vrot.slane %v1249, 7
        %v1328 = vrot.slane %v1252, 7
        %v1329 = vrot.slane %v1254, 7
        %v1330 = vrot.slane %v1257, 7
        %v1331 = vrot.slane %v1259, 7
        %v1332 = vrot.slane %v1262, 7
        %v1333 = vrot.slane %v1264, 7
        %v1334 = vrot.slane %v1267, 7
        %v1335 = vrot.slane %v1269, 7
        %v1336 = vsel %vm857, %v1334, %v1335
        %v1337 = vsel %vm857, %v1333, %v1334
        %v1338 = vsel %vm857, %v1332, %v1333
        %v1339 = vsel %vm857, %v1331, %v1332
        %v1340 = vsel %vm857, %v1330, %v1331
        %v1341 = vsel %vm857, %v1329, %v1330
        %v1342 = vsel %vm857, %v1328, %v1329
        %v1343 = vsel %vm857, %v1327, %v1328
        %v1344 = vsel %vm857, %v1326, %v1327
        %v1345 = vsel %vm857, %v1325, %v1326
        %v1346 = vsel %vm857, %v1324, %v1325
        %v1347 = vsel %vm857, %v1323, %v1324
        %v1348 = vsel %vm857, %v1322, %v1323
        %v1349 = vsel %vm857, %v1321, %v1322
        %v1350 = vsel %vm857, %v1320, %v1321
        %v1351 = vsel %vm857, %v1335, %v1320
        %v1352 = vmul.f32 %v1351, %v379
        %v1353 = vmul.f32 %v1350, %v380
        %v1354 = vmul.f32 %v1349, %v379
        %v1355 = vmul.f32 %v1348, %v380
        %v1356 = vmul.f32 %v1347, %v379
        %v1357 = vmul.f32 %v1346, %v380
        %v1358 = vmul.f32 %v1345, %v379
        %v1359 = vmul.f32 %v1344, %v380
        %v1360 = vmul.f32 %v1343, %v379
        %v1361 = vmul.f32 %v1342, %v380
        %v1362 = vmul.f32 %v1341, %v379
        %v1363 = vmul.f32 %v1340, %v380
        %v1364 = vmul.f32 %v1339, %v379
        %v1365 = vmul.f32 %v1338, %v380
        %v1366 = vmul.f32 %v1337, %v379
        %v1367 = vmul.f32 %v1336, %v380
        %v1368 = vadd.f32 %v1183, %v1352
        %v1369 = vadd.f32 %v1185, %v1353
        %v1370 = vadd.f32 %v1188, %v1354
        %v1371 = vadd.f32 %v1190, %v1355
        %v1372 = vadd.f32 %v1193, %v1356
        %v1373 = vadd.f32 %v1195, %v1357
        %v1374 = vadd.f32 %v1198, %v1358
        %v1375 = vadd.f32 %v1200, %v1359
        %v1376 = vadd.f32 %v1203, %v1360
        %v1377 = vadd.f32 %v1205, %v1361
        %v1378 = vadd.f32 %v1208, %v1362
        %v1379 = vadd.f32 %v1210, %v1363
        %v1380 = vadd.f32 %v1213, %v1364
        %v1381 = vadd.f32 %v1215, %v1365
        %v1382 = vadd.f32 %v1218, %v1366
        %v1383 = vadd.f32 %v1220, %v1367
        %v1384 = vrot.slane %v1281, 1
        %v1385 = vrot.slane %v1283, 1
        %v1386 = vrot.slane %v1286, 1
        %v1387 = vrot.slane %v1288, 1
        %v1388 = vrot.slane %v1291, 1
        %v1389 = vrot.slane %v1293, 1
        %v1390 = vrot.slane %v1296, 1
        %v1391 = vrot.slane %v1298, 1
        %v1392 = vrot.slane %v1301, 1
        %v1393 = vrot.slane %v1303, 1
        %v1394 = vrot.slane %v1306, 1
        %v1395 = vrot.slane %v1308, 1
        %v1396 = vrot.slane %v1311, 1
        %v1397 = vrot.slane %v1313, 1
        %v1398 = vrot.slane %v1316, 1
        %v1399 = vrot.slane %v1318, 1
        %v1400 = vsel %vm922, %v1398, %v1399
        %v1401 = vsel %vm922, %v1397, %v1398
        %v1402 = vsel %vm922, %v1396, %v1397
        %v1403 = vsel %vm922, %v1395, %v1396
        %v1404 = vsel %vm922, %v1394, %v1395
        %v1405 = vsel %vm922, %v1393, %v1394
        %v1406 = vsel %vm922, %v1392, %v1393
        %v1407 = vsel %vm922, %v1391, %v1392
        %v1408 = vsel %vm922, %v1390, %v1391
        %v1409 = vsel %vm922, %v1389, %v1390
        %v1410 = vsel %vm922, %v1388, %v1389
        %v1411 = vsel %vm922, %v1387, %v1388
        %v1412 = vsel %vm922, %v1386, %v1387
        %v1413 = vsel %vm922, %v1385, %v1386
        %v1414 = vsel %vm922, %v1384, %v1385
        %v1415 = vsel %vm922, %v1399, %v1384
        %v1416 = vmul.f32 %v1414, %v385
        %v1417 = vmul.f32 %v1413, %v386
        %v1418 = vmul.f32 %v1412, %v385
        %v1419 = vmul.f32 %v1411, %v386
        %v1420 = vmul.f32 %v1410, %v385
        %v1421 = vmul.f32 %v1409, %v386
        %v1422 = vmul.f32 %v1408, %v385
        %v1423 = vmul.f32 %v1407, %v386
        %v1424 = vmul.f32 %v1406, %v385
        %v1425 = vmul.f32 %v1405, %v386
        %v1426 = vmul.f32 %v1404, %v385
        %v1427 = vmul.f32 %v1403, %v386
        %v1428 = vmul.f32 %v1402, %v385
        %v1429 = vmul.f32 %v1401, %v386
        %v1430 = vmul.f32 %v1400, %v385
        %v1431 = vmul.f32 %v1415, %v386
        %v1432 = vadd.f32 %v1368, %v1416
        %v1433 = vadd.f32 %v1369, %v1417
        %v1434 = vadd.f32 %v1370, %v1418
        %v1435 = vadd.f32 %v1371, %v1419
        %v1436 = vadd.f32 %v1372, %v1420
        %v1437 = vadd.f32 %v1373, %v1421
        %v1438 = vadd.f32 %v1374, %v1422
        %v1439 = vadd.f32 %v1375, %v1423
        %v1440 = vadd.f32 %v1376, %v1424
        %v1441 = vadd.f32 %v1377, %v1425
        %v1442 = vadd.f32 %v1378, %v1426
        %v1443 = vadd.f32 %v1379, %v1427
        %v1444 = vadd.f32 %v1380, %v1428
        %v1445 = vadd.f32 %v1381, %v1429
        %v1446 = vadd.f32 %v1382, %v1430
        %v1447 = vadd.f32 %v1383, %v1431
        %v1448 = vld [vmem:[#allocation11 + $0x1] sm:$0x1]
        %v1449 = vperm.slane %v1448, 0
        %v1450 = vadd.f32 %v1432, %v1449
        %v1451 = vadd.f32 %v1433, %v1449
        %v1452 = vadd.f32 %v1434, %v1449
        %v1453 = vadd.f32 %v1435, %v1449
        %v1454 = vadd.f32 %v1436, %v1449
        %v1455 = vadd.f32 %v1437, %v1449
        %v1456 = vadd.f32 %v1438, %v1449
        %v1457 = vadd.f32 %v1439, %v1449
        %v1458 = vadd.f32 %v1440, %v1449
        %v1459 = vadd.f32 %v1441, %v1449
        %v1460 = vadd.f32 %v1442, %v1449
        %v1461 = vadd.f32 %v1443, %v1449
        %v1462 = vadd.f32 %v1444, %v1449
        %v1463 = vadd.f32 %v1445, %v1449
        %v1464 = vadd.f32 %v1446, %v1449
        %v1465 = vadd.f32 %v1447, %v1449
        %v1466 = vadd.f32 %v1450, %v1451
        %v1467 = vrot.slane %v1466, 4
        %v1468 = vadd.f32 %v1466, %v1467
        %v1469 = vrot.slane %v1468, 2
        %v1470 = vadd.f32 %v1468, %v1469
        %v1471 = vrot.slane %v1470, 1
        %v1472 = vadd.f32 %v1470, %v1471
        %v1473 = vadd.f32 %v1452, %v1453
        %v1474 = vrot.slane %v1473, 4
        %v1475 = vadd.f32 %v1473, %v1474
        %v1476 = vrot.slane %v1475, 2
        %v1477 = vadd.f32 %v1475, %v1476
        %v1478 = vrot.slane %v1477, 1
        %v1479 = vadd.f32 %v1477, %v1478
        %v1480 = vadd.f32 %v1454, %v1455
        %v1481 = vrot.slane %v1480, 4
        %v1482 = vadd.f32 %v1480, %v1481
        %v1483 = vrot.slane %v1482, 2
        %v1484 = vadd.f32 %v1482, %v1483
        %v1485 = vrot.slane %v1484, 1
        %v1486 = vadd.f32 %v1484, %v1485
        %v1487 = vadd.f32 %v1456, %v1457
        %v1488 = vrot.slane %v1487, 4
        %v1489 = vadd.f32 %v1487, %v1488
        %v1490 = vrot.slane %v1489, 2
        %v1491 = vadd.f32 %v1489, %v1490
        %v1492 = vrot.slane %v1491, 1
        %v1493 = vadd.f32 %v1491, %v1492
        %v1494 = vadd.f32 %v1458, %v1459
        %v1495 = vrot.slane %v1494, 4
        %v1496 = vadd.f32 %v1494, %v1495
        %v1497 = vrot.slane %v1496, 2
        %v1498 = vadd.f32 %v1496, %v1497
        %v1499 = vrot.slane %v1498, 1
        %v1500 = vadd.f32 %v1498, %v1499
        %v1501 = vadd.f32 %v1460, %v1461
        %v1502 = vrot.slane %v1501, 4
        %v1503 = vadd.f32 %v1501, %v1502
        %v1504 = vrot.slane %v1503, 2
        %v1505 = vadd.f32 %v1503, %v1504
        %v1506 = vrot.slane %v1505, 1
        %v1507 = vadd.f32 %v1505, %v1506
        %v1508 = vadd.f32 %v1462, %v1463
        %v1509 = vrot.slane %v1508, 4
        %v1510 = vadd.f32 %v1508, %v1509
        %v1511 = vrot.slane %v1510, 2
        %v1512 = vadd.f32 %v1510, %v1511
        %v1513 = vrot.slane %v1512, 1
        %v1514 = vadd.f32 %v1512, %v1513
        %v1515 = vadd.f32 %v1464, %v1465
        %v1516 = vrot.slane %v1515, 4
        %v1517 = vadd.f32 %v1515, %v1516
        %v1518 = vrot.slane %v1517, 2
        %v1519 = vadd.f32 %v1517, %v1518
        %v1520 = vrot.slane %v1519, 1
        %v1521 = vadd.f32 %v1519, %v1520
        %v1522 = vrcp.pop 16.0
        %v1523 = vmul.f32 16.0, %v1522
        %v1524 = vsub.f32 1.0, %v1523
        %v1525 = vmul.f32 %v1522, %v1524
        %v1526 = vadd.f32 %v1522, %v1525
        %vm1527 = vweird.f32 %v1522
        %v1528 = vsel %vm1527, %v1522, %v1526
        %v1529 = vmul.f32 %v1472, %v1528
        %v1530 = vmul.f32 %v1479, %v1528
        %v1531 = vmul.f32 %v1486, %v1528
        %v1532 = vmul.f32 %v1493, %v1528
        %v1533 = vmul.f32 %v1500, %v1528
        %v1534 = vmul.f32 %v1507, %v1528
        %v1535 = vmul.f32 %v1514, %v1528
        %v1536 = vmul.f32 %v1521, %v1528
        %v1537 = vpack.c.bf16 %v1529, %v1529
        %v1538 = vpack.c.bf16 %v1530, %v1530
        %v1539 = vpack.c.bf16 %v1531, %v1531
        %v1540 = vpack.c.bf16 %v1532, %v1532
        %v1541 = vpack.c.bf16 %v1533, %v1533
        %v1542 = vpack.c.bf16 %v1534, %v1534
        %v1543 = vpack.c.bf16 %v1535, %v1535
        %v1544 = vpack.c.bf16 %v1536, %v1536
        %v1545 = vld [vmem:[#allocation8] sm:$0xf]
        %v1546 = vld [vmem:[#allocation8 + $0x4] sm:$0xf]
        %v1547 = vld [vmem:[#allocation8 + $0x8] sm:$0xf]
        %v1548 = vld [vmem:[#allocation8 + $0xc] sm:$0xf]
        %v1549 = vld [vmem:[#allocation8 + $0x10] sm:$0xf]
        %v1550 = vld [vmem:[#allocation8 + $0x14] sm:$0xf]
        %v1551 = vld [vmem:[#allocation8 + $0x18] sm:$0xf]
        %v1552 = vld [vmem:[#allocation8 + $0x1c] sm:$0xf]
        %v1553 = vld [vmem:[#allocation8 + $0x20] sm:$0xf]
        %v1554 = vld [vmem:[#allocation8 + $0x24] sm:$0xf]
        %v1555 = vld [vmem:[#allocation8 + $0x28] sm:$0xf]
        %v1556 = vld [vmem:[#allocation8 + $0x2c] sm:$0xf]
        %v1557 = vld [vmem:[#allocation8 + $0x30] sm:$0xf]
        %v1558 = vld [vmem:[#allocation8 + $0x34] sm:$0xf]
        %v1559 = vld [vmem:[#allocation8 + $0x38] sm:$0xf]
        %v1560 = vld [vmem:[#allocation8 + $0x3c] sm:$0xf]
        %v1561 = vld [vmem:[#allocation11 + $0x3] sm:$0x1]
        %v1562 = vperm.slane %v1561, 0
        %v1571 = vunpack.c.l.b16 %v1537
        %v1572 = vunpack.c.l.b16 %v1538
        %v1573 = vunpack.c.l.b16 %v1539
        %v1574 = vunpack.c.l.b16 %v1540
        %v1575 = vunpack.c.l.b16 %v1541
        %v1576 = vunpack.c.l.b16 %v1542
        %v1577 = vunpack.c.l.b16 %v1543
        %v1578 = vunpack.c.l.b16 %v1544
        %vm1579 = vcmask 1041409
        %v1580 = vsel %vm1579, %v1572, %v1571
        %vm1581 = vcmask 1042434
        %v1582 = vsel %vm1581, %v1573, %v1580
        %vm1583 = vcmask 1043459
        %v1584 = vsel %vm1583, %v1574, %v1582
        %vm1585 = vcmask 1044484
        %v1586 = vsel %vm1585, %v1575, %v1584
        %vm1587 = vcmask 1045509
        %v1588 = vsel %vm1587, %v1576, %v1586
        %vm1589 = vcmask 1046534
        %v1590 = vsel %vm1589, %v1577, %v1588
        %vm1591 = vcmask 1047559
        %v1592 = vsel %vm1591, %v1578, %v1590
        %v1593 = vpack.c.b16 %v1592, %v1592
        %v1611 = vunpack.c.l.b16 %v1545
        %v1612 = vunpack.c.l.b16 %v1546
        %v1613 = vunpack.c.l.b16 %v1547
        %v1614 = vunpack.c.l.b16 %v1548
        %v1615 = vunpack.c.l.b16 %v1549
        %v1616 = vunpack.c.l.b16 %v1550
        %v1617 = vunpack.c.l.b16 %v1551
        %v1618 = vunpack.c.l.b16 %v1552
        %v1619 = vunpack.c.l.b16 %v1553
        %v1620 = vunpack.c.l.b16 %v1554
        %v1621 = vunpack.c.l.b16 %v1555
        %v1622 = vunpack.c.l.b16 %v1556
        %v1623 = vunpack.c.l.b16 %v1557
        %v1624 = vunpack.c.l.b16 %v1558
        %v1625 = vunpack.c.l.b16 %v1559
        %v1626 = vunpack.c.l.b16 %v1560
        %v1627 = vpack.c.b16 %v1612, %v1611
        %v1628 = vpack.c.b16 %v1614, %v1613
        %v1629 = vpack.c.b16 %v1616, %v1615
        %v1630 = vpack.c.b16 %v1618, %v1617
        %v1631 = vpack.c.b16 %v1620, %v1619
        %v1632 = vpack.c.b16 %v1622, %v1621
        %v1633 = vpack.c.b16 %v1624, %v1623
        %v1634 = vpack.c.b16 %v1626, %v1625
        %1643 = vmatpush.bf16.msra.mxu0 %v1634
        %1644 = vmatpush.bf16.msra.mxu0 %v1633
        %1645 = vmatpush.bf16.msra.mxu0 %v1632
        %1646 = vmatpush.bf16.msra.mxu0 %v1631
        %1647 = vmatpush.bf16.msra.mxu0 %v1630
        %1648 = vmatpush.bf16.msra.mxu0 %v1629
        %1649 = vmatpush.bf16.msra.mxu0 %v1628
        %1650 = vmatpush.bf16.msra.mxu0 %v1627
        %1651 = vmatmul.bf16.gmra.mxu0 %v1593
        %v1652 = vpop.f32.mrf.mxu0
        %v1653 = vadd.f32 %v1562, %v1652
        %v1654 = vpop.f32.mrf.mxu0
        %1655 = vdwg.mxu0
        %v1656 = vmax.f32 %v1653, 0.0
        %v1657 = vpack.c.bf16 %v1656, %v1656
        %v1658 = vld [vmem:[#allocation10] sm:$0xf]
        %v1659 = vld [vmem:[#allocation10 + $0x4] sm:$0xf]
        %v1660 = vld [vmem:[#allocation10 + $0x8] sm:$0xf]
        %v1661 = vld [vmem:[#allocation10 + $0xc] sm:$0xf]
        %v1662 = vld [vmem:[#allocation10 + $0x10] sm:$0xf]
        %v1663 = vld [vmem:[#allocation10 + $0x14] sm:$0xf]
        %v1664 = vld [vmem:[#allocation10 + $0x18] sm:$0xf]
        %v1665 = vld [vmem:[#allocation10 + $0x1c] sm:$0xf]
        %v1666 = vld [vmem:[#allocation10 + $0x20] sm:$0xf]
        %v1667 = vld [vmem:[#allocation10 + $0x24] sm:$0xf]
        %v1668 = vld [vmem:[#allocation10 + $0x28] sm:$0xf]
        %v1669 = vld [vmem:[#allocation10 + $0x2c] sm:$0xf]
        %v1670 = vld [vmem:[#allocation10 + $0x30] sm:$0xf]
        %v1671 = vld [vmem:[#allocation10 + $0x34] sm:$0xf]
        %v1672 = vld [vmem:[#allocation10 + $0x38] sm:$0xf]
        %v1673 = vld [vmem:[#allocation10 + $0x3c] sm:$0xf]
        %v1674 = vld [vmem:[#allocation11 + $0x4] sm:$0x1]
        %v1675 = vperm.slane %v1674, 0
        %v1692 = vunpack.c.l.b16 %v1658
        %v1693 = vunpack.c.l.b16 %v1659
        %v1694 = vunpack.c.l.b16 %v1660
        %v1695 = vunpack.c.l.b16 %v1661
        %v1696 = vunpack.c.l.b16 %v1662
        %v1697 = vunpack.c.l.b16 %v1663
        %v1698 = vunpack.c.l.b16 %v1664
        %v1699 = vunpack.c.l.b16 %v1665
        %v1700 = vunpack.c.l.b16 %v1666
        %v1701 = vunpack.c.l.b16 %v1667
        %v1702 = vunpack.c.l.b16 %v1668
        %v1703 = vunpack.c.l.b16 %v1669
        %v1704 = vunpack.c.l.b16 %v1670
        %v1705 = vunpack.c.l.b16 %v1671
        %v1706 = vunpack.c.l.b16 %v1672
        %v1707 = vunpack.c.l.b16 %v1673
        %v1708 = vpack.c.b16 %v1693, %v1692
        %v1709 = vpack.c.b16 %v1695, %v1694
        %v1710 = vpack.c.b16 %v1697, %v1696
        %v1711 = vpack.c.b16 %v1699, %v1698
        %v1712 = vpack.c.b16 %v1701, %v1700
        %v1713 = vpack.c.b16 %v1703, %v1702
        %v1714 = vpack.c.b16 %v1705, %v1704
        %v1715 = vpack.c.b16 %v1707, %v1706
        %1724 = vmatpush.bf16.msra.mxu0 %v1715
        %1725 = vmatpush.bf16.msra.mxu0 %v1714
        %1726 = vmatpush.bf16.msra.mxu0 %v1713
        %1727 = vmatpush.bf16.msra.mxu0 %v1712
        %1728 = vmatpush.bf16.msra.mxu0 %v1711
        %1729 = vmatpush.bf16.msra.mxu0 %v1710
        %1730 = vmatpush.bf16.msra.mxu0 %v1709
        %1731 = vmatpush.bf16.msra.mxu0 %v1708
        %1732 = vmatmul.bf16.gmra.mxu0 %v1657
        %v1733 = vpop.f32.mrf.mxu0
        %v1734 = vadd.f32 %v1675, %v1733
        %v1735 = vpop.f32.mrf.mxu0
        %1736 = vdwg.mxu0
        %v1737 = vxor.u32 %v1734, 2147483648
        %v1738 = vmul.f32 %v1737, 1.442695
        %v1739 = vpow.pop %v1738
        %v1740 = vadd.f32 %v1739, 1.0
        %v1741 = vrcp.pop %v1740
        %v1742 = vmul.f32 %v1740, %v1741
        %v1743 = vsub.f32 1.0, %v1742
        %v1744 = vmul.f32 %v1741, %v1743
        %v1745 = vadd.f32 %v1741, %v1744
        %vm1746 = vweird.f32 %v1740
        %vm1747 = vweird.f32 %v1741
        %vm1748 = vmor %vm1746, %vm1747
        %v1749 = vsel %vm1748, %v1741, %v1745
        %v1750 = vand.u32 2147483647, %v1740
        %vm1751 = vcmp.eq.f32.partialorder %v1750, 8.507059e+37
        %v1752 = vand.u32 %v1740, 2147483648
        %v1753 = vor.u32 1.1754944e-38, %v1752
        %v1754 = vsel %vm1751, %v1753, %v1749
        %v1755 = vmul.f32 1.0, %v1754
        %v1757 = vrot.slane %v1755, 1
        %v1758 = vrot.slane %v1755, 2
        %v1759 = vrot.slane %v1755, 3
        %v1760 = vrot.slane %v1755, 4
        %v1761 = vrot.slane %v1755, 5
        %v1762 = vrot.slane %v1755, 6
        %v1763 = vrot.slane %v1755, 7
        %v1764 = vperm.slane %v1755, 0
        %v1765 = vperm.slane %v1757, 0
        %v1766 = vperm.slane %v1758, 0
        %v1767 = vperm.slane %v1759, 0
        %v1768 = vperm.slane %v1760, 0
        %v1769 = vperm.slane %v1761, 0
        %v1770 = vperm.slane %v1762, 0
        %v1771 = vperm.slane %v1763, 0
        %v1780 = vmul.f32 %v1450, %v1764
        %v1781 = vmul.f32 %v1451, %v1764
        %v1782 = vmul.f32 %v1452, %v1765
        %v1783 = vmul.f32 %v1453, %v1765
        %v1784 = vmul.f32 %v1454, %v1766
        %v1785 = vmul.f32 %v1455, %v1766
        %v1786 = vmul.f32 %v1456, %v1767
        %v1787 = vmul.f32 %v1457, %v1767
        %v1788 = vmul.f32 %v1458, %v1768
        %v1789 = vmul.f32 %v1459, %v1768
        %v1790 = vmul.f32 %v1460, %v1769
        %v1791 = vmul.f32 %v1461, %v1769
        %v1792 = vmul.f32 %v1462, %v1770
        %v1793 = vmul.f32 %v1463, %v1770
        %v1794 = vmul.f32 %v1464, %v1771
        %v1795 = vmul.f32 %v1465, %v1771
        %v1796 = vadd.f32 %v1780, %v825
        %v1797 = vadd.f32 %v1781, %v826
        %v1798 = vadd.f32 %v1782, %v827
        %v1799 = vadd.f32 %v1783, %v828
        %v1800 = vadd.f32 %v1784, %v829
        %v1801 = vadd.f32 %v1785, %v830
        %v1802 = vadd.f32 %v1786, %v831
        %v1803 = vadd.f32 %v1787, %v832
        %v1804 = vadd.f32 %v1788, %v833
        %v1805 = vadd.f32 %v1789, %v834
        %v1806 = vadd.f32 %v1790, %v835
        %v1807 = vadd.f32 %v1791, %v836
        %v1808 = vadd.f32 %v1792, %v837
        %v1809 = vadd.f32 %v1793, %v838
        %v1810 = vadd.f32 %v1794, %v839
        %v1811 = vadd.f32 %v1795, %v840
        %v1812 = vmax.f32 %v1796, 0.0
        %v1813 = vmax.f32 %v1797, 0.0
        %v1814 = vmax.f32 %v1798, 0.0
        %v1815 = vmax.f32 %v1799, 0.0
        %v1816 = vmax.f32 %v1800, 0.0
        %v1817 = vmax.f32 %v1801, 0.0
        %v1818 = vmax.f32 %v1802, 0.0
        %v1819 = vmax.f32 %v1803, 0.0
        %v1820 = vmax.f32 %v1804, 0.0
        %v1821 = vmax.f32 %v1805, 0.0
        %v1822 = vmax.f32 %v1806, 0.0
        %v1823 = vmax.f32 %v1807, 0.0
        %v1824 = vmax.f32 %v1808, 0.0
        %v1825 = vmax.f32 %v1809, 0.0
        %v1826 = vmax.f32 %v1810, 0.0
        %v1827 = vmax.f32 %v1811, 0.0
        %1828 = vst [vmem:[%s353] sm:$0xff] %v1812
        %1829 = vst [vmem:[%s353 + $0x8] sm:$0xff] %v1813
        %1830 = vst [vmem:[%s353 + $0x10] sm:$0xff] %v1814
        %1831 = vst [vmem:[%s353 + $0x18] sm:$0xff] %v1815
        %1832 = vst [vmem:[%s353 + $0x20] sm:$0xff] %v1816
        %1833 = vst [vmem:[%s353 + $0x28] sm:$0xff] %v1817
        %1834 = vst [vmem:[%s353 + $0x30] sm:$0xff] %v1818
        %1835 = vst [vmem:[%s353 + $0x38] sm:$0xff] %v1819
        %1836 = vst [vmem:[%s353 + $0x40] sm:$0xff] %v1820
        %1837 = vst [vmem:[%s353 + $0x48] sm:$0xff] %v1821
        %1838 = vst [vmem:[%s353 + $0x50] sm:$0xff] %v1822
        %1839 = vst [vmem:[%s353 + $0x58] sm:$0xff] %v1823
        %1840 = vst [vmem:[%s353 + $0x60] sm:$0xff] %v1824
        %1841 = vst [vmem:[%s353 + $0x68] sm:$0xff] %v1825
        %1842 = vst [vmem:[%s353 + $0x70] sm:$0xff] %v1826
        %1843 = vst [vmem:[%s353 + $0x78] sm:$0xff] %v1827
        %s1844 = sand.u32 %s165, 1
        %s1845 = scalar_lea.sflag [#allocation4], %s1844
        %s1846 = sand.u32 %s165, 1
        %s1847 = smul.addr %s1846, 128
        %s1848 = scalar_lea.vmem [#allocation13], %s1847
        // Predicated region
        $region69: #{tpu_custom_call.1} parent=43 // pred_check
          %p1849 = pneg %p175
        $region70: #{tpu_custom_call.1} parent=43 // pred_check_branch
          %1851 = sbr.rel (%p1849) target = $region72
        $region71: #{tpu_custom_call.1} parent=43 // pred_region
          %s1852 = smul.u32 8, %s26
          %1854 = vsyncadd %s1845, 0
          %s1855 = smul.addr %s1852, 2
          %s1856 = smul.addr %s1855, 8
          %s1857 = scalar_lea.hbm %s6, %s1856
          %s1858 = sshll.u32 %s1848, 4
          %s1859 = int_to_ptr.vmem [resolvable:$true] %s1858
          %s1860 = sshll.u32 %s1857, 4
          %s1861 = int_to_ptr.hbm [resolvable:$true] %s1860
          %1866 = dma.vmem_to_hbm [thread:$0]  %s1859, 2048, %s1861, %s1845, 128, 128, 8
        $region72: #{tpu_custom_call.1} parent=43 // pred_fallthru
          _
      $region44: #{tpu_custom_call.1} parent=5 // pred_fallthru
        _
      %p1867 = scmp.le.s32.totalorder 2, %s21
      // Predicated region
      $region73: #{tpu_custom_call.1} parent=5 // pred_check
        %p1868 = pneg %p1867
      $region74: #{tpu_custom_call.1} parent=5 // pred_check_branch
        %1870 = sbr.rel (%p1868) target = $region76
      $region75: #{tpu_custom_call.1} parent=5 // pred_region
        %s1871 = ssub.s32 %s21, 2
        // Predicated region
        $region77: #{tpu_custom_call.1} parent=75 // pred_check
          %p1872 = pneg %p181
        $region78: #{tpu_custom_call.1} parent=75 // pred_check_branch
          %1874 = sbr.rel (%p1872) target = $region80
        $region79: #{tpu_custom_call.1} parent=75 // pred_region
          %s1875 = sand.u32 %s166, 1
          %s1876 = scalar_lea.sflag [#allocation4], %s1875
          %s1877 = sand.u32 %s166, 1
          %s1878 = smul.addr %s1877, 128
          %s1879 = scalar_lea.vmem [#allocation13], %s1878
          %1881 = dma.done %s1876, 2048
        $region80: #{tpu_custom_call.1} parent=75 // pred_fallthru
          _
      $region76: #{tpu_custom_call.1} parent=5 // pred_fallthru
        _
    $region6: #{tpu_custom_call.1} parent=1 // loop_footer
      %s25 = sadd.s32 1, %s21
    $region7: #{tpu_custom_call.1} parent=1 // loop_footer_branch
      %20 = sbr.rel target = $region3
    $region8: #{tpu_custom_call.1} parent=1 // loop_exit
      _
    %1882 = vsyncpa [#allocation3], 1
    %s1883 = scalar_lea.sflag [#allocation3], 1
    %1884 = vsyncpa %s1883, 1
    %1885 = vsyncpa [#allocation6], 1
    %1886 = vsyncpa [#allocation9], 1
    %1887 = vsyncpa [#allocation12], 1
    %1888 = vsyncpa [#allocation4], 1
    %s1889 = scalar_lea.sflag [#allocation4], 1
    %1890 = vsyncpa %s1889, 1

</llo_original>
